<compile_context>
chip_gen: v5e
topology: v5e:2x2
jax: 0.10.0
libtpu: 0.0.40
codegen_flags: <defaults>
</compile_context>

<pallas_src>
import functools
import math

import jax
import jax.numpy as jnp
from jax.experimental import pallas as pl
from jax.experimental.pallas import tpu as pltpu

_VMEM_LIMIT = 48 * 1024 * 1024  # safe on v7x (64 MiB) and v5e/v6e (128 MiB)

# Tile targets: tm=256, tn/tk/te=512 (f32).  Multiples of 128 (v5e MXU) and 256
# (v6e/v7x MXU); double-buffered tiles stay far below the v7x 64 MiB budget.
_TM, _TN, _TK, _TE = 256, 512, 512, 512


def _pick_tile(dim, target, align):
    """Largest tile <= target that divides `dim` and is a multiple of `align`;
    falls back to the full dim (always a legal Pallas block)."""
    if dim <= target:
        return dim
    t = (target // align) * align
    while t >= align:
        if dim % t == 0:
            return t
        t -= align
    return dim


# --------------------------- tiled matmul kernel -----------------------------

def _matmul_kernel(*refs, has_bias, has_res, act):
    x_ref, w_ref = refs[0], refs[1]
    idx = 2
    b_ref = r_ref = None
    if has_bias:
        b_ref = refs[idx]; idx += 1
    if has_res:
        r_ref = refs[idx]; idx += 1
    o_ref, acc_ref = refs[idx], refs[idx + 1]

    k = pl.program_id(2)

    @pl.when(k == 0)
    def _():
        acc_ref[...] = jnp.zeros_like(acc_ref)

    acc_ref[...] += jnp.dot(x_ref[...], w_ref[...],
                            preferred_element_type=jnp.float32)

    @pl.when(k == pl.num_programs(2) - 1)
    def _():
        y = acc_ref[...]
        if has_bias:
            y = y + b_ref[...].astype(jnp.float32)
        if act == "gelu":                      # my_gelu(x) = x * sigmoid(1.702 x)
            y = y * jax.nn.sigmoid(1.702 * y)
        if has_res:
            y = y + r_ref[...].astype(jnp.float32)
        o_ref[...] = y.astype(o_ref.dtype)


def pallas_linear(x2d, w, b=None, act=None, residual=None,
                  tm=_TM, tn=_TN, tk=_TK):
    """y = act(x @ w [+ b]) [+ residual], tiled (M//tm, N//tn, K//tk)."""
    M, K = x2d.shape
    _, N = w.shape
    tm = _pick_tile(M, tm, 8)
    tn = _pick_tile(N, tn, 128)
    tk = _pick_tile(K, tk, 128)
    grid = (M // tm, N // tn, K // tk)

    in_specs = [pl.BlockSpec((tm, tk), lambda i, j, k: (i, k)),
                pl.BlockSpec((tk, tn), lambda i, j, k: (k, j))]
    args = [x2d, w]
    if b is not None:
        in_specs.append(pl.BlockSpec((1, tn), lambda i, j, k: (0, j)))
        args.append(b.reshape(1, N))
    if residual is not None:
        in_specs.append(pl.BlockSpec((tm, tn), lambda i, j, k: (i, j)))
        args.append(residual)

    return pl.pallas_call(
        functools.partial(_matmul_kernel, has_bias=b is not None,
                          has_res=residual is not None, act=act),
        out_shape=jax.ShapeDtypeStruct((M, N), x2d.dtype),
        grid=grid,
        in_specs=in_specs,
        out_specs=pl.BlockSpec((tm, tn), lambda i, j, k: (i, j)),
        scratch_shapes=[pltpu.VMEM((tm, tn), jnp.float32)],
        compiler_params=pltpu.CompilerParams(
            dimension_semantics=("parallel", "parallel", "arbitrary"),
            vmem_limit_bytes=_VMEM_LIMIT),
    )(*args)


# ------------------- fused LayerNorm + linear (QKV path) ---------------------

def _ln_linear_kernel(x_ref, g_ref, b_ref, w_ref, bias_ref, o_ref, xln_ref, *,
                      eps):
    @pl.when(pl.program_id(1) == 0)          # LN computed once per row-block
    def _():
        x = x_ref[...].astype(jnp.float32)
        mu = jnp.mean(x, axis=-1, keepdims=True)
        var = jnp.mean((x - mu) ** 2, axis=-1, keepdims=True)
        xln_ref[...] = ((x - mu) * jax.lax.rsqrt(var + eps)
                        * g_ref[...] + b_ref[...])
    y = jnp.dot(xln_ref[...], w_ref[...], preferred_element_type=jnp.float32)
    y = y + bias_ref[...]
    o_ref[...] = y.astype(o_ref.dtype)


def pallas_ln_linear(x2d, gamma, beta, w, bias, eps=1e-5, tm=_TM, tn=_TN):
    M, H = x2d.shape
    _, N = w.shape
    tm = _pick_tile(M, tm, 8)
    tn = _pick_tile(N, tn, 128)
    grid = (M // tm, N // tn)
    return pl.pallas_call(
        functools.partial(_ln_linear_kernel, eps=eps),
        out_shape=jax.ShapeDtypeStruct((M, N), x2d.dtype),
        grid=grid,
        in_specs=[pl.BlockSpec((tm, H), lambda i, j: (i, 0)),
                  pl.BlockSpec((1, H), lambda i, j: (0, 0)),
                  pl.BlockSpec((1, H), lambda i, j: (0, 0)),
                  pl.BlockSpec((H, tn), lambda i, j: (0, j)),
                  pl.BlockSpec((1, tn), lambda i, j: (0, j))],
        out_specs=pl.BlockSpec((tm, tn), lambda i, j: (i, j)),
        scratch_shapes=[pltpu.VMEM((tm, H), jnp.float32)],
        compiler_params=pltpu.CompilerParams(
            dimension_semantics=("parallel", "arbitrary"),
            vmem_limit_bytes=_VMEM_LIMIT),
    )(x2d, gamma.reshape(1, H), beta.reshape(1, H), w, bias.reshape(1, N))


# --------- fused MLP block: LN + wi + gelu + wm + residual (VMEM h) ----------

def _mlp_kernel(x_ref, g_ref, b_ref, wi_ref, bi_ref, wm_ref, o_ref,
                xln_ref, acc_ref, *, eps):
    e = pl.program_id(1)

    @pl.when(e == 0)
    def _():
        x = x_ref[...].astype(jnp.float32)
        mu = jnp.mean(x, axis=-1, keepdims=True)
        var = jnp.mean((x - mu) ** 2, axis=-1, keepdims=True)
        xln_ref[...] = ((x - mu) * jax.lax.rsqrt(var + eps)
                        * g_ref[...] + b_ref[...])
        acc_ref[...] = x                      # residual = pre-LN input

    h = jnp.dot(xln_ref[...], wi_ref[...], preferred_element_type=jnp.float32)
    h = h + bi_ref[...]
    h = h * jax.nn.sigmoid(1.702 * h)         # my_gelu
    acc_ref[...] += jnp.dot(h, wm_ref[...], preferred_element_type=jnp.float32)

    @pl.when(e == pl.num_programs(1) - 1)
    def _():
        o_ref[...] = acc_ref[...].astype(o_ref.dtype)


def pallas_mlp_block(x2d, gamma, beta, wi, bi, wm, eps=1e-5, tm=_TM, te=_TE):
    M, H = x2d.shape
    _, E = wi.shape
    tm = _pick_tile(M, tm, 8)
    te = _pick_tile(E, te, 128)
    grid = (M // tm, E // te)
    return pl.pallas_call(
        functools.partial(_mlp_kernel, eps=eps),
        out_shape=jax.ShapeDtypeStruct((M, H), x2d.dtype),
        grid=grid,
        in_specs=[pl.BlockSpec((tm, H), lambda i, e: (i, 0)),
                  pl.BlockSpec((1, H), lambda i, e: (0, 0)),
                  pl.BlockSpec((1, H), lambda i, e: (0, 0)),
                  pl.BlockSpec((H, te), lambda i, e: (0, e)),
                  pl.BlockSpec((1, te), lambda i, e: (0, e)),
                  pl.BlockSpec((te, H), lambda i, e: (e, 0))],
        out_specs=pl.BlockSpec((tm, H), lambda i, e: (i, 0)),
        scratch_shapes=[pltpu.VMEM((tm, H), jnp.float32),
                        pltpu.VMEM((tm, H), jnp.float32)],
        compiler_params=pltpu.CompilerParams(
            dimension_semantics=("parallel", "arbitrary"),
            vmem_limit_bytes=_VMEM_LIMIT),
    )(x2d, gamma.reshape(1, H), beta.reshape(1, H), wi, bi.reshape(1, E), wm)


# ----------------------------- standalone LayerNorm --------------------------

def _layernorm_kernel(x_ref, g_ref, b_ref, o_ref, *, eps):
    x = x_ref[...].astype(jnp.float32)
    mu = jnp.mean(x, axis=-1, keepdims=True)
    var = jnp.mean((x - mu) ** 2, axis=-1, keepdims=True)
    y = (x - mu) * jax.lax.rsqrt(var + eps)
    o_ref[...] = (y * g_ref[...] + b_ref[...]).astype(o_ref.dtype)


def pallas_layernorm(x2d, gamma, beta, eps=1e-5, tm=1024):
    M, H = x2d.shape
    tm = _pick_tile(M, tm, 8)
    return pl.pallas_call(
        functools.partial(_layernorm_kernel, eps=eps),
        out_shape=jax.ShapeDtypeStruct((M, H), x2d.dtype),
        grid=(M // tm,),
        in_specs=[pl.BlockSpec((tm, H), lambda i: (i, 0)),
                  pl.BlockSpec((1, H), lambda i: (0, 0)),
                  pl.BlockSpec((1, H), lambda i: (0, 0))],
        out_specs=pl.BlockSpec((tm, H), lambda i: (i, 0)),
        compiler_params=pltpu.CompilerParams(
            dimension_semantics=("parallel",),
            vmem_limit_bytes=_VMEM_LIMIT),
    )(x2d, gamma.reshape(1, H), beta.reshape(1, H))


# ------------------------------ attention kernel -----------------------------
# Transpose-free: inputs/outputs stay in merged-head [B, S, H] layout; the grid
# runs per batch element, the per-head slabs are static lane slices in-kernel,
# and the output store is lane-dense (width H >= 128).
# TODO(synk): flash-style Sk tiling (online softmax m/l/acc scratch) for very
# long audio sequences; the full [S, S] score matrix is assumed to fit VMEM.

def _attn_kernel(q_ref, k_ref, v_ref, o_ref, *, nh, hd, scale):
    outs = []
    for h in range(nh):
        sl = slice(h * hd, (h + 1) * hd)
        qh = q_ref[0, :, sl].astype(jnp.float32) * scale        # [Sq, hd]
        kh = k_ref[0, :, sl].astype(jnp.float32)                # [Sk, hd]
        vh = v_ref[0, :, sl].astype(jnp.float32)                # [Sk, hd]
        s = jax.lax.dot_general(qh, kh, (((1,), (1,)), ((), ())),
                                preferred_element_type=jnp.float32)  # [Sq, Sk]
        m = jnp.max(s, axis=-1, keepdims=True)
        e = jnp.exp(s - m)
        p = e * pl.reciprocal(jnp.sum(e, axis=-1, keepdims=True), approx=True)
        outs.append(jnp.dot(p, vh, preferred_element_type=jnp.float32))
    o_ref[0] = jnp.concatenate(outs, axis=-1).astype(o_ref.dtype)


def pallas_attention(q, k, v, nh, hd, scale):
    # q: [B, Sq, H]; k, v: [B, Sk, H]  ->  [B, Sq, H]
    B, Sq, H = q.shape
    _, Sk, _ = k.shape
    return pl.pallas_call(
        functools.partial(_attn_kernel, nh=nh, hd=hd, scale=scale),
        out_shape=jax.ShapeDtypeStruct((B, Sq, H), q.dtype),
        grid=(B,),
        in_specs=[pl.BlockSpec((1, Sq, H), lambda b: (b, 0, 0)),
                  pl.BlockSpec((1, Sk, H), lambda b: (b, 0, 0)),
                  pl.BlockSpec((1, Sk, H), lambda b: (b, 0, 0))],
        out_specs=pl.BlockSpec((1, Sq, H), lambda b: (b, 0, 0)),
        compiler_params=pltpu.CompilerParams(
            dimension_semantics=("parallel",),
            vmem_limit_bytes=_VMEM_LIMIT),
    )(q, k, v)


# ------------------------------ rotary (plain JAX) ----------------------------

def get_rotary_coordinates(seq_len, center_origin=True):
    if center_origin:
        sl0 = seq_len // 2
        nseq = jnp.arange(sl0, dtype=jnp.float32) - float(sl0)
        pseq = 1.0 + jnp.arange(seq_len - sl0, dtype=jnp.float32)
        return jnp.concatenate([nseq, pseq], 0)
    return 1.0 + jnp.arange(seq_len, dtype=jnp.float32)


def construct_rotary_sinusoids(coords, rotary_hsize=32, max_freq=10.0):
    # coords: [L, num_dims] -> sinusoids [2 (cos then sin), L, rotary_hsize]
    L, num_dims = coords.shape
    assert rotary_hsize % (num_dims * 2) == 0
    dim_expansion = rotary_hsize // (num_dims * 2)
    freqs = jnp.logspace(0.0, math.log2(max_freq / 2.0), dim_expansion,
                         base=2.0, dtype=coords.dtype)
    radians = coords[..., None] * freqs * jnp.pi              # [L, nd, de]
    radians = radians.reshape(L, num_dims * dim_expansion)
    sinusoids = jnp.stack([jnp.cos(radians), jnp.sin(radians)], axis=-3)
    sinusoids = jnp.tile(sinusoids, (1, 1, 2))                # [2, L, rot]
    return sinusoids


def apply_rotary(query_key, sinusoids):
    # Faithful replica of the reference apply_rotary (including its variable
    # naming where index 0 of `sinusoids` -- the cos values -- is bound to
    # `sin`, and its even-negate "rotation").  Applied separately to q and k.
    rot = sinusoids.shape[-1]
    sin = sinusoids[..., 0, :, None, :]
    cos = sinusoids[..., 1, :, None, :]
    qk_rope = query_key[..., :rot]
    rotated = jnp.stack([-qk_rope[..., ::2], qk_rope[..., 1::2]],
                        axis=-1).reshape(qk_rope.shape)
    qk_rope = qk_rope * cos + rotated * sin
    return jnp.concatenate([qk_rope, query_key[..., rot:]], axis=-1)


# ---------------------------------- model ------------------------------------

def attention_block_fwd(x, p, sinusoids, nh, hd):
    # x: [B, S, H] (pre-LN residual input)
    B, S, H = x.shape
    x2 = x.reshape(B * S, H)
    # fused pre-attn LayerNorm + QKV projection (single [H, 3H] matmul)
    qkv = pallas_ln_linear(x2, p["ln1_g"], p["ln1_b"], p["wqkv"], p["bqkv"])
    qkv = qkv.reshape(B, S, 3 * H)
    q = qkv[..., :H].reshape(B, S, nh, hd)
    k = qkv[..., H:2 * H].reshape(B, S, nh, hd)
    v = qkv[..., 2 * H:]                                       # stays [B, S, H]
    if sinusoids is not None:
        q = apply_rotary(q, sinusoids)
        k = apply_rotary(k, sinusoids)
    q = q.reshape(B, S, H)
    k = k.reshape(B, S, H)
    attn = pallas_attention(q, k, v, nh, hd, scale=1.0 / math.sqrt(hd))
    # output projection (no bias) fused with the residual add
    out = pallas_linear(attn.reshape(B * S, H), p["wo"], b=None, residual=x2)
    return out.reshape(B, S, H)


def transformer_layer_fwd(x, p, sinusoids, nh, hd):
    x = attention_block_fwd(x, p, sinusoids, nh, hd)          # residual inside
    B, S, H = x.shape
    x = pallas_mlp_block(x.reshape(B * S, H), p["ln2_g"], p["ln2_b"],
                         p["wi"], p["bi"], p["wm"])           # LN+MLP+residual
    return x.reshape(B, S, H)


def transformer_encoder_fwd(x, enc, rotary_coords, nh, hd, rotary_hsize):
    B, S0, H = x.shape
    cls = jnp.broadcast_to(enc["cls"], (B, 1, H)).astype(x.dtype)
    x = jnp.concatenate([cls, x], axis=-2)                    # add CLS token
    rotary_coords = jnp.concatenate(
        [jnp.zeros_like(rotary_coords[..., :1, :]), rotary_coords], axis=-2)
    sinusoids = construct_rotary_sinusoids(rotary_coords,
                                           rotary_hsize=rotary_hsize)
    S = S0 + 1
    x = pallas_layernorm(x.reshape(B * S, H), enc["pre_ln_g"],
                         enc["pre_ln_b"]).reshape(B, S, H)
    for lp in enc["layers"]:
        x = transformer_layer_fwd(x, lp, sinusoids, nh, hd)
    x_ln = pallas_layernorm(x.reshape(B * S, H), enc["final_ln_g"],
                            enc["final_ln_b"]).reshape(B, S, H)
    return {
        "cls": pallas_linear(x_ln[:, 0, :], enc["cls_proj_w"],
                             enc["cls_proj_b"]),
        "seq": x_ln[:, 1:, :],
    }


def audio_transformer_fwd(params, x, *, patch_size, hidden, size_per_head,
                          pooling_ratio, rotary_hsize):
    B, raw_len, C = x.shape
    assert C == 65                       # num_mels + playback_speed
    assert raw_len % patch_size == 0
    nh, hd = hidden // size_per_head, size_per_head
    seq_len = raw_len // patch_size

    # patch embedding: Conv1d(kernel=stride=patch) == reshape + matmul.
    # Contraction dim (patch*65 = 130) is zero-padded to a 128 multiple for
    # aligned lane layout (the weight rows were padded at init).
    Kp = patch_size * C
    Kpad = params["emb_w"].shape[0]
    xp = x.reshape(B, seq_len, Kp)
    if Kpad != Kp:
        xp = jnp.pad(xp, ((0, 0), (0, 0), (0, Kpad - Kp)))
    emb = pallas_linear(xp.reshape(B * seq_len, Kpad),
                        params["emb_w"], params["emb_b"])
    emb = emb.reshape(B, seq_len, hidden)

    coords = get_rotary_coordinates(seq_len)[:, None] / seq_len   # [seq_len,1]
    t_out = transformer_encoder_fwd(emb, params["enc"], coords, nh, hd,
                                    rotary_hsize)

    # seq attention pooling (flax MultiHeadDotProductAttention semantics)
    assert seq_len % pooling_ratio == 0
    l2 = seq_len // pooling_ratio
    ap = params["attnpool"]
    seq = t_out["seq"].reshape(B * l2, pooling_ratio, hidden)   # [BL, pool, H]
    BL = seq.shape[0]
    q_in = jnp.mean(seq, axis=-2)                               # [BL, H]
    q = pallas_linear(q_in, ap["wq"], ap["bq"]).reshape(BL, 1, hidden)
    kv = pallas_linear(seq.reshape(BL * pooling_ratio, hidden),
                       ap["wkv"], ap["bkv"])                    # fused K|V proj
    kv = kv.reshape(BL, pooling_ratio, 2 * hidden)
    k = kv[..., :hidden]
    v = kv[..., hidden:]
    o = pallas_attention(q, k, v, nh, hd, scale=1.0 / math.sqrt(hd))  # [BL,1,H]
    o = pallas_linear(o.reshape(BL, hidden), ap["wo"], ap["bo"])
    t_out["seq_attnpool"] = o.reshape(B, l2, hidden)
    return t_out


# ---------------------------------- params ------------------------------------

def init_params(key, *, hidden, num_layers, patch_size, num_mels_plus1):
    H, E = hidden, 4 * hidden
    Kp = patch_size * num_mels_plus1
    Kpad = ((Kp + 127) // 128) * 128
    n_keys = 6 + 4 * num_layers
    keys = iter(jax.random.split(key, n_keys))
    nrm = lambda k, shape: 0.02 * jax.random.normal(k, shape, jnp.float32)
    zeros = lambda n: jnp.zeros((n,), jnp.float32)
    ones = lambda n: jnp.ones((n,), jnp.float32)
    # weight rows beyond the real contraction dim are zero (padding)
    emb_w = jnp.zeros((Kpad, H), jnp.float32).at[:Kp].set(nrm(next(keys), (Kp, H)))
    params = {
        "emb_w": emb_w, "emb_b": zeros(H),
        "enc": {
            "cls": nrm(next(keys), (1, 1, H)),
            "cls_proj_w": nrm(next(keys), (H, H)), "cls_proj_b": zeros(H),
            "pre_ln_g": ones(H), "pre_ln_b": zeros(H),
            "final_ln_g": ones(H), "final_ln_b": zeros(H),
            "layers": [],
        },
        "attnpool": {
            "wq": nrm(next(keys), (H, H)), "bq": zeros(H),
            "wkv": nrm(next(keys), (H, 2 * H)), "bkv": zeros(2 * H),  # K|V fused
            "wo": nrm(next(keys), (H, H)), "bo": zeros(H),
        },
    }
    for _ in range(num_layers):
        params["enc"]["layers"].append({
            "ln1_g": ones(H), "ln1_b": zeros(H),
            "ln2_g": ones(H), "ln2_b": zeros(H),
            "wqkv": nrm(next(keys), (H, 3 * H)), "bqkv": zeros(3 * H),  # Q|K|V fused
            "wo": nrm(next(keys), (H, H)),              # attn_proj, no bias
            "wi": nrm(next(keys), (H, E)), "bi": zeros(E),
            "wm": nrm(next(keys), (E, H)),              # mlp out, no bias
        })
    return params


# ----------------------------------- main --------------------------------------

if __name__ == "__main__":
    # small config consistent with the module: hidden % size_per_head == 0,
    # rotary_hsize (32) <= size_per_head, raw_len % patch == 0,
    # seq_len % pooling_ratio == 0, channels == 65.
    patch_size, hidden, num_layers = 2, 128, 2
    size_per_head, pooling_ratio, rotary_hsize = 64, 3, 32
    B, L, C = 2, 12, 65

    key = jax.random.PRNGKey(0)
    pkey, xkey = jax.random.split(key)
    params = init_params(pkey, hidden=hidden, num_layers=num_layers,
                         patch_size=patch_size, num_mels_plus1=C)
    x = jax.random.normal(xkey, (B, L, C), dtype=jnp.float32)

    fwd = jax.jit(functools.partial(
        audio_transformer_fwd, patch_size=patch_size, hidden=hidden,
        size_per_head=size_per_head, pooling_ratio=pooling_ratio,
        rotary_hsize=rotary_hsize))

    out = fwd(params, x)
    out = jax.tree_util.tree_map(jax.block_until_ready, out)

    seq_len = L // patch_size
    assert out["cls"].shape == (B, hidden)
    assert out["seq"].shape == (B, seq_len, hidden)
    assert out["seq_attnpool"].shape == (B, seq_len // pooling_ratio, hidden)
    assert all(bool(jnp.all(jnp.isfinite(v))) for v in
               (out["cls"], out["seq"], out["seq_attnpool"]))
    print("KERNEL_OK")
</pallas_src>

<mosaic_0001>
module attributes {stable_mosaic.version = 11 : i64} {
  func.func @_matmul_kernel(%arg0: i32, %arg1: i32, %arg2: i32, %arg3: memref<12x256xf32, #tpu.memory_space<vmem>>, %arg4: memref<256x128xf32, #tpu.memory_space<vmem>>, %arg5: memref<1x128xf32, #tpu.memory_space<vmem>>, %arg6: memref<12x128xf32, #tpu.memory_space<vmem>>, %arg7: memref<12x128xf32, #tpu.memory_space<vmem>>) attributes {dimension_semantics = [#tpu.dimension_semantics<parallel>, #tpu.dimension_semantics<parallel>, #tpu.dimension_semantics<arbitrary>], iteration_bounds = array<i64: 1, 1, 1>, scalar_prefetch = 0 : i64, scratch_operands = 1 : i64, tpu.core_type = #tpu.core_type<tc>, window_params = [{transform_indices = @transform_0, window_bounds = array<i64: 12, 256>}, {transform_indices = @transform_1, window_bounds = array<i64: 256, 128>}, {transform_indices = @transform_2, window_bounds = array<i64: 1, 128>}, {transform_indices = @transform_3, window_bounds = array<i64: 12, 128>}]} {
    %c0_i32 = arith.constant 0 : i32
    %0 = arith.cmpi eq, %arg2, %c0_i32 : i32
    %1 = arith.extui %0 : i1 to i32
    %c0_i32_0 = arith.constant 0 : i32
    %2 = arith.cmpi ne, %1, %c0_i32_0 : i32
    scf.if %2 {
      %cst_10 = arith.constant 0.000000e+00 : f32
      %12 = vector.broadcast %cst_10 : f32 to vector<12x128xf32>
      %c0_11 = arith.constant 0 : index
      %c0_12 = arith.constant 0 : index
      %13 = vector.load %arg7[%c0_11, %c0_12] : memref<12x128xf32, #tpu.memory_space<vmem>>, vector<12x128xf32>
      tpu.vector_store %arg7[%c0_11, %c0_12], %12 {strides = array<i32>} : memref<12x128xf32, #tpu.memory_space<vmem>>, vector<12x128xf32>,
    } else {
    }
    %c0 = arith.constant 0 : index
    %c0_1 = arith.constant 0 : index
    %3 = vector.load %arg7[%c0, %c0_1] : memref<12x128xf32, #tpu.memory_space<vmem>>, vector<12x128xf32>
    %c0_2 = arith.constant 0 : index
    %c0_3 = arith.constant 0 : index
    %4 = vector.load %arg3[%c0_2, %c0_3] : memref<12x256xf32, #tpu.memory_space<vmem>>, vector<12x256xf32>
    %c0_4 = arith.constant 0 : index
    %c0_5 = arith.constant 0 : index
    %5 = vector.load %arg4[%c0_4, %c0_5] : memref<256x128xf32, #tpu.memory_space<vmem>>, vector<256x128xf32>
    %cst = arith.constant dense<0.000000e+00> : vector<12x128xf32>
    %6 = tpu.matmul %4, %5, %cst {dimension_numbers = #tpu.dot_dimension_numbers<[1], [0], [0], [1], [0, 0, 1, 1], [], []>} : vector<12x256xf32>, vector<256x128xf32>, vector<12x128xf32> -> vector<12x128xf32>
    %7 = arith.addf %3, %6 : vector<12x128xf32>
    %c0_6 = arith.constant 0 : index
    %c0_7 = arith.constant 0 : index
    %8 = vector.load %arg7[%c0_6, %c0_7] : memref<12x128xf32, #tpu.memory_space<vmem>>, vector<12x128xf32>
    tpu.vector_store %arg7[%c0_6, %c0_7], %7 {strides = array<i32>} : memref<12x128xf32, #tpu.memory_space<vmem>>, vector<12x128xf32>,
    %c0_i32_8 = arith.constant 0 : i32
    %9 = arith.cmpi eq, %arg2, %c0_i32_8 : i32
    %10 = arith.extui %9 : i1 to i32
    %c0_i32_9 = arith.constant 0 : i32
    %11 = arith.cmpi ne, %10, %c0_i32_9 : i32
    scf.if %11 {
      %c0_10 = arith.constant 0 : index
      %c0_11 = arith.constant 0 : index
      %12 = vector.load %arg7[%c0_10, %c0_11] : memref<12x128xf32, #tpu.memory_space<vmem>>, vector<12x128xf32>
      %c0_12 = arith.constant 0 : index
      %c0_13 = arith.constant 0 : index
      %13 = vector.load %arg5[%c0_12, %c0_13] : memref<1x128xf32, #tpu.memory_space<vmem>>, vector<1x128xf32>
      %14 = vector.broadcast %13 : vector<1x128xf32> to vector<12x128xf32>
      %15 = arith.addf %12, %14 : vector<12x128xf32>
      %c0_14 = arith.constant 0 : index
      %c0_15 = arith.constant 0 : index
      %16 = vector.load %arg6[%c0_14, %c0_15] : memref<12x128xf32, #tpu.memory_space<vmem>>, vector<12x128xf32>
      tpu.vector_store %arg6[%c0_14, %c0_15], %15 {strides = array<i32>} : memref<12x128xf32, #tpu.memory_space<vmem>>, vector<12x128xf32>,
    } else {
    }
    return
  }
  func.func @transform_0(%arg0: i32, %arg1: i32, %arg2: i32) -> (i32, i32) {
    %c0_i32 = arith.constant 0 : i32
    return %arg0, %arg2 : i32, i32
  }
  func.func @transform_1(%arg0: i32, %arg1: i32, %arg2: i32) -> (i32, i32) {
    %c0_i32 = arith.constant 0 : i32
    return %arg2, %arg1 : i32, i32
  }
  func.func @transform_2(%arg0: i32, %arg1: i32, %arg2: i32) -> (i32, i32) {
    %c0_i32 = arith.constant 0 : i32
    %c0_i32_0 = arith.constant 0 : i32
    return %c0_i32, %arg1 : i32, i32
  }
  func.func @transform_3(%arg0: i32, %arg1: i32, %arg2: i32) -> (i32, i32) {
    %c0_i32 = arith.constant 0 : i32
    return %arg0, %arg1 : i32, i32
  }
}

module attributes {stable_mosaic.version = 11 : i64} {
  func.func @_layernorm_kernel(%arg0: i32, %arg1: memref<14x128xf32, #tpu.memory_space<vmem>>, %arg2: memref<1x128xf32, #tpu.memory_space<vmem>>, %arg3: memref<1x128xf32, #tpu.memory_space<vmem>>, %arg4: memref<14x128xf32, #tpu.memory_space<vmem>>) attributes {dimension_semantics = [#tpu.dimension_semantics<parallel>], iteration_bounds = array<i64: 1>, scalar_prefetch = 0 : i64, scratch_operands = 0 : i64, tpu.core_type = #tpu.core_type<tc>, window_params = [{transform_indices = @transform_0, window_bounds = array<i64: 14, 128>}, {pipeline_mode = #tpu.pipeline_mode<synchronous>, transform_indices = @transform_1, window_bounds = array<i64: 1, 128>}, {pipeline_mode = #tpu.pipeline_mode<synchronous>, transform_indices = @transform_2, window_bounds = array<i64: 1, 128>}, {transform_indices = @transform_3, window_bounds = array<i64: 14, 128>}]} {
    %c0 = arith.constant 0 : index
    %c0_0 = arith.constant 0 : index
    %0 = vector.load %arg1[%c0, %c0_0] : memref<14x128xf32, #tpu.memory_space<vmem>>, vector<14x128xf32>
    %cst = arith.constant dense<0.000000e+00> : vector<14xf32>
    %1 = vector.multi_reduction <add>, %0, %cst [1] : vector<14x128xf32> to vector<14xf32>
    %2 = vector.shape_cast %1 : vector<14xf32> to vector<14x1xf32>
    %cst_1 = arith.constant 1.280000e+02 : f32
    %3 = vector.broadcast %cst_1 : f32 to vector<14x1xf32>
    %4 = arith.divf %2, %3 : vector<14x1xf32>
    %5 = vector.broadcast %4 : vector<14x1xf32> to vector<14x128xf32>
    %6 = arith.subf %0, %5 : vector<14x128xf32>
    %7 = arith.mulf %6, %6 : vector<14x128xf32>
    %cst_2 = arith.constant dense<0.000000e+00> : vector<14xf32>
    %8 = vector.multi_reduction <add>, %7, %cst_2 [1] : vector<14x128xf32> to vector<14xf32>
    %9 = vector.shape_cast %8 : vector<14xf32> to vector<14x1xf32>
    %cst_3 = arith.constant 1.280000e+02 : f32
    %10 = vector.broadcast %cst_3 : f32 to vector<14x1xf32>
    %11 = arith.divf %9, %10 : vector<14x1xf32>
    %12 = vector.broadcast %4 : vector<14x1xf32> to vector<14x128xf32>
    %13 = arith.subf %0, %12 : vector<14x128xf32>
    %cst_4 = arith.constant 9.99999974E-6 : f32
    %14 = vector.broadcast %cst_4 : f32 to vector<14x1xf32>
    %15 = arith.addf %11, %14 : vector<14x1xf32>
    %16 = math.rsqrt %15 : vector<14x1xf32>
    %17 = vector.broadcast %16 : vector<14x1xf32> to vector<14x128xf32>
    %18 = arith.mulf %13, %17 : vector<14x128xf32>
    %c0_5 = arith.constant 0 : index
    %c0_6 = arith.constant 0 : index
    %19 = vector.load %arg2[%c0_5, %c0_6] : memref<1x128xf32, #tpu.memory_space<vmem>>, vector<1x128xf32>
    %20 = vector.broadcast %19 : vector<1x128xf32> to vector<14x128xf32>
    %21 = arith.mulf %18, %20 : vector<14x128xf32>
    %c0_7 = arith.constant 0 : index
    %c0_8 = arith.constant 0 : index
    %22 = vector.load %arg3[%c0_7, %c0_8] : memref<1x128xf32, #tpu.memory_space<vmem>>, vector<1x128xf32>
    %23 = vector.broadcast %22 : vector<1x128xf32> to vector<14x128xf32>
    %24 = arith.addf %21, %23 : vector<14x128xf32>
    %c0_9 = arith.constant 0 : index
    %c0_10 = arith.constant 0 : index
    %25 = vector.load %arg4[%c0_9, %c0_10] : memref<14x128xf32, #tpu.memory_space<vmem>>, vector<14x128xf32>
    tpu.vector_store %arg4[%c0_9, %c0_10], %24 {strides = array<i32>} : memref<14x128xf32, #tpu.memory_space<vmem>>, vector<14x128xf32>,
    return
  }
  func.func @transform_0(%arg0: i32) -> (i32, i32) {
    %c0_i32 = arith.constant 0 : i32
    %c0_i32_0 = arith.constant 0 : i32
    return %arg0, %c0_i32 : i32, i32
  }
  func.func @transform_1(%arg0: i32) -> (i32, i32) {
    %c0_i32 = arith.constant 0 : i32
    %c0_i32_0 = arith.constant 0 : i32
    %c0_i32_1 = arith.constant 0 : i32
    return %c0_i32, %c0_i32_0 : i32, i32
  }
  func.func @transform_2(%arg0: i32) -> (i32, i32) {
    %c0_i32 = arith.constant 0 : i32
    %c0_i32_0 = arith.constant 0 : i32
    %c0_i32_1 = arith.constant 0 : i32
    return %c0_i32, %c0_i32_0 : i32, i32
  }
  func.func @transform_3(%arg0: i32) -> (i32, i32) {
    %c0_i32 = arith.constant 0 : i32
    %c0_i32_0 = arith.constant 0 : i32
    return %arg0, %c0_i32 : i32, i32
  }
}

module attributes {stable_mosaic.version = 11 : i64} {
  func.func @_ln_linear_kernel(%arg0: i32, %arg1: i32, %arg2: memref<14x128xf32, #tpu.memory_space<vmem>>, %arg3: memref<1x128xf32, #tpu.memory_space<vmem>>, %arg4: memref<1x128xf32, #tpu.memory_space<vmem>>, %arg5: memref<128x384xf32, #tpu.memory_space<vmem>>, %arg6: memref<1x384xf32, #tpu.memory_space<vmem>>, %arg7: memref<14x384xf32, #tpu.memory_space<vmem>>, %arg8: memref<14x128xf32, #tpu.memory_space<vmem>>) attributes {dimension_semantics = [#tpu.dimension_semantics<parallel>, #tpu.dimension_semantics<arbitrary>], iteration_bounds = array<i64: 1, 1>, scalar_prefetch = 0 : i64, scratch_operands = 1 : i64, tpu.core_type = #tpu.core_type<tc>, window_params = [{transform_indices = @transform_0, window_bounds = array<i64: 14, 128>}, {pipeline_mode = #tpu.pipeline_mode<synchronous>, transform_indices = @transform_1, window_bounds = array<i64: 1, 128>}, {pipeline_mode = #tpu.pipeline_mode<synchronous>, transform_indices = @transform_2, window_bounds = array<i64: 1, 128>}, {transform_indices = @transform_3, window_bounds = array<i64: 128, 384>}, {transform_indices = @transform_4, window_bounds = array<i64: 1, 384>}, {transform_indices = @transform_5, window_bounds = array<i64: 14, 384>}]} {
    %c0_i32 = arith.constant 0 : i32
    %0 = arith.cmpi eq, %arg1, %c0_i32 : i32
    %1 = arith.extui %0 : i1 to i32
    %c0_i32_0 = arith.constant 0 : i32
    %2 = arith.cmpi ne, %1, %c0_i32_0 : i32
    scf.if %2 {
      %c0_8 = arith.constant 0 : index
      %c0_9 = arith.constant 0 : index
      %10 = vector.load %arg2[%c0_8, %c0_9] : memref<14x128xf32, #tpu.memory_space<vmem>>, vector<14x128xf32>
      %cst_10 = arith.constant dense<0.000000e+00> : vector<14xf32>
      %11 = vector.multi_reduction <add>, %10, %cst_10 [1] : vector<14x128xf32> to vector<14xf32>
      %12 = vector.shape_cast %11 : vector<14xf32> to vector<14x1xf32>
      %cst_11 = arith.constant 1.280000e+02 : f32
      %13 = vector.broadcast %cst_11 : f32 to vector<14x1xf32>
      %14 = arith.divf %12, %13 : vector<14x1xf32>
      %15 = vector.broadcast %14 : vector<14x1xf32> to vector<14x128xf32>
      %16 = arith.subf %10, %15 : vector<14x128xf32>
      %17 = arith.mulf %16, %16 : vector<14x128xf32>
      %cst_12 = arith.constant dense<0.000000e+00> : vector<14xf32>
      %18 = vector.multi_reduction <add>, %17, %cst_12 [1] : vector<14x128xf32> to vector<14xf32>
      %19 = vector.shape_cast %18 : vector<14xf32> to vector<14x1xf32>
      %cst_13 = arith.constant 1.280000e+02 : f32
      %20 = vector.broadcast %cst_13 : f32 to vector<14x1xf32>
      %21 = arith.divf %19, %20 : vector<14x1xf32>
      %22 = vector.broadcast %14 : vector<14x1xf32> to vector<14x128xf32>
      %23 = arith.subf %10, %22 : vector<14x128xf32>
      %cst_14 = arith.constant 9.99999974E-6 : f32
      %24 = vector.broadcast %cst_14 : f32 to vector<14x1xf32>
      %25 = arith.addf %21, %24 : vector<14x1xf32>
      %26 = math.rsqrt %25 : vector<14x1xf32>
      %27 = vector.broadcast %26 : vector<14x1xf32> to vector<14x128xf32>
      %28 = arith.mulf %23, %27 : vector<14x128xf32>
      %c0_15 = arith.constant 0 : index
      %c0_16 = arith.constant 0 : index
      %29 = vector.load %arg3[%c0_15, %c0_16] : memref<1x128xf32, #tpu.memory_space<vmem>>, vector<1x128xf32>
      %30 = vector.broadcast %29 : vector<1x128xf32> to vector<14x128xf32>
      %31 = arith.mulf %28, %30 : vector<14x128xf32>
      %c0_17 = arith.constant 0 : index
      %c0_18 = arith.constant 0 : index
      %32 = vector.load %arg4[%c0_17, %c0_18] : memref<1x128xf32, #tpu.memory_space<vmem>>, vector<1x128xf32>
      %33 = vector.broadcast %32 : vector<1x128xf32> to vector<14x128xf32>
      %34 = arith.addf %31, %33 : vector<14x128xf32>
      %c0_19 = arith.constant 0 : index
      %c0_20 = arith.constant 0 : index
      %35 = vector.load %arg8[%c0_19, %c0_20] : memref<14x128xf32, #tpu.memory_space<vmem>>, vector<14x128xf32>
      tpu.vector_store %arg8[%c0_19, %c0_20], %34 {strides = array<i32>} : memref<14x128xf32, #tpu.memory_space<vmem>>, vector<14x128xf32>,
    } else {
    }
    %c0 = arith.constant 0 : index
    %c0_1 = arith.constant 0 : index
    %3 = vector.load %arg8[%c0, %c0_1] : memref<14x128xf32, #tpu.memory_space<vmem>>, vector<14x128xf32>
    %c0_2 = arith.constant 0 : index
    %c0_3 = arith.constant 0 : index
    %4 = vector.load %arg5[%c0_2, %c0_3] : memref<128x384xf32, #tpu.memory_space<vmem>>, vector<128x384xf32>
    %cst = arith.constant dense<0.000000e+00> : vector<14x384xf32>
    %5 = tpu.matmul %3, %4, %cst {dimension_numbers = #tpu.dot_dimension_numbers<[1], [0], [0], [1], [0, 0, 1, 1], [], []>} : vector<14x128xf32>, vector<128x384xf32>, vector<14x384xf32> -> vector<14x384xf32>
    %c0_4 = arith.constant 0 : index
    %c0_5 = arith.constant 0 : index
    %6 = vector.load %arg6[%c0_4, %c0_5] : memref<1x384xf32, #tpu.memory_space<vmem>>, vector<1x384xf32>
    %7 = vector.broadcast %6 : vector<1x384xf32> to vector<14x384xf32>
    %8 = arith.addf %5, %7 : vector<14x384xf32>
    %c0_6 = arith.constant 0 : index
    %c0_7 = arith.constant 0 : index
    %9 = vector.load %arg7[%c0_6, %c0_7] : memref<14x384xf32, #tpu.memory_space<vmem>>, vector<14x384xf32>
    tpu.vector_store %arg7[%c0_6, %c0_7], %8 {strides = array<i32>} : memref<14x384xf32, #tpu.memory_space<vmem>>, vector<14x384xf32>,
    return
  }
  func.func @transform_0(%arg0: i32, %arg1: i32) -> (i32, i32) {
    %c0_i32 = arith.constant 0 : i32
    %c0_i32_0 = arith.constant 0 : i32
    return %arg0, %c0_i32 : i32, i32
  }
  func.func @transform_1(%arg0: i32, %arg1: i32) -> (i32, i32) {
    %c0_i32 = arith.constant 0 : i32
    %c0_i32_0 = arith.constant 0 : i32
    %c0_i32_1 = arith.constant 0 : i32
    return %c0_i32, %c0_i32_0 : i32, i32
  }
  func.func @transform_2(%arg0: i32, %arg1: i32) -> (i32, i32) {
    %c0_i32 = arith.constant 0 : i32
    %c0_i32_0 = arith.constant 0 : i32
    %c0_i32_1 = arith.constant 0 : i32
    return %c0_i32, %c0_i32_0 : i32, i32
  }
  func.func @transform_3(%arg0: i32, %arg1: i32) -> (i32, i32) {
    %c0_i32 = arith.constant 0 : i32
    %c0_i32_0 = arith.constant 0 : i32
    return %c0_i32, %arg1 : i32, i32
  }
  func.func @transform_4(%arg0: i32, %arg1: i32) -> (i32, i32) {
    %c0_i32 = arith.constant 0 : i32
    %c0_i32_0 = arith.constant 0 : i32
    return %c0_i32, %arg1 : i32, i32
  }
  func.func @transform_5(%arg0: i32, %arg1: i32) -> (i32, i32) {
    %c0_i32 = arith.constant 0 : i32
    return %arg0, %arg1 : i32, i32
  }
}

module attributes {stable_mosaic.version = 11 : i64} {
  func.func @_attn_kernel(%arg0: i32, %arg1: memref<1x7x128xf32, #tpu.memory_space<vmem>>, %arg2: memref<1x7x128xf32, #tpu.memory_space<vmem>>, %arg3: memref<1x7x128xf32, #tpu.memory_space<vmem>>, %arg4: memref<1x7x128xf32, #tpu.memory_space<vmem>>) attributes {dimension_semantics = [#tpu.dimension_semantics<parallel>], iteration_bounds = array<i64: 2>, scalar_prefetch = 0 : i64, scratch_operands = 0 : i64, tpu.core_type = #tpu.core_type<tc>, window_params = [{transform_indices = @transform_0, window_bounds = array<i64: 1, 7, 128>}, {transform_indices = @transform_1, window_bounds = array<i64: 1, 7, 128>}, {transform_indices = @transform_2, window_bounds = array<i64: 1, 7, 128>}, {transform_indices = @transform_3, window_bounds = array<i64: 1, 7, 128>}]} {
    %c0 = arith.constant 0 : index
    %c0_0 = arith.constant 0 : index
    %c0_1 = arith.constant 0 : index
    %0 = vector.load %arg1[%c0, %c0_0, %c0_1] : memref<1x7x128xf32, #tpu.memory_space<vmem>>, vector<1x7x64xf32>
    %1 = vector.shape_cast %0 : vector<1x7x64xf32> to vector<7x64xf32>
    %cst = arith.constant 1.250000e-01 : f32
    %2 = vector.broadcast %cst : f32 to vector<7x64xf32>
    %3 = arith.mulf %1, %2 : vector<7x64xf32>
    %c0_2 = arith.constant 0 : index
    %c0_3 = arith.constant 0 : index
    %c0_4 = arith.constant 0 : index
    %4 = vector.load %arg2[%c0_2, %c0_3, %c0_4] : memref<1x7x128xf32, #tpu.memory_space<vmem>>, vector<1x7x64xf32>
    %5 = vector.shape_cast %4 : vector<1x7x64xf32> to vector<7x64xf32>
    %c0_5 = arith.constant 0 : index
    %c0_6 = arith.constant 0 : index
    %c0_7 = arith.constant 0 : index
    %6 = vector.load %arg3[%c0_5, %c0_6, %c0_7] : memref<1x7x128xf32, #tpu.memory_space<vmem>>, vector<1x7x64xf32>
    %7 = vector.shape_cast %6 : vector<1x7x64xf32> to vector<7x64xf32>
    %cst_8 = arith.constant dense<0.000000e+00> : vector<7x7xf32>
    %8 = tpu.matmul %3, %5, %cst_8 {dimension_numbers = #tpu.dot_dimension_numbers<[1], [1], [0], [0], [0, 0, 1, 0], [], []>} : vector<7x64xf32>, vector<7x64xf32>, vector<7x7xf32> -> vector<7x7xf32>
    %cst_9 = arith.constant dense<0xFF800000> : vector<7xf32>
    %9 = vector.multi_reduction <maximumf>, %8, %cst_9 [1] : vector<7x7xf32> to vector<7xf32>
    %10 = vector.shape_cast %9 : vector<7xf32> to vector<7x1xf32>
    %11 = vector.broadcast %10 : vector<7x1xf32> to vector<7x7xf32>
    %12 = arith.subf %8, %11 : vector<7x7xf32>
    %13 = math.exp %12 : vector<7x7xf32>
    %cst_10 = arith.constant dense<0.000000e+00> : vector<7xf32>
    %14 = vector.multi_reduction <add>, %13, %cst_10 [1] : vector<7x7xf32> to vector<7xf32>
    %15 = vector.shape_cast %14 : vector<7xf32> to vector<7x1xf32>
    %16 = tpu.reciprocal %15 {approx = true} : vector<7x1xf32> -> vector<7x1xf32>
    %17 = vector.broadcast %16 : vector<7x1xf32> to vector<7x7xf32>
    %18 = arith.mulf %13, %17 : vector<7x7xf32>
    %cst_11 = arith.constant dense<0.000000e+00> : vector<7x64xf32>
    %19 = tpu.matmul %18, %7, %cst_11 {dimension_numbers = #tpu.dot_dimension_numbers<[1], [0], [0], [1], [0, 0, 1, 1], [], []>} : vector<7x7xf32>, vector<7x64xf32>, vector<7x64xf32> -> vector<7x64xf32>
    %c0_12 = arith.constant 0 : index
    %c0_13 = arith.constant 0 : index
    %c64 = arith.constant 64 : index
    %20 = vector.load %arg1[%c0_12, %c0_13, %c64] : memref<1x7x128xf32, #tpu.memory_space<vmem>>, vector<1x7x64xf32>
    %21 = vector.shape_cast %20 : vector<1x7x64xf32> to vector<7x64xf32>
    %cst_14 = arith.constant 1.250000e-01 : f32
    %22 = vector.broadcast %cst_14 : f32 to vector<7x64xf32>
    %23 = arith.mulf %21, %22 : vector<7x64xf32>
    %c0_15 = arith.constant 0 : index
    %c0_16 = arith.constant 0 : index
    %c64_17 = arith.constant 64 : index
    %24 = vector.load %arg2[%c0_15, %c0_16, %c64_17] : memref<1x7x128xf32, #tpu.memory_space<vmem>>, vector<1x7x64xf32>
    %25 = vector.shape_cast %24 : vector<1x7x64xf32> to vector<7x64xf32>
    %c0_18 = arith.constant 0 : index
    %c0_19 = arith.constant 0 : index
    %c64_20 = arith.constant 64 : index
    %26 = vector.load %arg3[%c0_18, %c0_19, %c64_20] : memref<1x7x128xf32, #tpu.memory_space<vmem>>, vector<1x7x64xf32>
    %27 = vector.shape_cast %26 : vector<1x7x64xf32> to vector<7x64xf32>
    %cst_21 = arith.constant dense<0.000000e+00> : vector<7x7xf32>
    %28 = tpu.matmul %23, %25, %cst_21 {dimension_numbers = #tpu.dot_dimension_numbers<[1], [1], [0], [0], [0, 0, 1, 0], [], []>} : vector<7x64xf32>, vector<7x64xf32>, vector<7x7xf32> -> vector<7x7xf32>
    %cst_22 = arith.constant dense<0xFF800000> : vector<7xf32>
    %29 = vector.multi_reduction <maximumf>, %28, %cst_22 [1] : vector<7x7xf32> to vector<7xf32>
    %30 = vector.shape_cast %29 : vector<7xf32> to vector<7x1xf32>
    %31 = vector.broadcast %30 : vector<7x1xf32> to vector<7x7xf32>
    %32 = arith.subf %28, %31 : vector<7x7xf32>
    %33 = math.exp %32 : vector<7x7xf32>
    %cst_23 = arith.constant dense<0.000000e+00> : vector<7xf32>
    %34 = vector.multi_reduction <add>, %33, %cst_23 [1] : vector<7x7xf32> to vector<7xf32>
    %35 = vector.shape_cast %34 : vector<7xf32> to vector<7x1xf32>
    %36 = tpu.reciprocal %35 {approx = true} : vector<7x1xf32> -> vector<7x1xf32>
    %37 = vector.broadcast %36 : vector<7x1xf32> to vector<7x7xf32>
    %38 = arith.mulf %33, %37 : vector<7x7xf32>
    %cst_24 = arith.constant dense<0.000000e+00> : vector<7x64xf32>
    %39 = tpu.matmul %38, %27, %cst_24 {dimension_numbers = #tpu.dot_dimension_numbers<[1], [0], [0], [1], [0, 0, 1, 1], [], []>} : vector<7x7xf32>, vector<7x64xf32>, vector<7x64xf32> -> vector<7x64xf32>
    %40 = tpu.concatenate %19, %39 in 1 : vector<7x64xf32>, vector<7x64xf32> -> vector<7x128xf32>
    %c0_25 = arith.constant 0 : index
    %c0_26 = arith.constant 0 : index
    %c0_27 = arith.constant 0 : index
    %41 = vector.load %arg4[%c0_25, %c0_26, %c0_27] : memref<1x7x128xf32, #tpu.memory_space<vmem>>, vector<1x7x128xf32>
    %42 = vector.shape_cast %41 : vector<1x7x128xf32> to vector<7x128xf32>
    %43 = vector.shape_cast %40 : vector<7x128xf32> to vector<1x7x128xf32>
    tpu.vector_store %arg4[%c0_25, %c0_26, %c0_27], %43 {strides = array<i32>} : memref<1x7x128xf32, #tpu.memory_space<vmem>>, vector<1x7x128xf32>,
    return
  }
  func.func @transform_0(%arg0: i32) -> (i32, i32, i32) {
    %c0_i32 = arith.constant 0 : i32
    %c0_i32_0 = arith.constant 0 : i32
    %c0_i32_1 = arith.constant 0 : i32
    return %arg0, %c0_i32, %c0_i32_0 : i32, i32, i32
  }
  func.func @transform_1(%arg0: i32) -> (i32, i32, i32) {
    %c0_i32 = arith.constant 0 : i32
    %c0_i32_0 = arith.constant 0 : i32
    %c0_i32_1 = arith.constant 0 : i32
    return %arg0, %c0_i32, %c0_i32_0 : i32, i32, i32
  }
  func.func @transform_2(%arg0: i32) -> (i32, i32, i32) {
    %c0_i32 = arith.constant 0 : i32
    %c0_i32_0 = arith.constant 0 : i32
    %c0_i32_1 = arith.constant 0 : i32
    return %arg0, %c0_i32, %c0_i32_0 : i32, i32, i32
  }
  func.func @transform_3(%arg0: i32) -> (i32, i32, i32) {
    %c0_i32 = arith.constant 0 : i32
    %c0_i32_0 = arith.constant 0 : i32
    %c0_i32_1 = arith.constant 0 : i32
    return %arg0, %c0_i32, %c0_i32_0 : i32, i32, i32
  }
}

module attributes {stable_mosaic.version = 11 : i64} {
  func.func @_mlp_kernel(%arg0: i32, %arg1: i32, %arg2: memref<14x128xf32, #tpu.memory_space<vmem>>, %arg3: memref<1x128xf32, #tpu.memory_space<vmem>>, %arg4: memref<1x128xf32, #tpu.memory_space<vmem>>, %arg5: memref<128x512xf32, #tpu.memory_space<vmem>>, %arg6: memref<1x512xf32, #tpu.memory_space<vmem>>, %arg7: memref<512x128xf32, #tpu.memory_space<vmem>>, %arg8: memref<14x128xf32, #tpu.memory_space<vmem>>, %arg9: memref<14x128xf32, #tpu.memory_space<vmem>>, %arg10: memref<14x128xf32, #tpu.memory_space<vmem>>) attributes {dimension_semantics = [#tpu.dimension_semantics<parallel>, #tpu.dimension_semantics<arbitrary>], iteration_bounds = array<i64: 1, 1>, scalar_prefetch = 0 : i64, scratch_operands = 2 : i64, tpu.core_type = #tpu.core_type<tc>, window_params = [{transform_indices = @transform_0, window_bounds = array<i64: 14, 128>}, {pipeline_mode = #tpu.pipeline_mode<synchronous>, transform_indices = @transform_1, window_bounds = array<i64: 1, 128>}, {pipeline_mode = #tpu.pipeline_mode<synchronous>, transform_indices = @transform_2, window_bounds = array<i64: 1, 128>}, {transform_indices = @transform_3, window_bounds = array<i64: 128, 512>}, {transform_indices = @transform_4, window_bounds = array<i64: 1, 512>}, {transform_indices = @transform_5, window_bounds = array<i64: 512, 128>}, {transform_indices = @transform_6, window_bounds = array<i64: 14, 128>}]} {
    %c0_i32 = arith.constant 0 : i32
    %0 = arith.cmpi eq, %arg1, %c0_i32 : i32
    %1 = arith.extui %0 : i1 to i32
    %c0_i32_0 = arith.constant 0 : i32
    %2 = arith.cmpi ne, %1, %c0_i32_0 : i32
    scf.if %2 {
      %c0_17 = arith.constant 0 : index
      %c0_18 = arith.constant 0 : index
      %25 = vector.load %arg2[%c0_17, %c0_18] : memref<14x128xf32, #tpu.memory_space<vmem>>, vector<14x128xf32>
      %cst_19 = arith.constant dense<0.000000e+00> : vector<14xf32>
      %26 = vector.multi_reduction <add>, %25, %cst_19 [1] : vector<14x128xf32> to vector<14xf32>
      %27 = vector.shape_cast %26 : vector<14xf32> to vector<14x1xf32>
      %cst_20 = arith.constant 1.280000e+02 : f32
      %28 = vector.broadcast %cst_20 : f32 to vector<14x1xf32>
      %29 = arith.divf %27, %28 : vector<14x1xf32>
      %30 = vector.broadcast %29 : vector<14x1xf32> to vector<14x128xf32>
      %31 = arith.subf %25, %30 : vector<14x128xf32>
      %32 = arith.mulf %31, %31 : vector<14x128xf32>
      %cst_21 = arith.constant dense<0.000000e+00> : vector<14xf32>
      %33 = vector.multi_reduction <add>, %32, %cst_21 [1] : vector<14x128xf32> to vector<14xf32>
      %34 = vector.shape_cast %33 : vector<14xf32> to vector<14x1xf32>
      %cst_22 = arith.constant 1.280000e+02 : f32
      %35 = vector.broadcast %cst_22 : f32 to vector<14x1xf32>
      %36 = arith.divf %34, %35 : vector<14x1xf32>
      %37 = vector.broadcast %29 : vector<14x1xf32> to vector<14x128xf32>
      %38 = arith.subf %25, %37 : vector<14x128xf32>
      %cst_23 = arith.constant 9.99999974E-6 : f32
      %39 = vector.broadcast %cst_23 : f32 to vector<14x1xf32>
      %40 = arith.addf %36, %39 : vector<14x1xf32>
      %41 = math.rsqrt %40 : vector<14x1xf32>
      %42 = vector.broadcast %41 : vector<14x1xf32> to vector<14x128xf32>
      %43 = arith.mulf %38, %42 : vector<14x128xf32>
      %c0_24 = arith.constant 0 : index
      %c0_25 = arith.constant 0 : index
      %44 = vector.load %arg3[%c0_24, %c0_25] : memref<1x128xf32, #tpu.memory_space<vmem>>, vector<1x128xf32>
      %45 = vector.broadcast %44 : vector<1x128xf32> to vector<14x128xf32>
      %46 = arith.mulf %43, %45 : vector<14x128xf32>
      %c0_26 = arith.constant 0 : index
      %c0_27 = arith.constant 0 : index
      %47 = vector.load %arg4[%c0_26, %c0_27] : memref<1x128xf32, #tpu.memory_space<vmem>>, vector<1x128xf32>
      %48 = vector.broadcast %47 : vector<1x128xf32> to vector<14x128xf32>
      %49 = arith.addf %46, %48 : vector<14x128xf32>
      %c0_28 = arith.constant 0 : index
      %c0_29 = arith.constant 0 : index
      %50 = vector.load %arg9[%c0_28, %c0_29] : memref<14x128xf32, #tpu.memory_space<vmem>>, vector<14x128xf32>
      tpu.vector_store %arg9[%c0_28, %c0_29], %49 {strides = array<i32>} : memref<14x128xf32, #tpu.memory_space<vmem>>, vector<14x128xf32>,
      %c0_30 = arith.constant 0 : index
      %c0_31 = arith.constant 0 : index
      %51 = vector.load %arg10[%c0_30, %c0_31] : memref<14x128xf32, #tpu.memory_space<vmem>>, vector<14x128xf32>
      tpu.vector_store %arg10[%c0_30, %c0_31], %25 {strides = array<i32>} : memref<14x128xf32, #tpu.memory_space<vmem>>, vector<14x128xf32>,
    } else {
    }
    %c0 = arith.constant 0 : index
    %c0_1 = arith.constant 0 : index
    %3 = vector.load %arg9[%c0, %c0_1] : memref<14x128xf32, #tpu.memory_space<vmem>>, vector<14x128xf32>
    %c0_2 = arith.constant 0 : index
    %c0_3 = arith.constant 0 : index
    %4 = vector.load %arg5[%c0_2, %c0_3] : memref<128x512xf32, #tpu.memory_space<vmem>>, vector<128x512xf32>
    %cst = arith.constant dense<0.000000e+00> : vector<14x512xf32>
    %5 = tpu.matmul %3, %4, %cst {dimension_numbers = #tpu.dot_dimension_numbers<[1], [0], [0], [1], [0, 0, 1, 1], [], []>} : vector<14x128xf32>, vector<128x512xf32>, vector<14x512xf32> -> vector<14x512xf32>
    %c0_4 = arith.constant 0 : index
    %c0_5 = arith.constant 0 : index
    %6 = vector.load %arg6[%c0_4, %c0_5] : memref<1x512xf32, #tpu.memory_space<vmem>>, vector<1x512xf32>
    %7 = vector.broadcast %6 : vector<1x512xf32> to vector<14x512xf32>
    %8 = arith.addf %5, %7 : vector<14x512xf32>
    %cst_6 = arith.constant 1.702000e+00 : f32
    %9 = vector.broadcast %cst_6 : f32 to vector<14x512xf32>
    %10 = arith.mulf %9, %8 : vector<14x512xf32>
    %11 = arith.negf %10 : vector<14x512xf32>
    %12 = math.exp %11 : vector<14x512xf32>
    %cst_7 = arith.constant 1.000000e+00 : f32
    %13 = vector.broadcast %cst_7 : f32 to vector<14x512xf32>
    %14 = arith.addf %13, %12 : vector<14x512xf32>
    %15 = arith.divf %13, %14 : vector<14x512xf32>
    %16 = arith.mulf %8, %15 : vector<14x512xf32>
    %c0_8 = arith.constant 0 : index
    %c0_9 = arith.constant 0 : index
    %17 = vector.load %arg10[%c0_8, %c0_9] : memref<14x128xf32, #tpu.memory_space<vmem>>, vector<14x128xf32>
    %c0_10 = arith.constant 0 : index
    %c0_11 = arith.constant 0 : index
    %18 = vector.load %arg7[%c0_10, %c0_11] : memref<512x128xf32, #tpu.memory_space<vmem>>, vector<512x128xf32>
    %cst_12 = arith.constant dense<0.000000e+00> : vector<14x128xf32>
    %19 = tpu.matmul %16, %18, %cst_12 {dimension_numbers = #tpu.dot_dimension_numbers<[1], [0], [0], [1], [0, 0, 1, 1], [], []>} : vector<14x512xf32>, vector<512x128xf32>, vector<14x128xf32> -> vector<14x128xf32>
    %20 = arith.addf %17, %19 : vector<14x128xf32>
    %c0_13 = arith.constant 0 : index
    %c0_14 = arith.constant 0 : index
    %21 = vector.load %arg10[%c0_13, %c0_14] : memref<14x128xf32, #tpu.memory_space<vmem>>, vector<14x128xf32>
    tpu.vector_store %arg10[%c0_13, %c0_14], %20 {strides = array<i32>} : memref<14x128xf32, #tpu.memory_space<vmem>>, vector<14x128xf32>,
    %c0_i32_15 = arith.constant 0 : i32
    %22 = arith.cmpi eq, %arg1, %c0_i32_15 : i32
    %23 = arith.extui %22 : i1 to i32
    %c0_i32_16 = arith.constant 0 : i32
    %24 = arith.cmpi ne, %23, %c0_i32_16 : i32
    scf.if %24 {
      %c0_17 = arith.constant 0 : index
      %c0_18 = arith.constant 0 : index
      %25 = vector.load %arg10[%c0_17, %c0_18] : memref<14x128xf32, #tpu.memory_space<vmem>>, vector<14x128xf32>
      %c0_19 = arith.constant 0 : index
      %c0_20 = arith.constant 0 : index
      %26 = vector.load %arg8[%c0_19, %c0_20] : memref<14x128xf32, #tpu.memory_space<vmem>>, vector<14x128xf32>
      tpu.vector_store %arg8[%c0_19, %c0_20], %25 {strides = array<i32>} : memref<14x128xf32, #tpu.memory_space<vmem>>, vector<14x128xf32>,
    } else {
    }
    return
  }
  func.func @transform_0(%arg0: i32, %arg1: i32) -> (i32, i32) {
    %c0_i32 = arith.constant 0 : i32
    %c0_i32_0 = arith.constant 0 : i32
    return %arg0, %c0_i32 : i32, i32
  }
  func.func @transform_1(%arg0: i32, %arg1: i32) -> (i32, i32) {
    %c0_i32 = arith.constant 0 : i32
    %c0_i32_0 = arith.constant 0 : i32
    %c0_i32_1 = arith.constant 0 : i32
    return %c0_i32, %c0_i32_0 : i32, i32
  }
  func.func @transform_2(%arg0: i32, %arg1: i32) -> (i32, i32) {
    %c0_i32 = arith.constant 0 : i32
    %c0_i32_0 = arith.constant 0 : i32
    %c0_i32_1 = arith.constant 0 : i32
    return %c0_i32, %c0_i32_0 : i32, i32
  }
  func.func @transform_3(%arg0: i32, %arg1: i32) -> (i32, i32) {
    %c0_i32 = arith.constant 0 : i32
    %c0_i32_0 = arith.constant 0 : i32
    return %c0_i32, %arg1 : i32, i32
  }
  func.func @transform_4(%arg0: i32, %arg1: i32) -> (i32, i32) {
    %c0_i32 = arith.constant 0 : i32
    %c0_i32_0 = arith.constant 0 : i32
    return %c0_i32, %arg1 : i32, i32
  }
  func.func @transform_5(%arg0: i32, %arg1: i32) -> (i32, i32) {
    %c0_i32 = arith.constant 0 : i32
    %c0_i32_0 = arith.constant 0 : i32
    return %arg1, %c0_i32 : i32, i32
  }
  func.func @transform_6(%arg0: i32, %arg1: i32) -> (i32, i32) {
    %c0_i32 = arith.constant 0 : i32
    %c0_i32_0 = arith.constant 0 : i32
    return %arg0, %c0_i32 : i32, i32
  }
}

module attributes {stable_mosaic.version = 11 : i64} {
  func.func @_matmul_kernel(%arg0: i32, %arg1: i32, %arg2: i32, %arg3: memref<14x128xf32, #tpu.memory_space<vmem>>, %arg4: memref<128x128xf32, #tpu.memory_space<vmem>>, %arg5: memref<14x128xf32, #tpu.memory_space<vmem>>, %arg6: memref<14x128xf32, #tpu.memory_space<vmem>>, %arg7: memref<14x128xf32, #tpu.memory_space<vmem>>) attributes {dimension_semantics = [#tpu.dimension_semantics<parallel>, #tpu.dimension_semantics<parallel>, #tpu.dimension_semantics<arbitrary>], iteration_bounds = array<i64: 1, 1, 1>, scalar_prefetch = 0 : i64, scratch_operands = 1 : i64, tpu.core_type = #tpu.core_type<tc>, window_params = [{transform_indices = @transform_0, window_bounds = array<i64: 14, 128>}, {transform_indices = @transform_1, window_bounds = array<i64: 128, 128>}, {transform_indices = @transform_2, window_bounds = array<i64: 14, 128>}, {transform_indices = @transform_3, window_bounds = array<i64: 14, 128>}]} {
    %c0_i32 = arith.constant 0 : i32
    %0 = arith.cmpi eq, %arg2, %c0_i32 : i32
    %1 = arith.extui %0 : i1 to i32
    %c0_i32_0 = arith.constant 0 : i32
    %2 = arith.cmpi ne, %1, %c0_i32_0 : i32
    scf.if %2 {
      %cst_10 = arith.constant 0.000000e+00 : f32
      %12 = vector.broadcast %cst_10 : f32 to vector<14x128xf32>
      %c0_11 = arith.constant 0 : index
      %c0_12 = arith.constant 0 : index
      %13 = vector.load %arg7[%c0_11, %c0_12] : memref<14x128xf32, #tpu.memory_space<vmem>>, vector<14x128xf32>
      tpu.vector_store %arg7[%c0_11, %c0_12], %12 {strides = array<i32>} : memref<14x128xf32, #tpu.memory_space<vmem>>, vector<14x128xf32>,
    } else {
    }
    %c0 = arith.constant 0 : index
    %c0_1 = arith.constant 0 : index
    %3 = vector.load %arg7[%c0, %c0_1] : memref<14x128xf32, #tpu.memory_space<vmem>>, vector<14x128xf32>
    %c0_2 = arith.constant 0 : index
    %c0_3 = arith.constant 0 : index
    %4 = vector.load %arg3[%c0_2, %c0_3] : memref<14x128xf32, #tpu.memory_space<vmem>>, vector<14x128xf32>
    %c0_4 = arith.constant 0 : index
    %c0_5 = arith.constant 0 : index
    %5 = vector.load %arg4[%c0_4, %c0_5] : memref<128x128xf32, #tpu.memory_space<vmem>>, vector<128x128xf32>
    %cst = arith.constant dense<0.000000e+00> : vector<14x128xf32>
    %6 = tpu.matmul %4, %5, %cst {dimension_numbers = #tpu.dot_dimension_numbers<[1], [0], [0], [1], [0, 0, 1, 1], [], []>} : vector<14x128xf32>, vector<128x128xf32>, vector<14x128xf32> -> vector<14x128xf32>
    %7 = arith.addf %3, %6 : vector<14x128xf32>
    %c0_6 = arith.constant 0 : index
    %c0_7 = arith.constant 0 : index
    %8 = vector.load %arg7[%c0_6, %c0_7] : memref<14x128xf32, #tpu.memory_space<vmem>>, vector<14x128xf32>
    tpu.vector_store %arg7[%c0_6, %c0_7], %7 {strides = array<i32>} : memref<14x128xf32, #tpu.memory_space<vmem>>, vector<14x128xf32>,
    %c0_i32_8 = arith.constant 0 : i32
    %9 = arith.cmpi eq, %arg2, %c0_i32_8 : i32
    %10 = arith.extui %9 : i1 to i32
    %c0_i32_9 = arith.constant 0 : i32
    %11 = arith.cmpi ne, %10, %c0_i32_9 : i32
    scf.if %11 {
      %c0_10 = arith.constant 0 : index
      %c0_11 = arith.constant 0 : index
      %12 = vector.load %arg7[%c0_10, %c0_11] : memref<14x128xf32, #tpu.memory_space<vmem>>, vector<14x128xf32>
      %c0_12 = arith.constant 0 : index
      %c0_13 = arith.constant 0 : index
      %13 = vector.load %arg5[%c0_12, %c0_13] : memref<14x128xf32, #tpu.memory_space<vmem>>, vector<14x128xf32>
      %14 = arith.addf %12, %13 : vector<14x128xf32>
      %c0_14 = arith.constant 0 : index
      %c0_15 = arith.constant 0 : index
      %15 = vector.load %arg6[%c0_14, %c0_15] : memref<14x128xf32, #tpu.memory_space<vmem>>, vector<14x128xf32>
      tpu.vector_store %arg6[%c0_14, %c0_15], %14 {strides = array<i32>} : memref<14x128xf32, #tpu.memory_space<vmem>>, vector<14x128xf32>,
    } else {
    }
    return
  }
  func.func @transform_0(%arg0: i32, %arg1: i32, %arg2: i32) -> (i32, i32) {
    %c0_i32 = arith.constant 0 : i32
    return %arg0, %arg2 : i32, i32
  }
  func.func @transform_1(%arg0: i32, %arg1: i32, %arg2: i32) -> (i32, i32) {
    %c0_i32 = arith.constant 0 : i32
    return %arg2, %arg1 : i32, i32
  }
  func.func @transform_2(%arg0: i32, %arg1: i32, %arg2: i32) -> (i32, i32) {
    %c0_i32 = arith.constant 0 : i32
    return %arg0, %arg1 : i32, i32
  }
  func.func @transform_3(%arg0: i32, %arg1: i32, %arg2: i32) -> (i32, i32) {
    %c0_i32 = arith.constant 0 : i32
    return %arg0, %arg1 : i32, i32
  }
}

module attributes {stable_mosaic.version = 11 : i64} {
  func.func @_ln_linear_kernel(%arg0: i32, %arg1: i32, %arg2: memref<14x128xf32, #tpu.memory_space<vmem>>, %arg3: memref<1x128xf32, #tpu.memory_space<vmem>>, %arg4: memref<1x128xf32, #tpu.memory_space<vmem>>, %arg5: memref<128x384xf32, #tpu.memory_space<vmem>>, %arg6: memref<1x384xf32, #tpu.memory_space<vmem>>, %arg7: memref<14x384xf32, #tpu.memory_space<vmem>>, %arg8: memref<14x128xf32, #tpu.memory_space<vmem>>) attributes {dimension_semantics = [#tpu.dimension_semantics<parallel>, #tpu.dimension_semantics<arbitrary>], iteration_bounds = array<i64: 1, 1>, scalar_prefetch = 0 : i64, scratch_operands = 1 : i64, tpu.core_type = #tpu.core_type<tc>, window_params = [{transform_indices = @transform_0, window_bounds = array<i64: 14, 128>}, {pipeline_mode = #tpu.pipeline_mode<synchronous>, transform_indices = @transform_1, window_bounds = array<i64: 1, 128>}, {pipeline_mode = #tpu.pipeline_mode<synchronous>, transform_indices = @transform_2, window_bounds = array<i64: 1, 128>}, {transform_indices = @transform_3, window_bounds = array<i64: 128, 384>}, {transform_indices = @transform_4, window_bounds = array<i64: 1, 384>}, {transform_indices = @transform_5, window_bounds = array<i64: 14, 384>}]} {
    %c0_i32 = arith.constant 0 : i32
    %0 = arith.cmpi eq, %arg1, %c0_i32 : i32
    %1 = arith.extui %0 : i1 to i32
    %c0_i32_0 = arith.constant 0 : i32
    %2 = arith.cmpi ne, %1, %c0_i32_0 : i32
    scf.if %2 {
      %c0_8 = arith.constant 0 : index
      %c0_9 = arith.constant 0 : index
      %10 = vector.load %arg2[%c0_8, %c0_9] : memref<14x128xf32, #tpu.memory_space<vmem>>, vector<14x128xf32>
      %cst_10 = arith.constant dense<0.000000e+00> : vector<14xf32>
      %11 = vector.multi_reduction <add>, %10, %cst_10 [1] : vector<14x128xf32> to vector<14xf32>
      %12 = vector.shape_cast %11 : vector<14xf32> to vector<14x1xf32>
      %cst_11 = arith.constant 1.280000e+02 : f32
      %13 = vector.broadcast %cst_11 : f32 to vector<14x1xf32>
      %14 = arith.divf %12, %13 : vector<14x1xf32>
      %15 = vector.broadcast %14 : vector<14x1xf32> to vector<14x128xf32>
      %16 = arith.subf %10, %15 : vector<14x128xf32>
      %17 = arith.mulf %16, %16 : vector<14x128xf32>
      %cst_12 = arith.constant dense<0.000000e+00> : vector<14xf32>
      %18 = vector.multi_reduction <add>, %17, %cst_12 [1] : vector<14x128xf32> to vector<14xf32>
      %19 = vector.shape_cast %18 : vector<14xf32> to vector<14x1xf32>
      %cst_13 = arith.constant 1.280000e+02 : f32
      %20 = vector.broadcast %cst_13 : f32 to vector<14x1xf32>
      %21 = arith.divf %19, %20 : vector<14x1xf32>
      %22 = vector.broadcast %14 : vector<14x1xf32> to vector<14x128xf32>
      %23 = arith.subf %10, %22 : vector<14x128xf32>
      %cst_14 = arith.constant 9.99999974E-6 : f32
      %24 = vector.broadcast %cst_14 : f32 to vector<14x1xf32>
      %25 = arith.addf %21, %24 : vector<14x1xf32>
      %26 = math.rsqrt %25 : vector<14x1xf32>
      %27 = vector.broadcast %26 : vector<14x1xf32> to vector<14x128xf32>
      %28 = arith.mulf %23, %27 : vector<14x128xf32>
      %c0_15 = arith.constant 0 : index
      %c0_16 = arith.constant 0 : index
      %29 = vector.load %arg3[%c0_15, %c0_16] : memref<1x128xf32, #tpu.memory_space<vmem>>, vector<1x128xf32>
      %30 = vector.broadcast %29 : vector<1x128xf32> to vector<14x128xf32>
      %31 = arith.mulf %28, %30 : vector<14x128xf32>
      %c0_17 = arith.constant 0 : index
      %c0_18 = arith.constant 0 : index
      %32 = vector.load %arg4[%c0_17, %c0_18] : memref<1x128xf32, #tpu.memory_space<vmem>>, vector<1x128xf32>
      %33 = vector.broadcast %32 : vector<1x128xf32> to vector<14x128xf32>
      %34 = arith.addf %31, %33 : vector<14x128xf32>
      %c0_19 = arith.constant 0 : index
      %c0_20 = arith.constant 0 : index
      %35 = vector.load %arg8[%c0_19, %c0_20] : memref<14x128xf32, #tpu.memory_space<vmem>>, vector<14x128xf32>
      tpu.vector_store %arg8[%c0_19, %c0_20], %34 {strides = array<i32>} : memref<14x128xf32, #tpu.memory_space<vmem>>, vector<14x128xf32>,
    } else {
    }
    %c0 = arith.constant 0 : index
    %c0_1 = arith.constant 0 : index
    %3 = vector.load %arg8[%c0, %c0_1] : memref<14x128xf32, #tpu.memory_space<vmem>>, vector<14x128xf32>
    %c0_2 = arith.constant 0 : index
    %c0_3 = arith.constant 0 : index
    %4 = vector.load %arg5[%c0_2, %c0_3] : memref<128x384xf32, #tpu.memory_space<vmem>>, vector<128x384xf32>
    %cst = arith.constant dense<0.000000e+00> : vector<14x384xf32>
    %5 = tpu.matmul %3, %4, %cst {dimension_numbers = #tpu.dot_dimension_numbers<[1], [0], [0], [1], [0, 0, 1, 1], [], []>} : vector<14x128xf32>, vector<128x384xf32>, vector<14x384xf32> -> vector<14x384xf32>
    %c0_4 = arith.constant 0 : index
    %c0_5 = arith.constant 0 : index
    %6 = vector.load %arg6[%c0_4, %c0_5] : memref<1x384xf32, #tpu.memory_space<vmem>>, vector<1x384xf32>
    %7 = vector.broadcast %6 : vector<1x384xf32> to vector<14x384xf32>
    %8 = arith.addf %5, %7 : vector<14x384xf32>
    %c0_6 = arith.constant 0 : index
    %c0_7 = arith.constant 0 : index
    %9 = vector.load %arg7[%c0_6, %c0_7] : memref<14x384xf32, #tpu.memory_space<vmem>>, vector<14x384xf32>
    tpu.vector_store %arg7[%c0_6, %c0_7], %8 {strides = array<i32>} : memref<14x384xf32, #tpu.memory_space<vmem>>, vector<14x384xf32>,
    return
  }
  func.func @transform_0(%arg0: i32, %arg1: i32) -> (i32, i32) {
    %c0_i32 = arith.constant 0 : i32
    %c0_i32_0 = arith.constant 0 : i32
    return %arg0, %c0_i32 : i32, i32
  }
  func.func @transform_1(%arg0: i32, %arg1: i32) -> (i32, i32) {
    %c0_i32 = arith.constant 0 : i32
    %c0_i32_0 = arith.constant 0 : i32
    %c0_i32_1 = arith.constant 0 : i32
    return %c0_i32, %c0_i32_0 : i32, i32
  }
  func.func @transform_2(%arg0: i32, %arg1: i32) -> (i32, i32) {
    %c0_i32 = arith.constant 0 : i32
    %c0_i32_0 = arith.constant 0 : i32
    %c0_i32_1 = arith.constant 0 : i32
    return %c0_i32, %c0_i32_0 : i32, i32
  }
  func.func @transform_3(%arg0: i32, %arg1: i32) -> (i32, i32) {
    %c0_i32 = arith.constant 0 : i32
    %c0_i32_0 = arith.constant 0 : i32
    return %c0_i32, %arg1 : i32, i32
  }
  func.func @transform_4(%arg0: i32, %arg1: i32) -> (i32, i32) {
    %c0_i32 = arith.constant 0 : i32
    %c0_i32_0 = arith.constant 0 : i32
    return %c0_i32, %arg1 : i32, i32
  }
  func.func @transform_5(%arg0: i32, %arg1: i32) -> (i32, i32) {
    %c0_i32 = arith.constant 0 : i32
    return %arg0, %arg1 : i32, i32
  }
}

module attributes {stable_mosaic.version = 11 : i64} {
  func.func @_matmul_kernel(%arg0: i32, %arg1: i32, %arg2: i32, %arg3: memref<12x128xf32, #tpu.memory_space<vmem>>, %arg4: memref<128x256xf32, #tpu.memory_space<vmem>>, %arg5: memref<1x256xf32, #tpu.memory_space<vmem>>, %arg6: memref<12x256xf32, #tpu.memory_space<vmem>>, %arg7: memref<12x256xf32, #tpu.memory_space<vmem>>) attributes {dimension_semantics = [#tpu.dimension_semantics<parallel>, #tpu.dimension_semantics<parallel>, #tpu.dimension_semantics<arbitrary>], iteration_bounds = array<i64: 1, 1, 1>, scalar_prefetch = 0 : i64, scratch_operands = 1 : i64, tpu.core_type = #tpu.core_type<tc>, window_params = [{transform_indices = @transform_0, window_bounds = array<i64: 12, 128>}, {transform_indices = @transform_1, window_bounds = array<i64: 128, 256>}, {transform_indices = @transform_2, window_bounds = array<i64: 1, 256>}, {transform_indices = @transform_3, window_bounds = array<i64: 12, 256>}]} {
    %c0_i32 = arith.constant 0 : i32
    %0 = arith.cmpi eq, %arg2, %c0_i32 : i32
    %1 = arith.extui %0 : i1 to i32
    %c0_i32_0 = arith.constant 0 : i32
    %2 = arith.cmpi ne, %1, %c0_i32_0 : i32
    scf.if %2 {
      %cst_10 = arith.constant 0.000000e+00 : f32
      %12 = vector.broadcast %cst_10 : f32 to vector<12x256xf32>
      %c0_11 = arith.constant 0 : index
      %c0_12 = arith.constant 0 : index
      %13 = vector.load %arg7[%c0_11, %c0_12] : memref<12x256xf32, #tpu.memory_space<vmem>>, vector<12x256xf32>
      tpu.vector_store %arg7[%c0_11, %c0_12], %12 {strides = array<i32>} : memref<12x256xf32, #tpu.memory_space<vmem>>, vector<12x256xf32>,
    } else {
    }
    %c0 = arith.constant 0 : index
    %c0_1 = arith.constant 0 : index
    %3 = vector.load %arg7[%c0, %c0_1] : memref<12x256xf32, #tpu.memory_space<vmem>>, vector<12x256xf32>
    %c0_2 = arith.constant 0 : index
    %c0_3 = arith.constant 0 : index
    %4 = vector.load %arg3[%c0_2, %c0_3] : memref<12x128xf32, #tpu.memory_space<vmem>>, vector<12x128xf32>
    %c0_4 = arith.constant 0 : index
    %c0_5 = arith.constant 0 : index
    %5 = vector.load %arg4[%c0_4, %c0_5] : memref<128x256xf32, #tpu.memory_space<vmem>>, vector<128x256xf32>
    %cst = arith.constant dense<0.000000e+00> : vector<12x256xf32>
    %6 = tpu.matmul %4, %5, %cst {dimension_numbers = #tpu.dot_dimension_numbers<[1], [0], [0], [1], [0, 0, 1, 1], [], []>} : vector<12x128xf32>, vector<128x256xf32>, vector<12x256xf32> -> vector<12x256xf32>
    %7 = arith.addf %3, %6 : vector<12x256xf32>
    %c0_6 = arith.constant 0 : index
    %c0_7 = arith.constant 0 : index
    %8 = vector.load %arg7[%c0_6, %c0_7] : memref<12x256xf32, #tpu.memory_space<vmem>>, vector<12x256xf32>
    tpu.vector_store %arg7[%c0_6, %c0_7], %7 {strides = array<i32>} : memref<12x256xf32, #tpu.memory_space<vmem>>, vector<12x256xf32>,
    %c0_i32_8 = arith.constant 0 : i32
    %9 = arith.cmpi eq, %arg2, %c0_i32_8 : i32
    %10 = arith.extui %9 : i1 to i32
    %c0_i32_9 = arith.constant 0 : i32
    %11 = arith.cmpi ne, %10, %c0_i32_9 : i32
    scf.if %11 {
      %c0_10 = arith.constant 0 : index
      %c0_11 = arith.constant 0 : index
      %12 = vector.load %arg7[%c0_10, %c0_11] : memref<12x256xf32, #tpu.memory_space<vmem>>, vector<12x256xf32>
      %c0_12 = arith.constant 0 : index
      %c0_13 = arith.constant 0 : index
      %13 = vector.load %arg5[%c0_12, %c0_13] : memref<1x256xf32, #tpu.memory_space<vmem>>, vector<1x256xf32>
      %14 = vector.broadcast %13 : vector<1x256xf32> to vector<12x256xf32>
      %15 = arith.addf %12, %14 : vector<12x256xf32>
      %c0_14 = arith.constant 0 : index
      %c0_15 = arith.constant 0 : index
      %16 = vector.load %arg6[%c0_14, %c0_15] : memref<12x256xf32, #tpu.memory_space<vmem>>, vector<12x256xf32>
      tpu.vector_store %arg6[%c0_14, %c0_15], %15 {strides = array<i32>} : memref<12x256xf32, #tpu.memory_space<vmem>>, vector<12x256xf32>,
    } else {
    }
    return
  }
  func.func @transform_0(%arg0: i32, %arg1: i32, %arg2: i32) -> (i32, i32) {
    %c0_i32 = arith.constant 0 : i32
    return %arg0, %arg2 : i32, i32
  }
  func.func @transform_1(%arg0: i32, %arg1: i32, %arg2: i32) -> (i32, i32) {
    %c0_i32 = arith.constant 0 : i32
    return %arg2, %arg1 : i32, i32
  }
  func.func @transform_2(%arg0: i32, %arg1: i32, %arg2: i32) -> (i32, i32) {
    %c0_i32 = arith.constant 0 : i32
    %c0_i32_0 = arith.constant 0 : i32
    return %c0_i32, %arg1 : i32, i32
  }
  func.func @transform_3(%arg0: i32, %arg1: i32, %arg2: i32) -> (i32, i32) {
    %c0_i32 = arith.constant 0 : i32
    return %arg0, %arg1 : i32, i32
  }
}

module attributes {stable_mosaic.version = 11 : i64} {
  func.func @_attn_kernel(%arg0: i32, %arg1: memref<1x1x128xf32, #tpu.memory_space<vmem>>, %arg2: memref<1x3x128xf32, #tpu.memory_space<vmem>>, %arg3: memref<1x3x128xf32, #tpu.memory_space<vmem>>, %arg4: memref<1x1x128xf32, #tpu.memory_space<vmem>>) attributes {dimension_semantics = [#tpu.dimension_semantics<parallel>], iteration_bounds = array<i64: 4>, scalar_prefetch = 0 : i64, scratch_operands = 0 : i64, tpu.core_type = #tpu.core_type<tc>, window_params = [{transform_indices = @transform_0, window_bounds = array<i64: 1, 1, 128>}, {transform_indices = @transform_1, window_bounds = array<i64: 1, 3, 128>}, {transform_indices = @transform_2, window_bounds = array<i64: 1, 3, 128>}, {transform_indices = @transform_3, window_bounds = array<i64: 1, 1, 128>}]} {
    %c0 = arith.constant 0 : index
    %c0_0 = arith.constant 0 : index
    %c0_1 = arith.constant 0 : index
    %0 = vector.load %arg1[%c0, %c0_0, %c0_1] : memref<1x1x128xf32, #tpu.memory_space<vmem>>, vector<1x1x64xf32>
    %1 = vector.shape_cast %0 : vector<1x1x64xf32> to vector<1x64xf32>
    %cst = arith.constant 1.250000e-01 : f32
    %2 = vector.broadcast %cst : f32 to vector<1x64xf32>
    %3 = arith.mulf %1, %2 : vector<1x64xf32>
    %c0_2 = arith.constant 0 : index
    %c0_3 = arith.constant 0 : index
    %c0_4 = arith.constant 0 : index
    %4 = vector.load %arg2[%c0_2, %c0_3, %c0_4] : memref<1x3x128xf32, #tpu.memory_space<vmem>>, vector<1x3x64xf32>
    %5 = vector.shape_cast %4 : vector<1x3x64xf32> to vector<3x64xf32>
    %c0_5 = arith.constant 0 : index
    %c0_6 = arith.constant 0 : index
    %c0_7 = arith.constant 0 : index
    %6 = vector.load %arg3[%c0_5, %c0_6, %c0_7] : memref<1x3x128xf32, #tpu.memory_space<vmem>>, vector<1x3x64xf32>
    %7 = vector.shape_cast %6 : vector<1x3x64xf32> to vector<3x64xf32>
    %cst_8 = arith.constant dense<0.000000e+00> : vector<1x3xf32>
    %8 = tpu.matmul %3, %5, %cst_8 {dimension_numbers = #tpu.dot_dimension_numbers<[1], [1], [0], [0], [0, 0, 1, 0], [], []>} : vector<1x64xf32>, vector<3x64xf32>, vector<1x3xf32> -> vector<1x3xf32>
    %cst_9 = arith.constant dense<0xFF800000> : vector<1xf32>
    %9 = vector.multi_reduction <maximumf>, %8, %cst_9 [1] : vector<1x3xf32> to vector<1xf32>
    %10 = vector.shape_cast %9 : vector<1xf32> to vector<1x1xf32>
    %11 = vector.broadcast %10 : vector<1x1xf32> to vector<1x3xf32>
    %12 = arith.subf %8, %11 : vector<1x3xf32>
    %13 = math.exp %12 : vector<1x3xf32>
    %cst_10 = arith.constant dense<0.000000e+00> : vector<1xf32>
    %14 = vector.multi_reduction <add>, %13, %cst_10 [1] : vector<1x3xf32> to vector<1xf32>
    %15 = vector.shape_cast %14 : vector<1xf32> to vector<1x1xf32>
    %16 = tpu.reciprocal %15 {approx = true} : vector<1x1xf32> -> vector<1x1xf32>
    %17 = vector.broadcast %16 : vector<1x1xf32> to vector<1x3xf32>
    %18 = arith.mulf %13, %17 : vector<1x3xf32>
    %cst_11 = arith.constant dense<0.000000e+00> : vector<1x64xf32>
    %19 = tpu.matmul %18, %7, %cst_11 {dimension_numbers = #tpu.dot_dimension_numbers<[1], [0], [0], [1], [0, 0, 1, 1], [], []>} : vector<1x3xf32>, vector<3x64xf32>, vector<1x64xf32> -> vector<1x64xf32>
    %c0_12 = arith.constant 0 : index
    %c0_13 = arith.constant 0 : index
    %c64 = arith.constant 64 : index
    %20 = vector.load %arg1[%c0_12, %c0_13, %c64] : memref<1x1x128xf32, #tpu.memory_space<vmem>>, vector<1x1x64xf32>
    %21 = vector.shape_cast %20 : vector<1x1x64xf32> to vector<1x64xf32>
    %cst_14 = arith.constant 1.250000e-01 : f32
    %22 = vector.broadcast %cst_14 : f32 to vector<1x64xf32>
    %23 = arith.mulf %21, %22 : vector<1x64xf32>
    %c0_15 = arith.constant 0 : index
    %c0_16 = arith.constant 0 : index
    %c64_17 = arith.constant 64 : index
    %24 = vector.load %arg2[%c0_15, %c0_16, %c64_17] : memref<1x3x128xf32, #tpu.memory_space<vmem>>, vector<1x3x64xf32>
    %25 = vector.shape_cast %24 : vector<1x3x64xf32> to vector<3x64xf32>
    %c0_18 = arith.constant 0 : index
    %c0_19 = arith.constant 0 : index
    %c64_20 = arith.constant 64 : index
    %26 = vector.load %arg3[%c0_18, %c0_19, %c64_20] : memref<1x3x128xf32, #tpu.memory_space<vmem>>, vector<1x3x64xf32>
    %27 = vector.shape_cast %26 : vector<1x3x64xf32> to vector<3x64xf32>
    %cst_21 = arith.constant dense<0.000000e+00> : vector<1x3xf32>
    %28 = tpu.matmul %23, %25, %cst_21 {dimension_numbers = #tpu.dot_dimension_numbers<[1], [1], [0], [0], [0, 0, 1, 0], [], []>} : vector<1x64xf32>, vector<3x64xf32>, vector<1x3xf32> -> vector<1x3xf32>
    %cst_22 = arith.constant dense<0xFF800000> : vector<1xf32>
    %29 = vector.multi_reduction <maximumf>, %28, %cst_22 [1] : vector<1x3xf32> to vector<1xf32>
    %30 = vector.shape_cast %29 : vector<1xf32> to vector<1x1xf32>
    %31 = vector.broadcast %30 : vector<1x1xf32> to vector<1x3xf32>
    %32 = arith.subf %28, %31 : vector<1x3xf32>
    %33 = math.exp %32 : vector<1x3xf32>
    %cst_23 = arith.constant dense<0.000000e+00> : vector<1xf32>
    %34 = vector.multi_reduction <add>, %33, %cst_23 [1] : vector<1x3xf32> to vector<1xf32>
    %35 = vector.shape_cast %34 : vector<1xf32> to vector<1x1xf32>
    %36 = tpu.reciprocal %35 {approx = true} : vector<1x1xf32> -> vector<1x1xf32>
    %37 = vector.broadcast %36 : vector<1x1xf32> to vector<1x3xf32>
    %38 = arith.mulf %33, %37 : vector<1x3xf32>
    %cst_24 = arith.constant dense<0.000000e+00> : vector<1x64xf32>
    %39 = tpu.matmul %38, %27, %cst_24 {dimension_numbers = #tpu.dot_dimension_numbers<[1], [0], [0], [1], [0, 0, 1, 1], [], []>} : vector<1x3xf32>, vector<3x64xf32>, vector<1x64xf32> -> vector<1x64xf32>
    %40 = tpu.concatenate %19, %39 in 1 : vector<1x64xf32>, vector<1x64xf32> -> vector<1x128xf32>
    %c0_25 = arith.constant 0 : index
    %c0_26 = arith.constant 0 : index
    %c0_27 = arith.constant 0 : index
    %41 = vector.load %arg4[%c0_25, %c0_26, %c0_27] : memref<1x1x128xf32, #tpu.memory_space<vmem>>, vector<1x1x128xf32>
    %42 = vector.shape_cast %41 : vector<1x1x128xf32> to vector<1x128xf32>
    %43 = vector.shape_cast %40 : vector<1x128xf32> to vector<1x1x128xf32>
    tpu.vector_store %arg4[%c0_25, %c0_26, %c0_27], %43 {strides = array<i32>} : memref<1x1x128xf32, #tpu.memory_space<vmem>>, vector<1x1x128xf32>,
    return
  }
  func.func @transform_0(%arg0: i32) -> (i32, i32, i32) {
    %c0_i32 = arith.constant 0 : i32
    %c0_i32_0 = arith.constant 0 : i32
    %c0_i32_1 = arith.constant 0 : i32
    return %arg0, %c0_i32, %c0_i32_0 : i32, i32, i32
  }
  func.func @transform_1(%arg0: i32) -> (i32, i32, i32) {
    %c0_i32 = arith.constant 0 : i32
    %c0_i32_0 = arith.constant 0 : i32
    %c0_i32_1 = arith.constant 0 : i32
    return %arg0, %c0_i32, %c0_i32_0 : i32, i32, i32
  }
  func.func @transform_2(%arg0: i32) -> (i32, i32, i32) {
    %c0_i32 = arith.constant 0 : i32
    %c0_i32_0 = arith.constant 0 : i32
    %c0_i32_1 = arith.constant 0 : i32
    return %arg0, %c0_i32, %c0_i32_0 : i32, i32, i32
  }
  func.func @transform_3(%arg0: i32) -> (i32, i32, i32) {
    %c0_i32 = arith.constant 0 : i32
    %c0_i32_0 = arith.constant 0 : i32
    %c0_i32_1 = arith.constant 0 : i32
    return %arg0, %c0_i32, %c0_i32_0 : i32, i32, i32
  }
}

module attributes {stable_mosaic.version = 11 : i64} {
  func.func @_matmul_kernel(%arg0: i32, %arg1: i32, %arg2: i32, %arg3: memref<4x128xf32, #tpu.memory_space<vmem>>, %arg4: memref<128x128xf32, #tpu.memory_space<vmem>>, %arg5: memref<1x128xf32, #tpu.memory_space<vmem>>, %arg6: memref<4x128xf32, #tpu.memory_space<vmem>>, %arg7: memref<4x128xf32, #tpu.memory_space<vmem>>) attributes {dimension_semantics = [#tpu.dimension_semantics<parallel>, #tpu.dimension_semantics<parallel>, #tpu.dimension_semantics<arbitrary>], iteration_bounds = array<i64: 1, 1, 1>, scalar_prefetch = 0 : i64, scratch_operands = 1 : i64, tpu.core_type = #tpu.core_type<tc>, window_params = [{transform_indices = @transform_0, window_bounds = array<i64: 4, 128>}, {transform_indices = @transform_1, window_bounds = array<i64: 128, 128>}, {transform_indices = @transform_2, window_bounds = array<i64: 1, 128>}, {transform_indices = @transform_3, window_bounds = array<i64: 4, 128>}]} {
    %c0_i32 = arith.constant 0 : i32
    %0 = arith.cmpi eq, %arg2, %c0_i32 : i32
    %1 = arith.extui %0 : i1 to i32
    %c0_i32_0 = arith.constant 0 : i32
    %2 = arith.cmpi ne, %1, %c0_i32_0 : i32
    scf.if %2 {
      %cst_10 = arith.constant 0.000000e+00 : f32
      %12 = vector.broadcast %cst_10 : f32 to vector<4x128xf32>
      %c0_11 = arith.constant 0 : index
      %c0_12 = arith.constant 0 : index
      %13 = vector.load %arg7[%c0_11, %c0_12] : memref<4x128xf32, #tpu.memory_space<vmem>>, vector<4x128xf32>
      tpu.vector_store %arg7[%c0_11, %c0_12], %12 {strides = array<i32>} : memref<4x128xf32, #tpu.memory_space<vmem>>, vector<4x128xf32>,
    } else {
    }
    %c0 = arith.constant 0 : index
    %c0_1 = arith.constant 0 : index
    %3 = vector.load %arg7[%c0, %c0_1] : memref<4x128xf32, #tpu.memory_space<vmem>>, vector<4x128xf32>
    %c0_2 = arith.constant 0 : index
    %c0_3 = arith.constant 0 : index
    %4 = vector.load %arg3[%c0_2, %c0_3] : memref<4x128xf32, #tpu.memory_space<vmem>>, vector<4x128xf32>
    %c0_4 = arith.constant 0 : index
    %c0_5 = arith.constant 0 : index
    %5 = vector.load %arg4[%c0_4, %c0_5] : memref<128x128xf32, #tpu.memory_space<vmem>>, vector<128x128xf32>
    %cst = arith.constant dense<0.000000e+00> : vector<4x128xf32>
    %6 = tpu.matmul %4, %5, %cst {dimension_numbers = #tpu.dot_dimension_numbers<[1], [0], [0], [1], [0, 0, 1, 1], [], []>} : vector<4x128xf32>, vector<128x128xf32>, vector<4x128xf32> -> vector<4x128xf32>
    %7 = arith.addf %3, %6 : vector<4x128xf32>
    %c0_6 = arith.constant 0 : index
    %c0_7 = arith.constant 0 : index
    %8 = vector.load %arg7[%c0_6, %c0_7] : memref<4x128xf32, #tpu.memory_space<vmem>>, vector<4x128xf32>
    tpu.vector_store %arg7[%c0_6, %c0_7], %7 {strides = array<i32>} : memref<4x128xf32, #tpu.memory_space<vmem>>, vector<4x128xf32>,
    %c0_i32_8 = arith.constant 0 : i32
    %9 = arith.cmpi eq, %arg2, %c0_i32_8 : i32
    %10 = arith.extui %9 : i1 to i32
    %c0_i32_9 = arith.constant 0 : i32
    %11 = arith.cmpi ne, %10, %c0_i32_9 : i32
    scf.if %11 {
      %c0_10 = arith.constant 0 : index
      %c0_11 = arith.constant 0 : index
      %12 = vector.load %arg7[%c0_10, %c0_11] : memref<4x128xf32, #tpu.memory_space<vmem>>, vector<4x128xf32>
      %c0_12 = arith.constant 0 : index
      %c0_13 = arith.constant 0 : index
      %13 = vector.load %arg5[%c0_12, %c0_13] : memref<1x128xf32, #tpu.memory_space<vmem>>, vector<1x128xf32>
      %14 = vector.broadcast %13 : vector<1x128xf32> to vector<4x128xf32>
      %15 = arith.addf %12, %14 : vector<4x128xf32>
      %c0_14 = arith.constant 0 : index
      %c0_15 = arith.constant 0 : index
      %16 = vector.load %arg6[%c0_14, %c0_15] : memref<4x128xf32, #tpu.memory_space<vmem>>, vector<4x128xf32>
      tpu.vector_store %arg6[%c0_14, %c0_15], %15 {strides = array<i32>} : memref<4x128xf32, #tpu.memory_space<vmem>>, vector<4x128xf32>,
    } else {
    }
    return
  }
  func.func @transform_0(%arg0: i32, %arg1: i32, %arg2: i32) -> (i32, i32) {
    %c0_i32 = arith.constant 0 : i32
    return %arg0, %arg2 : i32, i32
  }
  func.func @transform_1(%arg0: i32, %arg1: i32, %arg2: i32) -> (i32, i32) {
    %c0_i32 = arith.constant 0 : i32
    return %arg2, %arg1 : i32, i32
  }
  func.func @transform_2(%arg0: i32, %arg1: i32, %arg2: i32) -> (i32, i32) {
    %c0_i32 = arith.constant 0 : i32
    %c0_i32_0 = arith.constant 0 : i32
    return %c0_i32, %arg1 : i32, i32
  }
  func.func @transform_3(%arg0: i32, %arg1: i32, %arg2: i32) -> (i32, i32) {
    %c0_i32 = arith.constant 0 : i32
    return %arg0, %arg1 : i32, i32
  }
}

module attributes {stable_mosaic.version = 11 : i64} {
  func.func @_matmul_kernel(%arg0: i32, %arg1: i32, %arg2: i32, %arg3: memref<4x128xf32, #tpu.memory_space<vmem>>, %arg4: memref<128x128xf32, #tpu.memory_space<vmem>>, %arg5: memref<1x128xf32, #tpu.memory_space<vmem>>, %arg6: memref<4x128xf32, #tpu.memory_space<vmem>>, %arg7: memref<4x128xf32, #tpu.memory_space<vmem>>) attributes {dimension_semantics = [#tpu.dimension_semantics<parallel>, #tpu.dimension_semantics<parallel>, #tpu.dimension_semantics<arbitrary>], iteration_bounds = array<i64: 1, 1, 1>, scalar_prefetch = 0 : i64, scratch_operands = 1 : i64, tpu.core_type = #tpu.core_type<tc>, window_params = [{transform_indices = @transform_0, window_bounds = array<i64: 4, 128>}, {transform_indices = @transform_1, window_bounds = array<i64: 128, 128>}, {transform_indices = @transform_2, window_bounds = array<i64: 1, 128>}, {transform_indices = @transform_3, window_bounds = array<i64: 4, 128>}]} {
    %c0_i32 = arith.constant 0 : i32
    %0 = arith.cmpi eq, %arg2, %c0_i32 : i32
    %1 = arith.extui %0 : i1 to i32
    %c0_i32_0 = arith.constant 0 : i32
    %2 = arith.cmpi ne, %1, %c0_i32_0 : i32
    scf.if %2 {
      %cst_10 = arith.constant 0.000000e+00 : f32
      %12 = vector.broadcast %cst_10 : f32 to vector<4x128xf32>
      %c0_11 = arith.constant 0 : index
      %c0_12 = arith.constant 0 : index
      %13 = vector.load %arg7[%c0_11, %c0_12] : memref<4x128xf32, #tpu.memory_space<vmem>>, vector<4x128xf32>
      tpu.vector_store %arg7[%c0_11, %c0_12], %12 {strides = array<i32>} : memref<4x128xf32, #tpu.memory_space<vmem>>, vector<4x128xf32>,
    } else {
    }
    %c0 = arith.constant 0 : index
    %c0_1 = arith.constant 0 : index
    %3 = vector.load %arg7[%c0, %c0_1] : memref<4x128xf32, #tpu.memory_space<vmem>>, vector<4x128xf32>
    %c0_2 = arith.constant 0 : index
    %c0_3 = arith.constant 0 : index
    %4 = vector.load %arg3[%c0_2, %c0_3] : memref<4x128xf32, #tpu.memory_space<vmem>>, vector<4x128xf32>
    %c0_4 = arith.constant 0 : index
    %c0_5 = arith.constant 0 : index
    %5 = vector.load %arg4[%c0_4, %c0_5] : memref<128x128xf32, #tpu.memory_space<vmem>>, vector<128x128xf32>
    %cst = arith.constant dense<0.000000e+00> : vector<4x128xf32>
    %6 = tpu.matmul %4, %5, %cst {dimension_numbers = #tpu.dot_dimension_numbers<[1], [0], [0], [1], [0, 0, 1, 1], [], []>} : vector<4x128xf32>, vector<128x128xf32>, vector<4x128xf32> -> vector<4x128xf32>
    %7 = arith.addf %3, %6 : vector<4x128xf32>
    %c0_6 = arith.constant 0 : index
    %c0_7 = arith.constant 0 : index
    %8 = vector.load %arg7[%c0_6, %c0_7] : memref<4x128xf32, #tpu.memory_space<vmem>>, vector<4x128xf32>
    tpu.vector_store %arg7[%c0_6, %c0_7], %7 {strides = array<i32>} : memref<4x128xf32, #tpu.memory_space<vmem>>, vector<4x128xf32>,
    %c0_i32_8 = arith.constant 0 : i32
    %9 = arith.cmpi eq, %arg2, %c0_i32_8 : i32
    %10 = arith.extui %9 : i1 to i32
    %c0_i32_9 = arith.constant 0 : i32
    %11 = arith.cmpi ne, %10, %c0_i32_9 : i32
    scf.if %11 {
      %c0_10 = arith.constant 0 : index
      %c0_11 = arith.constant 0 : index
      %12 = vector.load %arg7[%c0_10, %c0_11] : memref<4x128xf32, #tpu.memory_space<vmem>>, vector<4x128xf32>
      %c0_12 = arith.constant 0 : index
      %c0_13 = arith.constant 0 : index
      %13 = vector.load %arg5[%c0_12, %c0_13] : memref<1x128xf32, #tpu.memory_space<vmem>>, vector<1x128xf32>
      %14 = vector.broadcast %13 : vector<1x128xf32> to vector<4x128xf32>
      %15 = arith.addf %12, %14 : vector<4x128xf32>
      %c0_14 = arith.constant 0 : index
      %c0_15 = arith.constant 0 : index
      %16 = vector.load %arg6[%c0_14, %c0_15] : memref<4x128xf32, #tpu.memory_space<vmem>>, vector<4x128xf32>
      tpu.vector_store %arg6[%c0_14, %c0_15], %15 {strides = array<i32>} : memref<4x128xf32, #tpu.memory_space<vmem>>, vector<4x128xf32>,
    } else {
    }
    return
  }
  func.func @transform_0(%arg0: i32, %arg1: i32, %arg2: i32) -> (i32, i32) {
    %c0_i32 = arith.constant 0 : i32
    return %arg0, %arg2 : i32, i32
  }
  func.func @transform_1(%arg0: i32, %arg1: i32, %arg2: i32) -> (i32, i32) {
    %c0_i32 = arith.constant 0 : i32
    return %arg2, %arg1 : i32, i32
  }
  func.func @transform_2(%arg0: i32, %arg1: i32, %arg2: i32) -> (i32, i32) {
    %c0_i32 = arith.constant 0 : i32
    %c0_i32_0 = arith.constant 0 : i32
    return %c0_i32, %arg1 : i32, i32
  }
  func.func @transform_3(%arg0: i32, %arg1: i32, %arg2: i32) -> (i32, i32) {
    %c0_i32 = arith.constant 0 : i32
    return %arg0, %arg1 : i32, i32
  }
}

module attributes {stable_mosaic.version = 11 : i64} {
  func.func @_matmul_kernel(%arg0: i32, %arg1: i32, %arg2: i32, %arg3: memref<2x128xf32, #tpu.memory_space<vmem>>, %arg4: memref<128x128xf32, #tpu.memory_space<vmem>>, %arg5: memref<1x128xf32, #tpu.memory_space<vmem>>, %arg6: memref<2x128xf32, #tpu.memory_space<vmem>>, %arg7: memref<2x128xf32, #tpu.memory_space<vmem>>) attributes {dimension_semantics = [#tpu.dimension_semantics<parallel>, #tpu.dimension_semantics<parallel>, #tpu.dimension_semantics<arbitrary>], iteration_bounds = array<i64: 1, 1, 1>, scalar_prefetch = 0 : i64, scratch_operands = 1 : i64, tpu.core_type = #tpu.core_type<tc>, window_params = [{transform_indices = @transform_0, window_bounds = array<i64: 2, 128>}, {transform_indices = @transform_1, window_bounds = array<i64: 128, 128>}, {transform_indices = @transform_2, window_bounds = array<i64: 1, 128>}, {transform_indices = @transform_3, window_bounds = array<i64: 2, 128>}]} {
    %c0_i32 = arith.constant 0 : i32
    %0 = arith.cmpi eq, %arg2, %c0_i32 : i32
    %1 = arith.extui %0 : i1 to i32
    %c0_i32_0 = arith.constant 0 : i32
    %2 = arith.cmpi ne, %1, %c0_i32_0 : i32
    scf.if %2 {
      %cst_10 = arith.constant 0.000000e+00 : f32
      %12 = vector.broadcast %cst_10 : f32 to vector<2x128xf32>
      %c0_11 = arith.constant 0 : index
      %c0_12 = arith.constant 0 : index
      %13 = vector.load %arg7[%c0_11, %c0_12] : memref<2x128xf32, #tpu.memory_space<vmem>>, vector<2x128xf32>
      tpu.vector_store %arg7[%c0_11, %c0_12], %12 {strides = array<i32>} : memref<2x128xf32, #tpu.memory_space<vmem>>, vector<2x128xf32>,
    } else {
    }
    %c0 = arith.constant 0 : index
    %c0_1 = arith.constant 0 : index
    %3 = vector.load %arg7[%c0, %c0_1] : memref<2x128xf32, #tpu.memory_space<vmem>>, vector<2x128xf32>
    %c0_2 = arith.constant 0 : index
    %c0_3 = arith.constant 0 : index
    %4 = vector.load %arg3[%c0_2, %c0_3] : memref<2x128xf32, #tpu.memory_space<vmem>>, vector<2x128xf32>
    %c0_4 = arith.constant 0 : index
    %c0_5 = arith.constant 0 : index
    %5 = vector.load %arg4[%c0_4, %c0_5] : memref<128x128xf32, #tpu.memory_space<vmem>>, vector<128x128xf32>
    %cst = arith.constant dense<0.000000e+00> : vector<2x128xf32>
    %6 = tpu.matmul %4, %5, %cst {dimension_numbers = #tpu.dot_dimension_numbers<[1], [0], [0], [1], [0, 0, 1, 1], [], []>} : vector<2x128xf32>, vector<128x128xf32>, vector<2x128xf32> -> vector<2x128xf32>
    %7 = arith.addf %3, %6 : vector<2x128xf32>
    %c0_6 = arith.constant 0 : index
    %c0_7 = arith.constant 0 : index
    %8 = vector.load %arg7[%c0_6, %c0_7] : memref<2x128xf32, #tpu.memory_space<vmem>>, vector<2x128xf32>
    tpu.vector_store %arg7[%c0_6, %c0_7], %7 {strides = array<i32>} : memref<2x128xf32, #tpu.memory_space<vmem>>, vector<2x128xf32>,
    %c0_i32_8 = arith.constant 0 : i32
    %9 = arith.cmpi eq, %arg2, %c0_i32_8 : i32
    %10 = arith.extui %9 : i1 to i32
    %c0_i32_9 = arith.constant 0 : i32
    %11 = arith.cmpi ne, %10, %c0_i32_9 : i32
    scf.if %11 {
      %c0_10 = arith.constant 0 : index
      %c0_11 = arith.constant 0 : index
      %12 = vector.load %arg7[%c0_10, %c0_11] : memref<2x128xf32, #tpu.memory_space<vmem>>, vector<2x128xf32>
      %c0_12 = arith.constant 0 : index
      %c0_13 = arith.constant 0 : index
      %13 = vector.load %arg5[%c0_12, %c0_13] : memref<1x128xf32, #tpu.memory_space<vmem>>, vector<1x128xf32>
      %14 = vector.broadcast %13 : vector<1x128xf32> to vector<2x128xf32>
      %15 = arith.addf %12, %14 : vector<2x128xf32>
      %c0_14 = arith.constant 0 : index
      %c0_15 = arith.constant 0 : index
      %16 = vector.load %arg6[%c0_14, %c0_15] : memref<2x128xf32, #tpu.memory_space<vmem>>, vector<2x128xf32>
      tpu.vector_store %arg6[%c0_14, %c0_15], %15 {strides = array<i32>} : memref<2x128xf32, #tpu.memory_space<vmem>>, vector<2x128xf32>,
    } else {
    }
    return
  }
  func.func @transform_0(%arg0: i32, %arg1: i32, %arg2: i32) -> (i32, i32) {
    %c0_i32 = arith.constant 0 : i32
    return %arg0, %arg2 : i32, i32
  }
  func.func @transform_1(%arg0: i32, %arg1: i32, %arg2: i32) -> (i32, i32) {
    %c0_i32 = arith.constant 0 : i32
    return %arg2, %arg1 : i32, i32
  }
  func.func @transform_2(%arg0: i32, %arg1: i32, %arg2: i32) -> (i32, i32) {
    %c0_i32 = arith.constant 0 : i32
    %c0_i32_0 = arith.constant 0 : i32
    return %c0_i32, %arg1 : i32, i32
  }
  func.func @transform_3(%arg0: i32, %arg1: i32, %arg2: i32) -> (i32, i32) {
    %c0_i32 = arith.constant 0 : i32
    return %arg0, %arg1 : i32, i32
  }
}

</mosaic_0001>

<llo_original>
// kernel: audio_transformer_fwd.16
$region0: #{audio_transformer_fwd.16}
  #allocation0 [shape = 'u32[]', space=smem, size = 0x4, offset = 0x4, fixed_abs, tag = 'smem constant byte address 0x4 - core index']
  #allocation1 [shape = 'u32[72,128]{1,0:T(1,128)}', space=vmem, size = 0x9000, scoped, tag = 'internal scratch']
  #allocation2 [shape = 'f32[12,128]{1,0:T(8,128)}', space=vmem, size = 0x2000, scoped, tag = 'scratch operand']
  %s0 = inlined_call_operand.vmem [shape: f32[12,256], index: 0, kind: input, shape index: {}]
  %s1 = inlined_call_operand.vmem [shape: f32[256,128], index: 1, kind: input, shape index: {}]
  %s2 = inlined_call_operand.vmem [shape: f32[1,128], index: 2, kind: input, shape index: {}]
  %s3 = inlined_call_operand.vmem [shape: f32[12,128], index: 3, kind: output, shape index: {}]
  %s4 = sld [smem:[#allocation0]]
  $region30: #{audio_transformer_fwd.16} parent=0
    _
  %s6 = ssub.s32 1, %s4
  %s7 = scalar_select 0, %s6, %s4
  // Predicated region
  $region2: #{audio_transformer_fwd.16} parent=0 // pred_check
    _
  $region3: #{audio_transformer_fwd.16} parent=0 // pred_check_branch
    %9 = sbr.rel (0) target = $region5
  $region4: #{audio_transformer_fwd.16} parent=0 // pred_region
    _
  $region5: #{audio_transformer_fwd.16} parent=0 // pred_fallthru
    _
  // Predicated region
  $region6: #{audio_transformer_fwd.16} parent=0 // pred_check
    _
  $region7: #{audio_transformer_fwd.16} parent=0 // pred_check_branch
    %11 = sbr.rel (0) target = $region9
  $region8: #{audio_transformer_fwd.16} parent=0 // pred_region
    _
  $region9: #{audio_transformer_fwd.16} parent=0 // pred_fallthru
    _
  // Predicated region
  $region10: #{audio_transformer_fwd.16} parent=0 // pred_check
    _
  $region11: #{audio_transformer_fwd.16} parent=0 // pred_check_branch
    %13 = sbr.rel (0) target = $region13
  $region12: #{audio_transformer_fwd.16} parent=0 // pred_region
    _
  $region13: #{audio_transformer_fwd.16} parent=0 // pred_fallthru
    _
  %p14 = scmp.eq.s32.totalorder 0, 0
  // Predicated region
  $region14: #{audio_transformer_fwd.16} parent=0 // pred_check
    %p15 = pneg %p14
  $region15: #{audio_transformer_fwd.16} parent=0 // pred_check_branch
    %17 = sbr.rel (%p15) target = $region17
  $region16: #{audio_transformer_fwd.16} parent=0 // pred_region
    %18 = vst [vmem:[#allocation2] sm:$0xff] 0.0
    %19 = vst [vmem:[#allocation2 + $0x8] sm:$0xf] 0.0
  $region17: #{audio_transformer_fwd.16} parent=0 // pred_fallthru
    _
  %v20 = vld [vmem:[#allocation2] sm:$0xff]
  %v21 = vld [vmem:[#allocation2 + $0x8] sm:$0xf]
  %v22 = vld [vmem:[%s0] sm:$0xff]
  %v23 = vld [vmem:[%s0 + $0x8] sm:$0xff]
  %v24 = vld [vmem:[%s0 + $0x10] sm:$0xf]
  %v25 = vld [vmem:[%s0 + $0x18] sm:$0xf]
  %v26 = vld [vmem:[%s1] sm:$0xff]
  %v27 = vld [vmem:[%s1 + $0x8] sm:$0xff]
  %v28 = vld [vmem:[%s1 + $0x10] sm:$0xff]
  %v29 = vld [vmem:[%s1 + $0x18] sm:$0xff]
  %v30 = vld [vmem:[%s1 + $0x20] sm:$0xff]
  %v31 = vld [vmem:[%s1 + $0x28] sm:$0xff]
  %v32 = vld [vmem:[%s1 + $0x30] sm:$0xff]
  %v33 = vld [vmem:[%s1 + $0x38] sm:$0xff]
  %v34 = vld [vmem:[%s1 + $0x40] sm:$0xff]
  %v35 = vld [vmem:[%s1 + $0x48] sm:$0xff]
  %v36 = vld [vmem:[%s1 + $0x50] sm:$0xff]
  %v37 = vld [vmem:[%s1 + $0x58] sm:$0xff]
  %v38 = vld [vmem:[%s1 + $0x60] sm:$0xff]
  %v39 = vld [vmem:[%s1 + $0x68] sm:$0xff]
  %v40 = vld [vmem:[%s1 + $0x70] sm:$0xff]
  %v41 = vld [vmem:[%s1 + $0x78] sm:$0xff]
  %v42 = vld [vmem:[%s1 + $0x80] sm:$0xff]
  %v43 = vld [vmem:[%s1 + $0x88] sm:$0xff]
  %v44 = vld [vmem:[%s1 + $0x90] sm:$0xff]
  %v45 = vld [vmem:[%s1 + $0x98] sm:$0xff]
  %v46 = vld [vmem:[%s1 + $0xa0] sm:$0xff]
  %v47 = vld [vmem:[%s1 + $0xa8] sm:$0xff]
  %v48 = vld [vmem:[%s1 + $0xb0] sm:$0xff]
  %v49 = vld [vmem:[%s1 + $0xb8] sm:$0xff]
  %v50 = vld [vmem:[%s1 + $0xc0] sm:$0xff]
  %v51 = vld [vmem:[%s1 + $0xc8] sm:$0xff]
  %v52 = vld [vmem:[%s1 + $0xd0] sm:$0xff]
  %v53 = vld [vmem:[%s1 + $0xd8] sm:$0xff]
  %v54 = vld [vmem:[%s1 + $0xe0] sm:$0xff]
  %v55 = vld [vmem:[%s1 + $0xe8] sm:$0xff]
  %v56 = vld [vmem:[%s1 + $0xf0] sm:$0xff]
  %v57 = vld [vmem:[%s1 + $0xf8] sm:$0xff]
  %58 = vmatpush.msra.mxu0 %v41
  %59 = vmatpush.msra.mxu0 %v40
  %60 = vmatpush.msra.mxu0 %v39
  %61 = vmatpush.msra.mxu0 %v38
  %62 = vmatpush.msra.mxu0 %v37
  %63 = vmatpush.msra.mxu0 %v36
  %64 = vmatpush.msra.mxu0 %v35
  %65 = vmatpush.msra.mxu0 %v34
  %66 = vmatpush.msra.mxu0 %v33
  %67 = vmatpush.msra.mxu0 %v32
  %68 = vmatpush.msra.mxu0 %v31
  %69 = vmatpush.msra.mxu0 %v30
  %70 = vmatpush.msra.mxu0 %v29
  %71 = vmatpush.msra.mxu0 %v28
  %72 = vmatpush.msra.mxu0 %v27
  %73 = vmatpush.msra.mxu0 %v26
  %74 = vmatmul.f32.gmra.mxu0 %v22
  %v75 = vpop.f32.mrf.mxu0
  %v76 = vadd.f32 0.0, %v75
  %77 = vmatmul.f32.gmra.mxu0 %v24
  %v78 = vpop.f32.mrf.mxu0
  %v79 = vadd.f32 0.0, %v78
  %80 = vdwg.mxu0
  %81 = vmatpush.msra.mxu0 %v57
  %82 = vmatpush.msra.mxu0 %v56
  %83 = vmatpush.msra.mxu0 %v55
  %84 = vmatpush.msra.mxu0 %v54
  %85 = vmatpush.msra.mxu0 %v53
  %86 = vmatpush.msra.mxu0 %v52
  %87 = vmatpush.msra.mxu0 %v51
  %88 = vmatpush.msra.mxu0 %v50
  %89 = vmatpush.msra.mxu0 %v49
  %90 = vmatpush.msra.mxu0 %v48
  %91 = vmatpush.msra.mxu0 %v47
  %92 = vmatpush.msra.mxu0 %v46
  %93 = vmatpush.msra.mxu0 %v45
  %94 = vmatpush.msra.mxu0 %v44
  %95 = vmatpush.msra.mxu0 %v43
  %96 = vmatpush.msra.mxu0 %v42
  %97 = vmatmul.f32.gmra.mxu0 %v23
  %v98 = vpop.f32.mrf.mxu0
  %v99 = vadd.f32 %v76, %v98
  %100 = vmatmul.f32.gmra.mxu0 %v25
  %v101 = vpop.f32.mrf.mxu0
  %v102 = vadd.f32 %v79, %v101
  %103 = vdwg.mxu0
  %v104 = vadd.f32 %v20, %v99
  %v105 = vadd.f32 %v21, %v102
  %106 = vst [vmem:[#allocation2] sm:$0xff] %v104
  %107 = vst [vmem:[#allocation2 + $0x8] sm:$0xf] %v105
  // Predicated region
  $region18: #{audio_transformer_fwd.16} parent=0 // pred_check
    %p108 = pneg %p14
  $region19: #{audio_transformer_fwd.16} parent=0 // pred_check_branch
    %110 = sbr.rel (%p108) target = $region21
  $region20: #{audio_transformer_fwd.16} parent=0 // pred_region
    %v111 = vld [vmem:[#allocation2] sm:$0xff]
    %v112 = vld [vmem:[#allocation2 + $0x8] sm:$0xf]
    %v113 = vld [vmem:[%s2] sm:$0x1]
    %v115 = vperm.slane %v113, 0
    %v117 = vadd.f32 %v111, %v115
    %v118 = vadd.f32 %v112, %v115
    %119 = vst [vmem:[%s3] sm:$0xff] %v117
    %120 = vst [vmem:[%s3 + $0x8] sm:$0xf] %v118
  $region21: #{audio_transformer_fwd.16} parent=0 // pred_fallthru
    _
  // Predicated region
  $region22: #{audio_transformer_fwd.16} parent=0 // pred_check
    _
  $region23: #{audio_transformer_fwd.16} parent=0 // pred_check_branch
    %122 = sbr.rel (0) target = $region25
  $region24: #{audio_transformer_fwd.16} parent=0 // pred_region
    _
  $region25: #{audio_transformer_fwd.16} parent=0 // pred_fallthru
    _
  // Predicated region
  $region26: #{audio_transformer_fwd.16} parent=0 // pred_check
    _
  $region27: #{audio_transformer_fwd.16} parent=0 // pred_check_branch
    %124 = sbr.rel (0) target = $region29
  $region28: #{audio_transformer_fwd.16} parent=0 // pred_region
    _
  $region29: #{audio_transformer_fwd.16} parent=0 // pred_fallthru
    _

// kernel: audio_transformer_fwd.17
$region0: #{audio_transformer_fwd.17}
  #allocation0 [shape = 'u32[]', space=smem, size = 0x4, offset = 0x4, fixed_abs, tag = 'smem constant byte address 0x4 - core index']
  #allocation1 [shape = 'u32[72,128]{1,0:T(1,128)}', space=vmem, size = 0x9000, scoped, tag = 'internal scratch']
  %s0 = inlined_call_operand.vmem [shape: f32[14,128], index: 0, kind: input, shape index: {}]
  %s1 = inlined_call_operand.vmem [shape: f32[1,128], index: 1, kind: input, shape index: {}]
  %s2 = inlined_call_operand.vmem [shape: f32[1,128], index: 2, kind: input, shape index: {}]
  %s3 = inlined_call_operand.vmem [shape: f32[14,128], index: 3, kind: output, shape index: {}]
  %s4 = sld [smem:[#allocation0]]
  $region22: #{audio_transformer_fwd.17} parent=0
    _
  %s6 = ssub.s32 1, %s4
  %s7 = scalar_select 0, %s6, %s4
  // Predicated region
  $region2: #{audio_transformer_fwd.17} parent=0 // pred_check
    _
  $region3: #{audio_transformer_fwd.17} parent=0 // pred_check_branch
    %9 = sbr.rel (0) target = $region5
  $region4: #{audio_transformer_fwd.17} parent=0 // pred_region
    _
  $region5: #{audio_transformer_fwd.17} parent=0 // pred_fallthru
    _
  // Predicated region
  $region6: #{audio_transformer_fwd.17} parent=0 // pred_check
    _
  $region7: #{audio_transformer_fwd.17} parent=0 // pred_check_branch
    %11 = sbr.rel (0) target = $region9
  $region8: #{audio_transformer_fwd.17} parent=0 // pred_region
    _
  $region9: #{audio_transformer_fwd.17} parent=0 // pred_fallthru
    _
  // Predicated region
  $region10: #{audio_transformer_fwd.17} parent=0 // pred_check
    _
  $region11: #{audio_transformer_fwd.17} parent=0 // pred_check_branch
    %13 = sbr.rel (0) target = $region13
  $region12: #{audio_transformer_fwd.17} parent=0 // pred_region
    _
  $region13: #{audio_transformer_fwd.17} parent=0 // pred_fallthru
    _
  %v14 = vld [vmem:[%s0] sm:$0xff]
  %v15 = vld [vmem:[%s0 + $0x8] sm:$0x3f]
  %16 = vadd.xlane.f32.xlu0 %v14
  %v17 = vpop.xlane.xlu0 %16
  %vm18 = vcmask 1045504
  %v19 = vsel %vm18, %v15, 0.0
  %20 = vadd.xlane.f32.xlu0 %v19
  %v21 = vpop.xlane.xlu0 %20
  %v22 = vrcp.pop 128.0
  %v23 = vmul.f32 128.0, %v22
  %v24 = vsub.f32 1.0, %v23
  %v25 = vmul.f32 %v22, %v24
  %v26 = vadd.f32 %v22, %v25
  %vm27 = vweird.f32 %v22
  %v28 = vsel %vm27, %v22, %v26
  %v29 = vmul.f32 %v17, %v28
  %v30 = vmul.f32 %v21, %v28
  %v31 = vsub.f32 %v14, %v29
  %v32 = vsub.f32 %v15, %v30
  %v33 = vmul.f32 %v31, %v31
  %v34 = vmul.f32 %v32, %v32
  %35 = vadd.xlane.f32.xlu0 %v33
  %v36 = vpop.xlane.xlu0 %35
  %v37 = vsel %vm18, %v34, 0.0
  %38 = vadd.xlane.f32.xlu0 %v37
  %v39 = vpop.xlane.xlu0 %38
  %v40 = vmul.f32 %v36, %v28
  %v41 = vmul.f32 %v39, %v28
  %v42 = vadd.f32 %v40, 1e-05
  %v43 = vadd.f32 %v41, 1e-05
  %v44 = vrsqrt.pop %v42
  %v45 = vmul.f32 %v44, %v42
  %v46 = vmul.f32 %v45, %v44
  %v47 = vmul.f32 0.5, %v46
  %v48 = vsub.f32 1.5, %v47
  %v49 = vmul.f32 %v44, %v48
  %vm50 = vweird.f32 %v42
  %vm51 = vweird.f32 %v44
  %vm52 = vmor %vm50, %vm51
  %v53 = vsel %vm52, %v44, %v49
  %v54 = vrsqrt.pop %v43
  %v55 = vmul.f32 %v54, %v43
  %v56 = vmul.f32 %v55, %v54
  %v57 = vmul.f32 0.5, %v56
  %v58 = vsub.f32 1.5, %v57
  %v59 = vmul.f32 %v54, %v58
  %vm60 = vweird.f32 %v43
  %vm61 = vweird.f32 %v54
  %vm62 = vmor %vm60, %vm61
  %v63 = vsel %vm62, %v54, %v59
  %v64 = vmul.f32 %v31, %v53
  %v65 = vmul.f32 %v32, %v63
  %v66 = vld [vmem:[%s1] sm:$0x1]
  %v68 = vperm.slane %v66, 0
  %v70 = vmul.f32 %v64, %v68
  %v71 = vmul.f32 %v65, %v68
  %v72 = vld [vmem:[%s2] sm:$0x1]
  %v74 = vperm.slane %v72, 0
  %v76 = vadd.f32 %v70, %v74
  %v77 = vadd.f32 %v71, %v74
  %78 = vst [vmem:[%s3] sm:$0xff] %v76
  %79 = vst [vmem:[%s3 + $0x8] sm:$0x3f] %v77
  // Predicated region
  $region14: #{audio_transformer_fwd.17} parent=0 // pred_check
    _
  $region15: #{audio_transformer_fwd.17} parent=0 // pred_check_branch
    %81 = sbr.rel (0) target = $region17
  $region16: #{audio_transformer_fwd.17} parent=0 // pred_region
    _
  $region17: #{audio_transformer_fwd.17} parent=0 // pred_fallthru
    _
  // Predicated region
  $region18: #{audio_transformer_fwd.17} parent=0 // pred_check
    _
  $region19: #{audio_transformer_fwd.17} parent=0 // pred_check_branch
    %83 = sbr.rel (0) target = $region21
  $region20: #{audio_transformer_fwd.17} parent=0 // pred_region
    _
  $region21: #{audio_transformer_fwd.17} parent=0 // pred_fallthru
    _

// kernel: audio_transformer_fwd.18
$region0: #{audio_transformer_fwd.18}
  #allocation0 [shape = 'u32[]', space=smem, size = 0x4, offset = 0x4, fixed_abs, tag = 'smem constant byte address 0x4 - core index']
  #allocation1 [shape = 'u32[72,128]{1,0:T(1,128)}', space=vmem, size = 0x9000, scoped, tag = 'internal scratch']
  #allocation2 [shape = 'f32[14,128]{1,0:T(8,128)}', space=vmem, size = 0x2000, scoped, tag = 'scratch operand']
  %s0 = inlined_call_operand.vmem [shape: f32[14,128], index: 0, kind: input, shape index: {}]
  %s1 = inlined_call_operand.vmem [shape: f32[1,128], index: 1, kind: input, shape index: {}]
  %s2 = inlined_call_operand.vmem [shape: f32[1,128], index: 2, kind: input, shape index: {}]
  %s3 = inlined_call_operand.hbm [shape: f32[128,384], index: 3, kind: input, shape index: {}]
  %s4 = inlined_call_operand.vmem [shape: f32[1,384], index: 4, kind: input, shape index: {}]
  %s5 = inlined_call_operand.vmem [shape: f32[14,384], index: 5, kind: output, shape index: {}]
  %s6 = sld [smem:[#allocation0]]
  $region38: #{audio_transformer_fwd.18} parent=0
    _
  %s8 = ssub.s32 1, %s6
  %s9 = scalar_select 0, %s8, %s6
  $region1: #{audio_transformer_fwd.18} parent=0
    #allocation3 [shape = 'u8[196608]{0}', space=vmem, size = 0x30000, scoped, tag = 'input window, operand 3, single buffered']
    #allocation4 [shape = 's32[1]{0}', space=sflag, size = 0x4, scoped, tag = 'scoped memory for audio_transformer_fwd.18']
    %10 = vsyncpa [#allocation4], 0
    // Predicated region
    $region2: #{audio_transformer_fwd.18} parent=1 // pred_check
      _
    $region3: #{audio_transformer_fwd.18} parent=1 // pred_check_branch
      %12 = sbr.rel (0) target = $region5
    $region4: #{audio_transformer_fwd.18} parent=1 // pred_region
      _
    $region5: #{audio_transformer_fwd.18} parent=1 // pred_fallthru
      _
    // Predicated region
    $region6: #{audio_transformer_fwd.18} parent=1 // pred_check
      _
    $region7: #{audio_transformer_fwd.18} parent=1 // pred_check_branch
      %14 = sbr.rel (0) target = $region9
    $region8: #{audio_transformer_fwd.18} parent=1 // pred_region
      _
    $region9: #{audio_transformer_fwd.18} parent=1 // pred_fallthru
      _
    // Predicated region
    $region10: #{audio_transformer_fwd.18} parent=1 // pred_check
      _
    $region11: #{audio_transformer_fwd.18} parent=1 // pred_check_branch
      %16 = sbr.rel (0) target = $region13
    $region12: #{audio_transformer_fwd.18} parent=1 // pred_region
      _
    $region13: #{audio_transformer_fwd.18} parent=1 // pred_fallthru
      _
    // Predicated region
    $region14: #{audio_transformer_fwd.18} parent=1 // pred_check
      _
    $region15: #{audio_transformer_fwd.18} parent=1 // pred_check_branch
      %18 = sbr.rel (0) target = $region17
    $region16: #{audio_transformer_fwd.18} parent=1 // pred_region
      %20 = vsyncadd [#allocation4], 0
      %s21 = sshll.u32 %s3, 4
      %s22 = int_to_ptr.hbm [resolvable:$true] %s21
      %s23 = sshll.u32 [#allocation3], 4
      %s24 = int_to_ptr.vmem [resolvable:$true] %s23
      %29 = dma.hbm_to_vmem [thread:$0]  %s22, 6144, %s24, [#allocation4], 384, 384, 24
    $region17: #{audio_transformer_fwd.18} parent=1 // pred_fallthru
      _
    // Predicated region
    $region18: #{audio_transformer_fwd.18} parent=1 // pred_check
      _
    $region19: #{audio_transformer_fwd.18} parent=1 // pred_check_branch
      %31 = sbr.rel (0) target = $region21
    $region20: #{audio_transformer_fwd.18} parent=1 // pred_region
      _
    $region21: #{audio_transformer_fwd.18} parent=1 // pred_fallthru
      _
    // Predicated region
    $region22: #{audio_transformer_fwd.18} parent=1 // pred_check
      _
    $region23: #{audio_transformer_fwd.18} parent=1 // pred_check_branch
      %33 = sbr.rel (0) target = $region25
    $region24: #{audio_transformer_fwd.18} parent=1 // pred_region
      %35 = dma.done [#allocation4], 6144
    $region25: #{audio_transformer_fwd.18} parent=1 // pred_fallthru
      _
    %p36 = scmp.eq.s32.totalorder 0, 0
    // Predicated region
    $region26: #{audio_transformer_fwd.18} parent=1 // pred_check
      %p37 = pneg %p36
    $region27: #{audio_transformer_fwd.18} parent=1 // pred_check_branch
      %39 = sbr.rel (%p37) target = $region29
    $region28: #{audio_transformer_fwd.18} parent=1 // pred_region
      %v40 = vld [vmem:[%s0] sm:$0xff]
      %v41 = vld [vmem:[%s0 + $0x8] sm:$0x3f]
      %42 = vadd.xlane.f32.xlu0 %v40
      %v43 = vpop.xlane.xlu0 %42
      %vm44 = vcmask 1045504
      %v45 = vsel %vm44, %v41, 0.0
      %46 = vadd.xlane.f32.xlu0 %v45
      %v47 = vpop.xlane.xlu0 %46
      %v48 = vrcp.pop 128.0
      %v49 = vmul.f32 128.0, %v48
      %v50 = vsub.f32 1.0, %v49
      %v51 = vmul.f32 %v48, %v50
      %v52 = vadd.f32 %v48, %v51
      %vm53 = vweird.f32 %v48
      %v54 = vsel %vm53, %v48, %v52
      %v55 = vmul.f32 %v43, %v54
      %v56 = vmul.f32 %v47, %v54
      %v57 = vsub.f32 %v40, %v55
      %v58 = vsub.f32 %v41, %v56
      %v59 = vmul.f32 %v57, %v57
      %v60 = vmul.f32 %v58, %v58
      %61 = vadd.xlane.f32.xlu0 %v59
      %v62 = vpop.xlane.xlu0 %61
      %v63 = vsel %vm44, %v60, 0.0
      %64 = vadd.xlane.f32.xlu0 %v63
      %v65 = vpop.xlane.xlu0 %64
      %v66 = vmul.f32 %v62, %v54
      %v67 = vmul.f32 %v65, %v54
      %v68 = vadd.f32 %v66, 1e-05
      %v69 = vadd.f32 %v67, 1e-05
      %v70 = vrsqrt.pop %v68
      %v71 = vmul.f32 %v70, %v68
      %v72 = vmul.f32 %v71, %v70
      %v73 = vmul.f32 0.5, %v72
      %v74 = vsub.f32 1.5, %v73
      %v75 = vmul.f32 %v70, %v74
      %vm76 = vweird.f32 %v68
      %vm77 = vweird.f32 %v70
      %vm78 = vmor %vm76, %vm77
      %v79 = vsel %vm78, %v70, %v75
      %v80 = vrsqrt.pop %v69
      %v81 = vmul.f32 %v80, %v69
      %v82 = vmul.f32 %v81, %v80
      %v83 = vmul.f32 0.5, %v82
      %v84 = vsub.f32 1.5, %v83
      %v85 = vmul.f32 %v80, %v84
      %vm86 = vweird.f32 %v69
      %vm87 = vweird.f32 %v80
      %vm88 = vmor %vm86, %vm87
      %v89 = vsel %vm88, %v80, %v85
      %v90 = vmul.f32 %v57, %v79
      %v91 = vmul.f32 %v58, %v89
      %v92 = vld [vmem:[%s1] sm:$0x1]
      %v94 = vperm.slane %v92, 0
      %v96 = vmul.f32 %v90, %v94
      %v97 = vmul.f32 %v91, %v94
      %v98 = vld [vmem:[%s2] sm:$0x1]
      %v100 = vperm.slane %v98, 0
      %v102 = vadd.f32 %v96, %v100
      %v103 = vadd.f32 %v97, %v100
      %104 = vst [vmem:[#allocation2] sm:$0xff] %v102
      %105 = vst [vmem:[#allocation2 + $0x8] sm:$0x3f] %v103
    $region29: #{audio_transformer_fwd.18} parent=1 // pred_fallthru
      _
    %v106 = vld [vmem:[#allocation2] sm:$0xff]
    %v107 = vld [vmem:[#allocation2 + $0x8] sm:$0x3f]
    %v108 = vld [vmem:[#allocation3] sm:$0xff]
    %v109 = vld [vmem:[#allocation3 + $0x8] sm:$0xff]
    %v110 = vld [vmem:[#allocation3 + $0x10] sm:$0xff]
    %v111 = vld [vmem:[#allocation3 + $0x18] sm:$0xff]
    %v112 = vld [vmem:[#allocation3 + $0x20] sm:$0xff]
    %v113 = vld [vmem:[#allocation3 + $0x28] sm:$0xff]
    %v114 = vld [vmem:[#allocation3 + $0x30] sm:$0xff]
    %v115 = vld [vmem:[#allocation3 + $0x38] sm:$0xff]
    %v116 = vld [vmem:[#allocation3 + $0x40] sm:$0xff]
    %v117 = vld [vmem:[#allocation3 + $0x48] sm:$0xff]
    %v118 = vld [vmem:[#allocation3 + $0x50] sm:$0xff]
    %v119 = vld [vmem:[#allocation3 + $0x58] sm:$0xff]
    %v120 = vld [vmem:[#allocation3 + $0x60] sm:$0xff]
    %v121 = vld [vmem:[#allocation3 + $0x68] sm:$0xff]
    %v122 = vld [vmem:[#allocation3 + $0x70] sm:$0xff]
    %v123 = vld [vmem:[#allocation3 + $0x78] sm:$0xff]
    %v124 = vld [vmem:[#allocation3 + $0x80] sm:$0xff]
    %v125 = vld [vmem:[#allocation3 + $0x88] sm:$0xff]
    %v126 = vld [vmem:[#allocation3 + $0x90] sm:$0xff]
    %v127 = vld [vmem:[#allocation3 + $0x98] sm:$0xff]
    %v128 = vld [vmem:[#allocation3 + $0xa0] sm:$0xff]
    %v129 = vld [vmem:[#allocation3 + $0xa8] sm:$0xff]
    %v130 = vld [vmem:[#allocation3 + $0xb0] sm:$0xff]
    %v131 = vld [vmem:[#allocation3 + $0xb8] sm:$0xff]
    %v132 = vld [vmem:[#allocation3 + $0xc0] sm:$0xff]
    %v133 = vld [vmem:[#allocation3 + $0xc8] sm:$0xff]
    %v134 = vld [vmem:[#allocation3 + $0xd0] sm:$0xff]
    %v135 = vld [vmem:[#allocation3 + $0xd8] sm:$0xff]
    %v136 = vld [vmem:[#allocation3 + $0xe0] sm:$0xff]
    %v137 = vld [vmem:[#allocation3 + $0xe8] sm:$0xff]
    %v138 = vld [vmem:[#allocation3 + $0xf0] sm:$0xff]
    %v139 = vld [vmem:[#allocation3 + $0xf8] sm:$0xff]
    %v140 = vld [vmem:[#allocation3 + $0x100] sm:$0xff]
    %v141 = vld [vmem:[#allocation3 + $0x108] sm:$0xff]
    %v142 = vld [vmem:[#allocation3 + $0x110] sm:$0xff]
    %v143 = vld [vmem:[#allocation3 + $0x118] sm:$0xff]
    %v144 = vld [vmem:[#allocation3 + $0x120] sm:$0xff]
    %v145 = vld [vmem:[#allocation3 + $0x128] sm:$0xff]
    %v146 = vld [vmem:[#allocation3 + $0x130] sm:$0xff]
    %v147 = vld [vmem:[#allocation3 + $0x138] sm:$0xff]
    %v148 = vld [vmem:[#allocation3 + $0x140] sm:$0xff]
    %v149 = vld [vmem:[#allocation3 + $0x148] sm:$0xff]
    %v150 = vld [vmem:[#allocation3 + $0x150] sm:$0xff]
    %v151 = vld [vmem:[#allocation3 + $0x158] sm:$0xff]
    %v152 = vld [vmem:[#allocation3 + $0x160] sm:$0xff]
    %v153 = vld [vmem:[#allocation3 + $0x168] sm:$0xff]
    %v154 = vld [vmem:[#allocation3 + $0x170] sm:$0xff]
    %v155 = vld [vmem:[#allocation3 + $0x178] sm:$0xff]
    %v156 = vld [vmem:[%s4] sm:$0x7]
    %v158 = vperm.slane %v156, 0
    %v159 = vperm.slane %v156, 1
    %v160 = vperm.slane %v156, 2
    %164 = vmatpush.msra.mxu0 %v153
    %165 = vmatpush.msra.mxu0 %v150
    %166 = vmatpush.msra.mxu0 %v147
    %167 = vmatpush.msra.mxu0 %v144
    %168 = vmatpush.msra.mxu0 %v141
    %169 = vmatpush.msra.mxu0 %v138
    %170 = vmatpush.msra.mxu0 %v135
    %171 = vmatpush.msra.mxu0 %v132
    %172 = vmatpush.msra.mxu0 %v129
    %173 = vmatpush.msra.mxu0 %v126
    %174 = vmatpush.msra.mxu0 %v123
    %175 = vmatpush.msra.mxu0 %v120
    %176 = vmatpush.msra.mxu0 %v117
    %177 = vmatpush.msra.mxu0 %v114
    %178 = vmatpush.msra.mxu0 %v111
    %179 = vmatpush.msra.mxu0 %v108
    %180 = vmatmul.f32.gmra.mxu0 %v106
    %v181 = vpop.f32.mrf.mxu0
    %v182 = vadd.f32 %v158, %v181
    %183 = vmatmul.f32.gmra.mxu0 %v107
    %v184 = vpop.f32.mrf.mxu0
    %v185 = vadd.f32 %v158, %v184
    %186 = vdwg.mxu0
    %187 = vmatpush.msra.mxu0 %v154
    %188 = vmatpush.msra.mxu0 %v151
    %189 = vmatpush.msra.mxu0 %v148
    %190 = vmatpush.msra.mxu0 %v145
    %191 = vmatpush.msra.mxu0 %v142
    %192 = vmatpush.msra.mxu0 %v139
    %193 = vmatpush.msra.mxu0 %v136
    %194 = vmatpush.msra.mxu0 %v133
    %195 = vmatpush.msra.mxu0 %v130
    %196 = vmatpush.msra.mxu0 %v127
    %197 = vmatpush.msra.mxu0 %v124
    %198 = vmatpush.msra.mxu0 %v121
    %199 = vmatpush.msra.mxu0 %v118
    %200 = vmatpush.msra.mxu0 %v115
    %201 = vmatpush.msra.mxu0 %v112
    %202 = vmatpush.msra.mxu0 %v109
    %203 = vmatmul.f32.gmra.mxu0 %v106
    %v204 = vpop.f32.mrf.mxu0
    %v205 = vadd.f32 %v159, %v204
    %206 = vmatmul.f32.gmra.mxu0 %v107
    %v207 = vpop.f32.mrf.mxu0
    %v208 = vadd.f32 %v159, %v207
    %209 = vdwg.mxu0
    %210 = vmatpush.msra.mxu0 %v155
    %211 = vmatpush.msra.mxu0 %v152
    %212 = vmatpush.msra.mxu0 %v149
    %213 = vmatpush.msra.mxu0 %v146
    %214 = vmatpush.msra.mxu0 %v143
    %215 = vmatpush.msra.mxu0 %v140
    %216 = vmatpush.msra.mxu0 %v137
    %217 = vmatpush.msra.mxu0 %v134
    %218 = vmatpush.msra.mxu0 %v131
    %219 = vmatpush.msra.mxu0 %v128
    %220 = vmatpush.msra.mxu0 %v125
    %221 = vmatpush.msra.mxu0 %v122
    %222 = vmatpush.msra.mxu0 %v119
    %223 = vmatpush.msra.mxu0 %v116
    %224 = vmatpush.msra.mxu0 %v113
    %225 = vmatpush.msra.mxu0 %v110
    %226 = vmatmul.f32.gmra.mxu0 %v106
    %v227 = vpop.f32.mrf.mxu0
    %v228 = vadd.f32 %v160, %v227
    %229 = vmatmul.f32.gmra.mxu0 %v107
    %v230 = vpop.f32.mrf.mxu0
    %v231 = vadd.f32 %v160, %v230
    %232 = vdwg.mxu0
    %233 = vst [vmem:[%s5] sm:$0xff] %v182
    %234 = vst [vmem:[%s5 + $0x8] sm:$0xff] %v205
    %235 = vst [vmem:[%s5 + $0x10] sm:$0xff] %v228
    %236 = vst [vmem:[%s5 + $0x18] sm:$0x3f] %v185
    %237 = vst [vmem:[%s5 + $0x20] sm:$0x3f] %v208
    %238 = vst [vmem:[%s5 + $0x28] sm:$0x3f] %v231
    // Predicated region
    $region30: #{audio_transformer_fwd.18} parent=1 // pred_check
      _
    $region31: #{audio_transformer_fwd.18} parent=1 // pred_check_branch
      %240 = sbr.rel (0) target = $region33
    $region32: #{audio_transformer_fwd.18} parent=1 // pred_region
      _
    $region33: #{audio_transformer_fwd.18} parent=1 // pred_fallthru
      _
    // Predicated region
    $region34: #{audio_transformer_fwd.18} parent=1 // pred_check
      _
    $region35: #{audio_transformer_fwd.18} parent=1 // pred_check_branch
      %242 = sbr.rel (0) target = $region37
    $region36: #{audio_transformer_fwd.18} parent=1 // pred_region
      _
    $region37: #{audio_transformer_fwd.18} parent=1 // pred_fallthru
      _
    %243 = vsyncpa [#allocation4], 1

// kernel: tile.9
$region0: #{tile.9}
  %s0 = inlined_call_operand.vmem [shape: f32[2,7,2,16], index: 0, kind: input, shape index: {}]
  %s1 = inlined_call_operand.vmem [shape: f32[2,7,32], index: 1, kind: output, shape index: {}]
  $region1: #{tile.9} parent=0
    #allocation0 [shape = 'u8[28672]{0}', space=vmem, size = 0x7000, scoped, tag = 'scoped mem for output reshape']
    #allocation1 [shape = 'u8[57344]{0}', space=vmem, size = 0xe000, scoped, tag = 'scoped mem for input reshape']
    %s3 = ssub.s32 4, 1
    %s4 = scalar_lea.vmem %s0, 26
    %v5 = vld [vmem:[%s4] sm:%s3]
    %s6 = scalar_lea.vmem [#allocation1], 104
    %7 = vst [vmem:[%s6] sm:%s3] %v5
    %s8 = scalar_lea.vmem %s0, 24
    %v9 = vld [vmem:[%s8] sm:%s3]
    %s10 = scalar_lea.vmem [#allocation1], 96
    %11 = vst [vmem:[%s10] sm:%s3] %v9
    %s12 = scalar_lea.vmem %s0, 22
    %v13 = vld [vmem:[%s12] sm:%s3]
    %s14 = scalar_lea.vmem [#allocation1], 88
    %15 = vst [vmem:[%s14] sm:%s3] %v13
    %s16 = scalar_lea.vmem %s0, 20
    %v17 = vld [vmem:[%s16] sm:%s3]
    %s18 = scalar_lea.vmem [#allocation1], 80
    %19 = vst [vmem:[%s18] sm:%s3] %v17
    %s20 = scalar_lea.vmem %s0, 18
    %v21 = vld [vmem:[%s20] sm:%s3]
    %s22 = scalar_lea.vmem [#allocation1], 72
    %23 = vst [vmem:[%s22] sm:%s3] %v21
    %s24 = scalar_lea.vmem %s0, 16
    %v25 = vld [vmem:[%s24] sm:%s3]
    %s26 = scalar_lea.vmem [#allocation1], 64
    %27 = vst [vmem:[%s26] sm:%s3] %v25
    %s28 = scalar_lea.vmem %s0, 14
    %v29 = vld [vmem:[%s28] sm:%s3]
    %s30 = scalar_lea.vmem [#allocation1], 56
    %31 = vst [vmem:[%s30] sm:%s3] %v29
    %s32 = scalar_lea.vmem %s0, 12
    %v33 = vld [vmem:[%s32] sm:%s3]
    %s34 = scalar_lea.vmem [#allocation1], 48
    %35 = vst [vmem:[%s34] sm:%s3] %v33
    %s36 = scalar_lea.vmem %s0, 10
    %v37 = vld [vmem:[%s36] sm:%s3]
    %s38 = scalar_lea.vmem [#allocation1], 40
    %39 = vst [vmem:[%s38] sm:%s3] %v37
    %s40 = scalar_lea.vmem %s0, 8
    %v41 = vld [vmem:[%s40] sm:%s3]
    %s42 = scalar_lea.vmem [#allocation1], 32
    %43 = vst [vmem:[%s42] sm:%s3] %v41
    %s44 = scalar_lea.vmem %s0, 6
    %v45 = vld [vmem:[%s44] sm:%s3]
    %s46 = scalar_lea.vmem [#allocation1], 24
    %47 = vst [vmem:[%s46] sm:%s3] %v45
    %s48 = scalar_lea.vmem %s0, 4
    %v49 = vld [vmem:[%s48] sm:%s3]
    %s50 = scalar_lea.vmem [#allocation1], 16
    %51 = vst [vmem:[%s50] sm:%s3] %v49
    %s52 = scalar_lea.vmem %s0, 2
    %v53 = vld [vmem:[%s52] sm:%s3]
    %s54 = scalar_lea.vmem [#allocation1], 8
    %55 = vst [vmem:[%s54] sm:%s3] %v53
    %v56 = vld [vmem:[%s0] sm:%s3]
    %57 = vst [vmem:[#allocation1] sm:%s3] %v56
    %v58 = vld [vmem:[#allocation1] ss:$8 sm:$0xf]
    %v59 = vld [vmem:[#allocation1] ss:$8 sm:$0xf0]
    %vm60 = vcmask 1047556
    %v61 = vsel %vm60, %v59, %v58
    %vm62 = vcmask 130048
    %63 = vst.msk [vmem:[#allocation0] sm:$0x3] %vm62, %v61
    %s64 = scalar_lea.vmem [#allocation0], 6
    %65 = vst.msk [vmem:[%s64] sm:$0xc] %vm62, %v61
    %s66 = scalar_lea.vmem [#allocation0], 12
    %67 = vst.msk [vmem:[%s66] sm:$0x30] %vm62, %v61
    %s68 = scalar_lea.vmem [#allocation0], 18
    %69 = vst.msk [vmem:[%s68] sm:$0xc0] %vm62, %v61
    %s70 = scalar_lea.vmem [#allocation1], 64
    %v71 = vld [vmem:[%s70] ss:$8 sm:$0xf]
    %s72 = scalar_lea.vmem [#allocation1], 64
    %s73 = smov 48
    %v74 = vld [vmem:[%s72] ss:$8 sm:%s73]
    %vm75 = vcmask 1045508
    %v76 = vsel %vm75, %v74, %v71
    %vm77 = vcmask 130048
    %s78 = scalar_lea.vmem [#allocation0], 32
    %79 = vst.msk [vmem:[%s78] sm:$0x3] %vm77, %v76
    %s80 = scalar_lea.vmem [#allocation0], 38
    %81 = vst.msk [vmem:[%s80] sm:$0xc] %vm77, %v76
    %s82 = scalar_lea.vmem [#allocation0], 44
    %83 = vst.msk [vmem:[%s82] sm:$0x30] %vm77, %v76
    %s84 = scalar_lea.vmem [#allocation1], 1
    %v85 = vld [vmem:[%s84] ss:$8 sm:$0xf]
    %s86 = scalar_lea.vmem [#allocation1], 1
    %v87 = vld [vmem:[%s86] ss:$8 sm:$0xf0]
    %vm88 = vcmask 1047556
    %v89 = vsel %vm88, %v87, %v85
    %90 = vrot.lane.b32.xlu0 %v89, 16
    %v91 = vpop.permute.xlu0 %90
    %vm92 = vcmask 261248
    %93 = vst.msk [vmem:[#allocation0] sm:$0x3] %vm92, %v91
    %s94 = scalar_lea.vmem [#allocation0], 6
    %95 = vst.msk [vmem:[%s94] sm:$0xc] %vm92, %v91
    %s96 = scalar_lea.vmem [#allocation0], 12
    %97 = vst.msk [vmem:[%s96] sm:$0x30] %vm92, %v91
    %s98 = scalar_lea.vmem [#allocation0], 18
    %99 = vst.msk [vmem:[%s98] sm:$0xc0] %vm92, %v91
    %s100 = scalar_lea.vmem [#allocation1], 65
    %v101 = vld [vmem:[%s100] ss:$8 sm:$0xf]
    %s102 = scalar_lea.vmem [#allocation1], 65
    %s103 = smov 48
    %v104 = vld [vmem:[%s102] ss:$8 sm:%s103]
    %vm105 = vcmask 1045508
    %v106 = vsel %vm105, %v104, %v101
    %107 = vrot.lane.b32.xlu0 %v106, 16
    %v108 = vpop.permute.xlu0 %107
    %vm109 = vcmask 261248
    %s110 = scalar_lea.vmem [#allocation0], 32
    %111 = vst.msk [vmem:[%s110] sm:$0x3] %vm109, %v108
    %s112 = scalar_lea.vmem [#allocation0], 38
    %113 = vst.msk [vmem:[%s112] sm:$0xc] %vm109, %v108
    %s114 = scalar_lea.vmem [#allocation0], 44
    %115 = vst.msk [vmem:[%s114] sm:$0x30] %vm109, %v108
    %s117 = ssub.s32 4, 1
    %v118 = vld [vmem:[#allocation0] sm:%s117]
    %s120 = ssub.s32 4, 1
    %121 = vst [vmem:[%s1] sm:%s120] %v118
    %s122 = scalar_lea.vmem [#allocation0], 8
    %v123 = vld [vmem:[%s122] sm:%s117]
    %s125 = ssub.s32 4, 1
    %s126 = scalar_lea.vmem %s1, 2
    %127 = vst [vmem:[%s126] sm:%s125] %v123
    %s128 = scalar_lea.vmem [#allocation0], 16
    %v129 = vld [vmem:[%s128] sm:%s117]
    %s131 = ssub.s32 4, 1
    %s132 = scalar_lea.vmem %s1, 4
    %133 = vst [vmem:[%s132] sm:%s131] %v129
    %s134 = scalar_lea.vmem [#allocation0], 24
    %v135 = vld [vmem:[%s134] sm:%s117]
    %s137 = ssub.s32 4, 1
    %s138 = scalar_lea.vmem %s1, 6
    %139 = vst [vmem:[%s138] sm:%s137] %v135
    %s140 = scalar_lea.vmem [#allocation0], 32
    %v141 = vld [vmem:[%s140] sm:%s117]
    %s143 = ssub.s32 4, 1
    %s144 = scalar_lea.vmem %s1, 8
    %145 = vst [vmem:[%s144] sm:%s143] %v141
    %s146 = scalar_lea.vmem [#allocation0], 40
    %v147 = vld [vmem:[%s146] sm:%s117]
    %s149 = ssub.s32 4, 1
    %s150 = scalar_lea.vmem %s1, 10
    %151 = vst [vmem:[%s150] sm:%s149] %v147
    %s152 = scalar_lea.vmem [#allocation0], 48
    %v153 = vld [vmem:[%s152] sm:%s117]
    %s155 = ssub.s32 4, 1
    %s156 = scalar_lea.vmem %s1, 12
    %157 = vst [vmem:[%s156] sm:%s155] %v153

// kernel: mul.71
$region0: #{mul.71}
  %s0 = inlined_call_operand.vmem [shape: f32[7,2,16], index: 0, kind: input, shape index: {}]
  %s1 = inlined_call_operand.vmem [shape: f32[7,32], index: 1, kind: output, shape index: {}]
  $region1: #{mul.71} parent=0
    #allocation0 [shape = 'u8[28672]{0}', space=vmem, size = 0x7000, scoped, tag = 'scoped mem for input reshape']
    %s3 = ssub.s32 4, 1
    %s4 = scalar_lea.vmem %s0, 12
    %v5 = vld [vmem:[%s4] sm:%s3]
    %s6 = scalar_lea.vmem [#allocation0], 48
    %7 = vst [vmem:[%s6] sm:%s3] %v5
    %s8 = scalar_lea.vmem %s0, 10
    %v9 = vld [vmem:[%s8] sm:%s3]
    %s10 = scalar_lea.vmem [#allocation0], 40
    %11 = vst [vmem:[%s10] sm:%s3] %v9
    %s12 = scalar_lea.vmem %s0, 8
    %v13 = vld [vmem:[%s12] sm:%s3]
    %s14 = scalar_lea.vmem [#allocation0], 32
    %15 = vst [vmem:[%s14] sm:%s3] %v13
    %s16 = scalar_lea.vmem %s0, 6
    %v17 = vld [vmem:[%s16] sm:%s3]
    %s18 = scalar_lea.vmem [#allocation0], 24
    %19 = vst [vmem:[%s18] sm:%s3] %v17
    %s20 = scalar_lea.vmem %s0, 4
    %v21 = vld [vmem:[%s20] sm:%s3]
    %s22 = scalar_lea.vmem [#allocation0], 16
    %23 = vst [vmem:[%s22] sm:%s3] %v21
    %s24 = scalar_lea.vmem %s0, 2
    %v25 = vld [vmem:[%s24] sm:%s3]
    %s26 = scalar_lea.vmem [#allocation0], 8
    %27 = vst [vmem:[%s26] sm:%s3] %v25
    %v28 = vld [vmem:[%s0] sm:%s3]
    %29 = vst [vmem:[#allocation0] sm:%s3] %v28
    %v30 = vld [vmem:[#allocation0] ss:$8 sm:$0xf]
    %v31 = vld [vmem:[#allocation0] ss:$8 sm:$0x70]
    %vm32 = vcmask 1046532
    %v33 = vsel %vm32, %v31, %v30
    %vm34 = vcmask 130048
    %35 = vst.msk [vmem:[%s1] sm:$0x7f] %vm34, %v33
    %s36 = scalar_lea.vmem [#allocation0], 1
    %v37 = vld [vmem:[%s36] ss:$8 sm:$0xf]
    %s38 = scalar_lea.vmem [#allocation0], 1
    %v39 = vld [vmem:[%s38] ss:$8 sm:$0x70]
    %vm40 = vcmask 1046532
    %v41 = vsel %vm40, %v39, %v37
    %42 = vrot.lane.b32.xlu0 %v41, 16
    %v43 = vpop.permute.xlu0 %42
    %vm44 = vcmask 261248
    %45 = vst.msk [vmem:[%s1] sm:$0x7f] %vm44, %v43

// kernel: audio_transformer_fwd.19
$region0: #{audio_transformer_fwd.19}
  #allocation0 [shape = 'u32[]', space=smem, size = 0x4, offset = 0x4, fixed_abs, tag = 'smem constant byte address 0x4 - core index']
  #allocation1 [shape = 'u32[72,128]{1,0:T(1,128)}', space=vmem, size = 0x9000, scoped, tag = 'internal scratch']
  %s0 = inlined_call_operand.vmem [shape: f32[2,7,128], index: 0, kind: input, shape index: {}]
  %s1 = inlined_call_operand.vmem [shape: f32[2,7,128], index: 1, kind: input, shape index: {}]
  %s2 = inlined_call_operand.vmem [shape: f32[2,7,128], index: 2, kind: input, shape index: {}]
  %s3 = inlined_call_operand.vmem [shape: f32[2,7,128], index: 3, kind: output, shape index: {}]
  %s4 = sld [smem:[#allocation0]]
  $region45: #{audio_transformer_fwd.19} parent=0
    _
  %s6 = ssub.s32 1, %s4
  %s7 = scalar_select 0, %s6, %s4
  loop: start=0, step=1, limit=4
  $region2: #{audio_transformer_fwd.19} parent=0 // loop_pre_header
    _
  $region3: #{audio_transformer_fwd.19} parent=0 // loop_header
    %s9 = sphi 0, %s13
    %p10 = scmp.ge.s32.totalorder %s9, 4
    %s19 = sphi 0, %s21
    %s22 = sphi 0, %s19
    %s23 = sphi 0, %s22
    %s39 = sphi 0, %s23
    %s45 = sphi 0, %s47
    %s48 = sphi 0, %s45
    %s49 = sphi 0, %s48
    %s65 = sphi 0, %s49
    %s71 = sphi 0, %s73
    %s74 = sphi 0, %s71
    %s75 = sphi 0, %s74
    %s91 = sphi 0, %s75
    %s97 = sphi 0, %s99
    %s100 = sphi 0, %s97
    %s101 = sphi 0, %s100
    %s117 = sphi 0, %s101
  $region4: #{audio_transformer_fwd.19} parent=0 // loop_header_branch
    %12 = sbr.rel (%p10) target = $region8
  $region5: #{audio_transformer_fwd.19} parent=0 // loop_body
    %s14 = ssub.s32 %s9, 1
    %s15 = ssub.s32 %s9, 2
    %s16 = sadd.s32 %s9, 1
    %s17 = ssub.s32 %s9, %s16
    %p18 = scmp.eq.s32.totalorder %s17, 0
    %s20 = sadd.s32 %s19, 1
    %s21 = scalar_select %p18, %s19, %s20
    %p24 = pneg %p18
    %p25 = scmp.eq.s32.totalorder %s9, 1
    %p26 = por %p24, %p25
    %p27 = scmp.ne.s32.totalorder %s19, %s22
    %p28 = scmp.eq.s32.totalorder %s9, 0
    %p29 = por %p27, %p28
    %p30 = scmp.ne.s32.totalorder %s19, %s22
    %p31 = scmp.eq.s32.totalorder %s14, 1
    %p32 = por %p30, %p31
    %p33 = scmp.ne.s32.totalorder %s22, %s23
    %p34 = scmp.eq.s32.totalorder %s14, 0
    %p35 = por %p33, %p34
    %p36 = scmp.ne.s32.totalorder %s22, %s23
    %p37 = scmp.eq.s32.totalorder %s15, 1
    %p38 = por %p36, %p37
    %p40 = scmp.ne.s32.totalorder %s23, %s39
    %p41 = scmp.eq.s32.totalorder %s15, 0
    %p42 = por %p40, %p41
    %s43 = ssub.s32 %s9, %s16
    %p44 = scmp.eq.s32.totalorder %s43, 0
    %s46 = sadd.s32 %s45, 1
    %s47 = scalar_select %p44, %s45, %s46
    %p50 = pneg %p44
    %p51 = scmp.eq.s32.totalorder %s9, 1
    %p52 = por %p50, %p51
    %p53 = scmp.ne.s32.totalorder %s45, %s48
    %p54 = scmp.eq.s32.totalorder %s9, 0
    %p55 = por %p53, %p54
    %p56 = scmp.ne.s32.totalorder %s45, %s48
    %p57 = scmp.eq.s32.totalorder %s14, 1
    %p58 = por %p56, %p57
    %p59 = scmp.ne.s32.totalorder %s48, %s49
    %p60 = scmp.eq.s32.totalorder %s14, 0
    %p61 = por %p59, %p60
    %p62 = scmp.ne.s32.totalorder %s48, %s49
    %p63 = scmp.eq.s32.totalorder %s15, 1
    %p64 = por %p62, %p63
    %p66 = scmp.ne.s32.totalorder %s49, %s65
    %p67 = scmp.eq.s32.totalorder %s15, 0
    %p68 = por %p66, %p67
    %s69 = ssub.s32 %s9, %s16
    %p70 = scmp.eq.s32.totalorder %s69, 0
    %s72 = sadd.s32 %s71, 1
    %s73 = scalar_select %p70, %s71, %s72
    %p76 = pneg %p70
    %p77 = scmp.eq.s32.totalorder %s9, 1
    %p78 = por %p76, %p77
    %p79 = scmp.ne.s32.totalorder %s71, %s74
    %p80 = scmp.eq.s32.totalorder %s9, 0
    %p81 = por %p79, %p80
    %p82 = scmp.ne.s32.totalorder %s71, %s74
    %p83 = scmp.eq.s32.totalorder %s14, 1
    %p84 = por %p82, %p83
    %p85 = scmp.ne.s32.totalorder %s74, %s75
    %p86 = scmp.eq.s32.totalorder %s14, 0
    %p87 = por %p85, %p86
    %p88 = scmp.ne.s32.totalorder %s74, %s75
    %p89 = scmp.eq.s32.totalorder %s15, 1
    %p90 = por %p88, %p89
    %p92 = scmp.ne.s32.totalorder %s75, %s91
    %p93 = scmp.eq.s32.totalorder %s15, 0
    %p94 = por %p92, %p93
    %s95 = ssub.s32 %s9, %s16
    %p96 = scmp.eq.s32.totalorder %s95, 0
    %s98 = sadd.s32 %s97, 1
    %s99 = scalar_select %p96, %s97, %s98
    %p102 = pneg %p96
    %p103 = scmp.eq.s32.totalorder %s9, 1
    %p104 = por %p102, %p103
    %p105 = scmp.ne.s32.totalorder %s97, %s100
    %p106 = scmp.eq.s32.totalorder %s9, 0
    %p107 = por %p105, %p106
    %p108 = scmp.ne.s32.totalorder %s97, %s100
    %p109 = scmp.eq.s32.totalorder %s14, 1
    %p110 = por %p108, %p109
    %p111 = scmp.ne.s32.totalorder %s100, %s101
    %p112 = scmp.eq.s32.totalorder %s14, 0
    %p113 = por %p111, %p112
    %p114 = scmp.ne.s32.totalorder %s100, %s101
    %p115 = scmp.eq.s32.totalorder %s15, 1
    %p116 = por %p114, %p115
    %p118 = scmp.ne.s32.totalorder %s101, %s117
    %p119 = scmp.eq.s32.totalorder %s15, 0
    %p120 = por %p118, %p119
    %p121 = scmp.le.s32.totalorder 1, %s9
    %p122 = scmp.lt.s32.totalorder %s9, 3
    %p123 = pnand %p121, %p122
    %p124 = pneg %p123
    // Predicated region
    $region9: #{audio_transformer_fwd.19} parent=5 // pred_check
      _
    $region10: #{audio_transformer_fwd.19} parent=5 // pred_check_branch
      %126 = sbr.rel (%p123) target = $region12
    $region11: #{audio_transformer_fwd.19} parent=5 // pred_region
      %s127 = ssub.s32 %s9, 1
    $region12: #{audio_transformer_fwd.19} parent=5 // pred_fallthru
      _
    %p128 = scmp.lt.s32.totalorder %s9, 2
    // Predicated region
    $region13: #{audio_transformer_fwd.19} parent=5 // pred_check
      %p129 = pneg %p128
    $region14: #{audio_transformer_fwd.19} parent=5 // pred_check_branch
      %131 = sbr.rel (%p129) target = $region16
    $region15: #{audio_transformer_fwd.19} parent=5 // pred_region
      // Predicated region
      $region17: #{audio_transformer_fwd.19} parent=15 // pred_check
        %p132 = pneg %p29
      $region18: #{audio_transformer_fwd.19} parent=15 // pred_check_branch
        %134 = sbr.rel (%p132) target = $region20
      $region19: #{audio_transformer_fwd.19} parent=15 // pred_region
        %p135 = scmp.lt.s32.totalorder %s9, 1
        %s136 = scalar_select %p135, %s9, 1
        %s137 = smul.addr %s136, 8
        %s138 = scalar_lea.vmem %s0, %s137
      $region20: #{audio_transformer_fwd.19} parent=15 // pred_fallthru
        _
      // Predicated region
      $region21: #{audio_transformer_fwd.19} parent=15 // pred_check
        %p139 = pneg %p55
      $region22: #{audio_transformer_fwd.19} parent=15 // pred_check_branch
        %141 = sbr.rel (%p139) target = $region24
      $region23: #{audio_transformer_fwd.19} parent=15 // pred_region
        %p142 = scmp.lt.s32.totalorder %s9, 1
        %s143 = scalar_select %p142, %s9, 1
        %s144 = smul.addr %s143, 8
        %s145 = scalar_lea.vmem %s1, %s144
      $region24: #{audio_transformer_fwd.19} parent=15 // pred_fallthru
        _
      // Predicated region
      $region25: #{audio_transformer_fwd.19} parent=15 // pred_check
        %p146 = pneg %p81
      $region26: #{audio_transformer_fwd.19} parent=15 // pred_check_branch
        %148 = sbr.rel (%p146) target = $region28
      $region27: #{audio_transformer_fwd.19} parent=15 // pred_region
        %p149 = scmp.lt.s32.totalorder %s9, 1
        %s150 = scalar_select %p149, %s9, 1
        %s151 = smul.addr %s150, 8
        %s152 = scalar_lea.vmem %s2, %s151
      $region28: #{audio_transformer_fwd.19} parent=15 // pred_fallthru
        _
    $region16: #{audio_transformer_fwd.19} parent=5 // pred_fallthru
      _
    %p153 = scmp.le.s32.totalorder 1, %s9
    %p154 = scmp.lt.s32.totalorder %s9, 3
    %p155 = pnand %p153, %p154
    %p156 = pneg %p155
    // Predicated region
    $region29: #{audio_transformer_fwd.19} parent=5 // pred_check
      _
    $region30: #{audio_transformer_fwd.19} parent=5 // pred_check_branch
      %158 = sbr.rel (%p155) target = $region32
    $region31: #{audio_transformer_fwd.19} parent=5 // pred_region
      %s159 = ssub.s32 %s9, 1
      %p160 = scmp.lt.s32.totalorder %s14, 1
      %s161 = scalar_select %p160, %s14, 1
      %s162 = smul.addr %s161, 8
      %s163 = scalar_lea.vmem %s0, %s162
      %p164 = pneg %p35
      %p165 = pneg %p32
      %p166 = scmp.lt.s32.totalorder %s14, 1
      %s167 = scalar_select %p166, %s14, 1
      %s168 = smul.addr %s167, 8
      %s169 = scalar_lea.vmem %s1, %s168
      %p170 = pneg %p61
      %p171 = pneg %p58
      %p172 = scmp.lt.s32.totalorder %s14, 1
      %s173 = scalar_select %p172, %s14, 1
      %s174 = smul.addr %s173, 8
      %s175 = scalar_lea.vmem %s2, %s174
      %p176 = pneg %p87
      %p177 = pneg %p84
      %p178 = pneg %p113
      %p179 = pneg %p110
      %p180 = scmp.lt.s32.totalorder %s14, 1
      %s181 = scalar_select %p180, %s14, 1
      %s182 = smul.addr %s181, 8
      %s183 = scalar_lea.vmem %s3, %s182
      %p184 = scmp.lt.s32.totalorder %s14, 1
      %s185 = scalar_select %p184, %s14, 1
      %s186 = smul.addr %s185, 8
      %s187 = scalar_lea.vmem %s0, %s186
      %p188 = scmp.lt.s32.totalorder %s14, 1
      %s189 = scalar_select %p188, %s14, 1
      %s190 = smul.addr %s189, 8
      %s191 = scalar_lea.vmem %s1, %s190
      %p192 = scmp.lt.s32.totalorder %s14, 1
      %s193 = scalar_select %p192, %s14, 1
      %s194 = smul.addr %s193, 8
      %s195 = scalar_lea.vmem %s2, %s194
      %p196 = scmp.lt.s32.totalorder %s14, 1
      %s197 = scalar_select %p196, %s14, 1
      %s198 = smul.addr %s197, 8
      %s199 = scalar_lea.vmem %s3, %s198
      %v200 = vld [vmem:[%s187] sm:$0x7f]
      %v201 = vmul.f32 %v200, 0.125
      %v202 = vld [vmem:[%s191] sm:$0x7f]
      %v203 = vld [vmem:[%s195] sm:$0x7f]
      %vm204 = vcmask 523264
      %v206 = vsel %vm204, %v201, 0
      %v209 = vsel %vm204, %v202, 0
      %211 = vmatpush.xpose.msra.mxu0 0.0
      %212 = vmatpush.xpose.msra.mxu0 0.0
      %213 = vmatpush.xpose.msra.mxu0 0.0
      %214 = vmatpush.xpose.msra.mxu0 0.0
      %215 = vmatpush.xpose.msra.mxu0 0.0
      %216 = vmatpush.xpose.msra.mxu0 0.0
      %217 = vmatpush.xpose.msra.mxu0 0.0
      %218 = vmatpush.xpose.msra.mxu0 0.0
      %219 = vmatpush.xpose.msra.mxu0 0.0
      %220 = vmatpush.xpose.msra.mxu0 0.0
      %221 = vmatpush.xpose.msra.mxu0 0.0
      %222 = vmatpush.xpose.msra.mxu0 0.0
      %223 = vmatpush.xpose.msra.mxu0 0.0
      %224 = vmatpush.xpose.msra.mxu0 0.0
      %225 = vmatpush.xpose.msra.mxu0 0.0
      %226 = vmatpush.xpose.msra.mxu0 %v209
      %227 = vmatmul.f32.gmra.mxu0 %v206
      %v228 = vpop.f32.mrf.mxu0
      %v229 = vadd.f32 0.0, %v228
      %230 = vdwg.mxu0
      %vm231 = vcmask 55296
      %v232 = vsel %vm231, %v229, -inf
      %233 = vmax.xlane.f32.xlu0 %v232
      %v234 = vpop.xlane.xlu0 %233
      %v235 = vsub.f32 %v229, %v234
      %v236 = vmul.f32 %v235, 1.442695
      %v237 = vpow.pop %v236
      %v238 = vsel %vm231, %v237, 0.0
      %239 = vadd.xlane.f32.xlu0 %v238
      %v240 = vpop.xlane.xlu0 %239
      %v241 = vrcp.pop %v240
      %v242 = vmul.f32 %v237, %v241
      %vm243 = vcmask 56320
      %v245 = vsel %vm243, %v242, 0
      %vm247 = vcmask 1046528
      %v249 = vsel %vm247, %v203, 0
      %251 = vmatpush.msra.mxu0 0.0
      %252 = vmatpush.msra.mxu0 0.0
      %253 = vmatpush.msra.mxu0 0.0
      %254 = vmatpush.msra.mxu0 0.0
      %255 = vmatpush.msra.mxu0 0.0
      %256 = vmatpush.msra.mxu0 0.0
      %257 = vmatpush.msra.mxu0 0.0
      %258 = vmatpush.msra.mxu0 0.0
      %259 = vmatpush.msra.mxu0 0.0
      %260 = vmatpush.msra.mxu0 0.0
      %261 = vmatpush.msra.mxu0 0.0
      %262 = vmatpush.msra.mxu0 0.0
      %263 = vmatpush.msra.mxu0 0.0
      %264 = vmatpush.msra.mxu0 0.0
      %265 = vmatpush.msra.mxu0 0.0
      %266 = vmatpush.msra.mxu0 %v249
      %267 = vmatmul.f32.gmra.mxu0 %v245
      %v268 = vpop.f32.mrf.mxu0
      %v269 = vadd.f32 0.0, %v268
      %270 = vdwg.mxu0
      %271 = vrot.lane.b32.xlu0 %v201, 64
      %v272 = vpop.permute.xlu0 %271
      %273 = vrot.lane.b32.xlu0 %v202, 64
      %v274 = vpop.permute.xlu0 %273
      %v275 = vsel %vm204, %v272, 0
      %v277 = vsel %vm204, %v274, 0
      %279 = vmatpush.xpose.msra.mxu0 0.0
      %280 = vmatpush.xpose.msra.mxu0 0.0
      %281 = vmatpush.xpose.msra.mxu0 0.0
      %282 = vmatpush.xpose.msra.mxu0 0.0
      %283 = vmatpush.xpose.msra.mxu0 0.0
      %284 = vmatpush.xpose.msra.mxu0 0.0
      %285 = vmatpush.xpose.msra.mxu0 0.0
      %286 = vmatpush.xpose.msra.mxu0 0.0
      %287 = vmatpush.xpose.msra.mxu0 0.0
      %288 = vmatpush.xpose.msra.mxu0 0.0
      %289 = vmatpush.xpose.msra.mxu0 0.0
      %290 = vmatpush.xpose.msra.mxu0 0.0
      %291 = vmatpush.xpose.msra.mxu0 0.0
      %292 = vmatpush.xpose.msra.mxu0 0.0
      %293 = vmatpush.xpose.msra.mxu0 0.0
      %294 = vmatpush.xpose.msra.mxu0 %v277
      %295 = vmatmul.f32.gmra.mxu0 %v275
      %v296 = vpop.f32.mrf.mxu0
      %v297 = vadd.f32 0.0, %v296
      %298 = vdwg.mxu0
      %v299 = vsel %vm231, %v297, -inf
      %300 = vmax.xlane.f32.xlu0 %v299
      %v301 = vpop.xlane.xlu0 %300
      %v302 = vsub.f32 %v297, %v301
      %v303 = vmul.f32 %v302, 1.442695
      %v304 = vpow.pop %v303
      %v305 = vsel %vm231, %v304, 0.0
      %306 = vadd.xlane.f32.xlu0 %v305
      %v307 = vpop.xlane.xlu0 %306
      %v308 = vrcp.pop %v307
      %v309 = vmul.f32 %v304, %v308
      %310 = vrot.lane.b32.xlu0 %v203, 64
      %v311 = vpop.permute.xlu0 %310
      %v313 = vsel %vm243, %v309, 0
      %v315 = vsel %vm247, %v311, 0
      %317 = vmatpush.msra.mxu0 0.0
      %318 = vmatpush.msra.mxu0 0.0
      %319 = vmatpush.msra.mxu0 0.0
      %320 = vmatpush.msra.mxu0 0.0
      %321 = vmatpush.msra.mxu0 0.0
      %322 = vmatpush.msra.mxu0 0.0
      %323 = vmatpush.msra.mxu0 0.0
      %324 = vmatpush.msra.mxu0 0.0
      %325 = vmatpush.msra.mxu0 0.0
      %326 = vmatpush.msra.mxu0 0.0
      %327 = vmatpush.msra.mxu0 0.0
      %328 = vmatpush.msra.mxu0 0.0
      %329 = vmatpush.msra.mxu0 0.0
      %330 = vmatpush.msra.mxu0 0.0
      %331 = vmatpush.msra.mxu0 0.0
      %332 = vmatpush.msra.mxu0 %v315
      %333 = vmatmul.f32.gmra.mxu0 %v313
      %v334 = vpop.f32.mrf.mxu0
      %v335 = vadd.f32 0.0, %v334
      %336 = vdwg.mxu0
      %338 = vrot.lane.b32.xlu0 %v335, 64
      %v339 = vpop.permute.xlu0 %338
      %v341 = vsel %vm204, %v269, %v339
      %342 = vst [vmem:[%s199] sm:$0x7f] %v341
      %p343 = scmp.lt.s32.totalorder %s14, 1
      %s344 = scalar_select %p343, %s14, 1
      %s345 = smul.addr %s344, 8
      %s346 = scalar_lea.vmem %s3, %s345
      // Predicated region
      $region33: #{audio_transformer_fwd.19} parent=31 // pred_check
        %p347 = pneg %p110
      $region34: #{audio_transformer_fwd.19} parent=31 // pred_check_branch
        %349 = sbr.rel (%p347) target = $region36
      $region35: #{audio_transformer_fwd.19} parent=31 // pred_region
        _
      $region36: #{audio_transformer_fwd.19} parent=31 // pred_fallthru
        _
    $region32: #{audio_transformer_fwd.19} parent=5 // pred_fallthru
      _
    %p350 = scmp.le.s32.totalorder 2, %s9
    // Predicated region
    $region37: #{audio_transformer_fwd.19} parent=5 // pred_check
      %p351 = pneg %p350
    $region38: #{audio_transformer_fwd.19} parent=5 // pred_check_branch
      %353 = sbr.rel (%p351) target = $region40
    $region39: #{audio_transformer_fwd.19} parent=5 // pred_region
      %s354 = ssub.s32 %s9, 2
      // Predicated region
      $region41: #{audio_transformer_fwd.19} parent=39 // pred_check
        %p355 = pneg %p116
      $region42: #{audio_transformer_fwd.19} parent=39 // pred_check_branch
        %357 = sbr.rel (%p355) target = $region44
      $region43: #{audio_transformer_fwd.19} parent=39 // pred_region
        %p358 = scmp.lt.s32.totalorder %s15, 1
        %s359 = scalar_select %p358, %s15, 1
        %s360 = smul.addr %s359, 8
        %s361 = scalar_lea.vmem %s3, %s360
      $region44: #{audio_transformer_fwd.19} parent=39 // pred_fallthru
        _
    $region40: #{audio_transformer_fwd.19} parent=5 // pred_fallthru
      _
  $region6: #{audio_transformer_fwd.19} parent=0 // loop_footer
    %s13 = sadd.s32 1, %s9
  $region7: #{audio_transformer_fwd.19} parent=0 // loop_footer_branch
    %8 = sbr.rel target = $region3
  $region8: #{audio_transformer_fwd.19} parent=0 // loop_exit
    _

// kernel: audio_transformer_fwd.20
$region0: #{audio_transformer_fwd.20}
  #allocation0 [shape = 'u32[]', space=smem, size = 0x4, offset = 0x4, fixed_abs, tag = 'smem constant byte address 0x4 - core index']
  #allocation1 [shape = 'u32[72,128]{1,0:T(1,128)}', space=vmem, size = 0x9000, scoped, tag = 'internal scratch']
  #allocation2 [shape = 'f32[14,128]{1,0:T(8,128)}', space=vmem, size = 0x2000, scoped, tag = 'scratch operand']
  %s0 = inlined_call_operand.vmem [shape: f32[14,128], index: 0, kind: input, shape index: {}]
  %s1 = inlined_call_operand.vmem [shape: f32[128,128], index: 1, kind: input, shape index: {}]
  %s2 = inlined_call_operand.vmem [shape: f32[14,128], index: 2, kind: input, shape index: {}]
  %s3 = inlined_call_operand.vmem [shape: f32[14,128], index: 3, kind: output, shape index: {}]
  %s4 = sld [smem:[#allocation0]]
  $region30: #{audio_transformer_fwd.20} parent=0
    _
  %s6 = ssub.s32 1, %s4
  %s7 = scalar_select 0, %s6, %s4
  // Predicated region
  $region2: #{audio_transformer_fwd.20} parent=0 // pred_check
    _
  $region3: #{audio_transformer_fwd.20} parent=0 // pred_check_branch
    %9 = sbr.rel (0) target = $region5
  $region4: #{audio_transformer_fwd.20} parent=0 // pred_region
    _
  $region5: #{audio_transformer_fwd.20} parent=0 // pred_fallthru
    _
  // Predicated region
  $region6: #{audio_transformer_fwd.20} parent=0 // pred_check
    _
  $region7: #{audio_transformer_fwd.20} parent=0 // pred_check_branch
    %11 = sbr.rel (0) target = $region9
  $region8: #{audio_transformer_fwd.20} parent=0 // pred_region
    _
  $region9: #{audio_transformer_fwd.20} parent=0 // pred_fallthru
    _
  // Predicated region
  $region10: #{audio_transformer_fwd.20} parent=0 // pred_check
    _
  $region11: #{audio_transformer_fwd.20} parent=0 // pred_check_branch
    %13 = sbr.rel (0) target = $region13
  $region12: #{audio_transformer_fwd.20} parent=0 // pred_region
    _
  $region13: #{audio_transformer_fwd.20} parent=0 // pred_fallthru
    _
  %p14 = scmp.eq.s32.totalorder 0, 0
  // Predicated region
  $region14: #{audio_transformer_fwd.20} parent=0 // pred_check
    %p15 = pneg %p14
  $region15: #{audio_transformer_fwd.20} parent=0 // pred_check_branch
    %17 = sbr.rel (%p15) target = $region17
  $region16: #{audio_transformer_fwd.20} parent=0 // pred_region
    %18 = vst [vmem:[#allocation2] sm:$0xff] 0.0
    %19 = vst [vmem:[#allocation2 + $0x8] sm:$0x3f] 0.0
  $region17: #{audio_transformer_fwd.20} parent=0 // pred_fallthru
    _
  %v20 = vld [vmem:[#allocation2] sm:$0xff]
  %v21 = vld [vmem:[#allocation2 + $0x8] sm:$0x3f]
  %v22 = vld [vmem:[%s0] sm:$0xff]
  %v23 = vld [vmem:[%s0 + $0x8] sm:$0x3f]
  %v24 = vld [vmem:[%s1] sm:$0xff]
  %v25 = vld [vmem:[%s1 + $0x8] sm:$0xff]
  %v26 = vld [vmem:[%s1 + $0x10] sm:$0xff]
  %v27 = vld [vmem:[%s1 + $0x18] sm:$0xff]
  %v28 = vld [vmem:[%s1 + $0x20] sm:$0xff]
  %v29 = vld [vmem:[%s1 + $0x28] sm:$0xff]
  %v30 = vld [vmem:[%s1 + $0x30] sm:$0xff]
  %v31 = vld [vmem:[%s1 + $0x38] sm:$0xff]
  %v32 = vld [vmem:[%s1 + $0x40] sm:$0xff]
  %v33 = vld [vmem:[%s1 + $0x48] sm:$0xff]
  %v34 = vld [vmem:[%s1 + $0x50] sm:$0xff]
  %v35 = vld [vmem:[%s1 + $0x58] sm:$0xff]
  %v36 = vld [vmem:[%s1 + $0x60] sm:$0xff]
  %v37 = vld [vmem:[%s1 + $0x68] sm:$0xff]
  %v38 = vld [vmem:[%s1 + $0x70] sm:$0xff]
  %v39 = vld [vmem:[%s1 + $0x78] sm:$0xff]
  %40 = vmatpush.msra.mxu0 %v39
  %41 = vmatpush.msra.mxu0 %v38
  %42 = vmatpush.msra.mxu0 %v37
  %43 = vmatpush.msra.mxu0 %v36
  %44 = vmatpush.msra.mxu0 %v35
  %45 = vmatpush.msra.mxu0 %v34
  %46 = vmatpush.msra.mxu0 %v33
  %47 = vmatpush.msra.mxu0 %v32
  %48 = vmatpush.msra.mxu0 %v31
  %49 = vmatpush.msra.mxu0 %v30
  %50 = vmatpush.msra.mxu0 %v29
  %51 = vmatpush.msra.mxu0 %v28
  %52 = vmatpush.msra.mxu0 %v27
  %53 = vmatpush.msra.mxu0 %v26
  %54 = vmatpush.msra.mxu0 %v25
  %55 = vmatpush.msra.mxu0 %v24
  %56 = vmatmul.f32.gmra.mxu0 %v22
  %v57 = vpop.f32.mrf.mxu0
  %v58 = vadd.f32 0.0, %v57
  %59 = vmatmul.f32.gmra.mxu0 %v23
  %v60 = vpop.f32.mrf.mxu0
  %v61 = vadd.f32 0.0, %v60
  %62 = vdwg.mxu0
  %v63 = vadd.f32 %v20, %v58
  %v64 = vadd.f32 %v21, %v61
  %65 = vst [vmem:[#allocation2] sm:$0xff] %v63
  %66 = vst [vmem:[#allocation2 + $0x8] sm:$0x3f] %v64
  // Predicated region
  $region18: #{audio_transformer_fwd.20} parent=0 // pred_check
    %p67 = pneg %p14
  $region19: #{audio_transformer_fwd.20} parent=0 // pred_check_branch
    %69 = sbr.rel (%p67) target = $region21
  $region20: #{audio_transformer_fwd.20} parent=0 // pred_region
    %v70 = vld [vmem:[#allocation2] sm:$0xff]
    %v71 = vld [vmem:[#allocation2 + $0x8] sm:$0x3f]
    %v72 = vld [vmem:[%s2] sm:$0xff]
    %v73 = vld [vmem:[%s2 + $0x8] sm:$0x3f]
    %v74 = vadd.f32 %v70, %v72
    %v75 = vadd.f32 %v71, %v73
    %76 = vst [vmem:[%s3] sm:$0xff] %v74
    %77 = vst [vmem:[%s3 + $0x8] sm:$0x3f] %v75
  $region21: #{audio_transformer_fwd.20} parent=0 // pred_fallthru
    _
  // Predicated region
  $region22: #{audio_transformer_fwd.20} parent=0 // pred_check
    _
  $region23: #{audio_transformer_fwd.20} parent=0 // pred_check_branch
    %79 = sbr.rel (0) target = $region25
  $region24: #{audio_transformer_fwd.20} parent=0 // pred_region
    _
  $region25: #{audio_transformer_fwd.20} parent=0 // pred_fallthru
    _
  // Predicated region
  $region26: #{audio_transformer_fwd.20} parent=0 // pred_check
    _
  $region27: #{audio_transformer_fwd.20} parent=0 // pred_check_branch
    %81 = sbr.rel (0) target = $region29
  $region28: #{audio_transformer_fwd.20} parent=0 // pred_region
    _
  $region29: #{audio_transformer_fwd.20} parent=0 // pred_fallthru
    _

// kernel: audio_transformer_fwd.22
$region0: #{audio_transformer_fwd.22}
  #allocation0 [shape = 'u32[]', space=smem, size = 0x4, offset = 0x4, fixed_abs, tag = 'smem constant byte address 0x4 - core index']
  #allocation1 [shape = 'u32[72,128]{1,0:T(1,128)}', space=vmem, size = 0x9000, scoped, tag = 'internal scratch']
  #allocation2 [shape = 'f32[14,128]{1,0:T(8,128)}', space=vmem, size = 0x2000, scoped, tag = 'scratch operand']
  %s0 = inlined_call_operand.vmem [shape: f32[14,128], index: 0, kind: input, shape index: {}]
  %s1 = inlined_call_operand.vmem [shape: f32[1,128], index: 1, kind: input, shape index: {}]
  %s2 = inlined_call_operand.vmem [shape: f32[1,128], index: 2, kind: input, shape index: {}]
  %s3 = inlined_call_operand.vmem [shape: f32[128,384], index: 3, kind: input, shape index: {}]
  %s4 = inlined_call_operand.vmem [shape: f32[1,384], index: 4, kind: input, shape index: {}]
  %s5 = inlined_call_operand.vmem [shape: f32[14,384], index: 5, kind: output, shape index: {}]
  %s6 = sld [smem:[#allocation0]]
  $region34: #{audio_transformer_fwd.22} parent=0
    _
  %s8 = ssub.s32 1, %s6
  %s9 = scalar_select 0, %s8, %s6
  // Predicated region
  $region2: #{audio_transformer_fwd.22} parent=0 // pred_check
    _
  $region3: #{audio_transformer_fwd.22} parent=0 // pred_check_branch
    %11 = sbr.rel (0) target = $region5
  $region4: #{audio_transformer_fwd.22} parent=0 // pred_region
    _
  $region5: #{audio_transformer_fwd.22} parent=0 // pred_fallthru
    _
  // Predicated region
  $region6: #{audio_transformer_fwd.22} parent=0 // pred_check
    _
  $region7: #{audio_transformer_fwd.22} parent=0 // pred_check_branch
    %13 = sbr.rel (0) target = $region9
  $region8: #{audio_transformer_fwd.22} parent=0 // pred_region
    _
  $region9: #{audio_transformer_fwd.22} parent=0 // pred_fallthru
    _
  // Predicated region
  $region10: #{audio_transformer_fwd.22} parent=0 // pred_check
    _
  $region11: #{audio_transformer_fwd.22} parent=0 // pred_check_branch
    %15 = sbr.rel (0) target = $region13
  $region12: #{audio_transformer_fwd.22} parent=0 // pred_region
    _
  $region13: #{audio_transformer_fwd.22} parent=0 // pred_fallthru
    _
  // Predicated region
  $region14: #{audio_transformer_fwd.22} parent=0 // pred_check
    _
  $region15: #{audio_transformer_fwd.22} parent=0 // pred_check_branch
    %17 = sbr.rel (0) target = $region17
  $region16: #{audio_transformer_fwd.22} parent=0 // pred_region
    _
  $region17: #{audio_transformer_fwd.22} parent=0 // pred_fallthru
    _
  // Predicated region
  $region18: #{audio_transformer_fwd.22} parent=0 // pred_check
    _
  $region19: #{audio_transformer_fwd.22} parent=0 // pred_check_branch
    %19 = sbr.rel (0) target = $region21
  $region20: #{audio_transformer_fwd.22} parent=0 // pred_region
    _
  $region21: #{audio_transformer_fwd.22} parent=0 // pred_fallthru
    _
  %p20 = scmp.eq.s32.totalorder 0, 0
  // Predicated region
  $region22: #{audio_transformer_fwd.22} parent=0 // pred_check
    %p21 = pneg %p20
  $region23: #{audio_transformer_fwd.22} parent=0 // pred_check_branch
    %23 = sbr.rel (%p21) target = $region25
  $region24: #{audio_transformer_fwd.22} parent=0 // pred_region
    %v24 = vld [vmem:[%s0] sm:$0xff]
    %v25 = vld [vmem:[%s0 + $0x8] sm:$0x3f]
    %26 = vadd.xlane.f32.xlu0 %v24
    %v27 = vpop.xlane.xlu0 %26
    %vm28 = vcmask 1045504
    %v29 = vsel %vm28, %v25, 0.0
    %30 = vadd.xlane.f32.xlu0 %v29
    %v31 = vpop.xlane.xlu0 %30
    %v32 = vrcp.pop 128.0
    %v33 = vmul.f32 128.0, %v32
    %v34 = vsub.f32 1.0, %v33
    %v35 = vmul.f32 %v32, %v34
    %v36 = vadd.f32 %v32, %v35
    %vm37 = vweird.f32 %v32
    %v38 = vsel %vm37, %v32, %v36
    %v39 = vmul.f32 %v27, %v38
    %v40 = vmul.f32 %v31, %v38
    %v41 = vsub.f32 %v24, %v39
    %v42 = vsub.f32 %v25, %v40
    %v43 = vmul.f32 %v41, %v41
    %v44 = vmul.f32 %v42, %v42
    %45 = vadd.xlane.f32.xlu0 %v43
    %v46 = vpop.xlane.xlu0 %45
    %v47 = vsel %vm28, %v44, 0.0
    %48 = vadd.xlane.f32.xlu0 %v47
    %v49 = vpop.xlane.xlu0 %48
    %v50 = vmul.f32 %v46, %v38
    %v51 = vmul.f32 %v49, %v38
    %v52 = vadd.f32 %v50, 1e-05
    %v53 = vadd.f32 %v51, 1e-05
    %v54 = vrsqrt.pop %v52
    %v55 = vmul.f32 %v54, %v52
    %v56 = vmul.f32 %v55, %v54
    %v57 = vmul.f32 0.5, %v56
    %v58 = vsub.f32 1.5, %v57
    %v59 = vmul.f32 %v54, %v58
    %vm60 = vweird.f32 %v52
    %vm61 = vweird.f32 %v54
    %vm62 = vmor %vm60, %vm61
    %v63 = vsel %vm62, %v54, %v59
    %v64 = vrsqrt.pop %v53
    %v65 = vmul.f32 %v64, %v53
    %v66 = vmul.f32 %v65, %v64
    %v67 = vmul.f32 0.5, %v66
    %v68 = vsub.f32 1.5, %v67
    %v69 = vmul.f32 %v64, %v68
    %vm70 = vweird.f32 %v53
    %vm71 = vweird.f32 %v64
    %vm72 = vmor %vm70, %vm71
    %v73 = vsel %vm72, %v64, %v69
    %v74 = vmul.f32 %v41, %v63
    %v75 = vmul.f32 %v42, %v73
    %v76 = vld [vmem:[%s1] sm:$0x1]
    %v78 = vperm.slane %v76, 0
    %v80 = vmul.f32 %v74, %v78
    %v81 = vmul.f32 %v75, %v78
    %v82 = vld [vmem:[%s2] sm:$0x1]
    %v84 = vperm.slane %v82, 0
    %v86 = vadd.f32 %v80, %v84
    %v87 = vadd.f32 %v81, %v84
    %88 = vst [vmem:[#allocation2] sm:$0xff] %v86
    %89 = vst [vmem:[#allocation2 + $0x8] sm:$0x3f] %v87
  $region25: #{audio_transformer_fwd.22} parent=0 // pred_fallthru
    _
  %v90 = vld [vmem:[#allocation2] sm:$0xff]
  %v91 = vld [vmem:[#allocation2 + $0x8] sm:$0x3f]
  %v92 = vld [vmem:[%s3] sm:$0xff]
  %v93 = vld [vmem:[%s3 + $0x8] sm:$0xff]
  %v94 = vld [vmem:[%s3 + $0x10] sm:$0xff]
  %v95 = vld [vmem:[%s3 + $0x18] sm:$0xff]
  %v96 = vld [vmem:[%s3 + $0x20] sm:$0xff]
  %v97 = vld [vmem:[%s3 + $0x28] sm:$0xff]
  %v98 = vld [vmem:[%s3 + $0x30] sm:$0xff]
  %v99 = vld [vmem:[%s3 + $0x38] sm:$0xff]
  %v100 = vld [vmem:[%s3 + $0x40] sm:$0xff]
  %v101 = vld [vmem:[%s3 + $0x48] sm:$0xff]
  %v102 = vld [vmem:[%s3 + $0x50] sm:$0xff]
  %v103 = vld [vmem:[%s3 + $0x58] sm:$0xff]
  %v104 = vld [vmem:[%s3 + $0x60] sm:$0xff]
  %v105 = vld [vmem:[%s3 + $0x68] sm:$0xff]
  %v106 = vld [vmem:[%s3 + $0x70] sm:$0xff]
  %v107 = vld [vmem:[%s3 + $0x78] sm:$0xff]
  %v108 = vld [vmem:[%s3 + $0x80] sm:$0xff]
  %v109 = vld [vmem:[%s3 + $0x88] sm:$0xff]
  %v110 = vld [vmem:[%s3 + $0x90] sm:$0xff]
  %v111 = vld [vmem:[%s3 + $0x98] sm:$0xff]
  %v112 = vld [vmem:[%s3 + $0xa0] sm:$0xff]
  %v113 = vld [vmem:[%s3 + $0xa8] sm:$0xff]
  %v114 = vld [vmem:[%s3 + $0xb0] sm:$0xff]
  %v115 = vld [vmem:[%s3 + $0xb8] sm:$0xff]
  %v116 = vld [vmem:[%s3 + $0xc0] sm:$0xff]
  %v117 = vld [vmem:[%s3 + $0xc8] sm:$0xff]
  %v118 = vld [vmem:[%s3 + $0xd0] sm:$0xff]
  %v119 = vld [vmem:[%s3 + $0xd8] sm:$0xff]
  %v120 = vld [vmem:[%s3 + $0xe0] sm:$0xff]
  %v121 = vld [vmem:[%s3 + $0xe8] sm:$0xff]
  %v122 = vld [vmem:[%s3 + $0xf0] sm:$0xff]
  %v123 = vld [vmem:[%s3 + $0xf8] sm:$0xff]
  %v124 = vld [vmem:[%s3 + $0x100] sm:$0xff]
  %v125 = vld [vmem:[%s3 + $0x108] sm:$0xff]
  %v126 = vld [vmem:[%s3 + $0x110] sm:$0xff]
  %v127 = vld [vmem:[%s3 + $0x118] sm:$0xff]
  %v128 = vld [vmem:[%s3 + $0x120] sm:$0xff]
  %v129 = vld [vmem:[%s3 + $0x128] sm:$0xff]
  %v130 = vld [vmem:[%s3 + $0x130] sm:$0xff]
  %v131 = vld [vmem:[%s3 + $0x138] sm:$0xff]
  %v132 = vld [vmem:[%s3 + $0x140] sm:$0xff]
  %v133 = vld [vmem:[%s3 + $0x148] sm:$0xff]
  %v134 = vld [vmem:[%s3 + $0x150] sm:$0xff]
  %v135 = vld [vmem:[%s3 + $0x158] sm:$0xff]
  %v136 = vld [vmem:[%s3 + $0x160] sm:$0xff]
  %v137 = vld [vmem:[%s3 + $0x168] sm:$0xff]
  %v138 = vld [vmem:[%s3 + $0x170] sm:$0xff]
  %v139 = vld [vmem:[%s3 + $0x178] sm:$0xff]
  %v140 = vld [vmem:[%s4] sm:$0x7]
  %v142 = vperm.slane %v140, 0
  %v143 = vperm.slane %v140, 1
  %v144 = vperm.slane %v140, 2
  %148 = vmatpush.msra.mxu0 %v137
  %149 = vmatpush.msra.mxu0 %v134
  %150 = vmatpush.msra.mxu0 %v131
  %151 = vmatpush.msra.mxu0 %v128
  %152 = vmatpush.msra.mxu0 %v125
  %153 = vmatpush.msra.mxu0 %v122
  %154 = vmatpush.msra.mxu0 %v119
  %155 = vmatpush.msra.mxu0 %v116
  %156 = vmatpush.msra.mxu0 %v113
  %157 = vmatpush.msra.mxu0 %v110
  %158 = vmatpush.msra.mxu0 %v107
  %159 = vmatpush.msra.mxu0 %v104
  %160 = vmatpush.msra.mxu0 %v101
  %161 = vmatpush.msra.mxu0 %v98
  %162 = vmatpush.msra.mxu0 %v95
  %163 = vmatpush.msra.mxu0 %v92
  %164 = vmatmul.f32.gmra.mxu0 %v90
  %v165 = vpop.f32.mrf.mxu0
  %v166 = vadd.f32 %v142, %v165
  %167 = vmatmul.f32.gmra.mxu0 %v91
  %v168 = vpop.f32.mrf.mxu0
  %v169 = vadd.f32 %v142, %v168
  %170 = vdwg.mxu0
  %171 = vmatpush.msra.mxu0 %v138
  %172 = vmatpush.msra.mxu0 %v135
  %173 = vmatpush.msra.mxu0 %v132
  %174 = vmatpush.msra.mxu0 %v129
  %175 = vmatpush.msra.mxu0 %v126
  %176 = vmatpush.msra.mxu0 %v123
  %177 = vmatpush.msra.mxu0 %v120
  %178 = vmatpush.msra.mxu0 %v117
  %179 = vmatpush.msra.mxu0 %v114
  %180 = vmatpush.msra.mxu0 %v111
  %181 = vmatpush.msra.mxu0 %v108
  %182 = vmatpush.msra.mxu0 %v105
  %183 = vmatpush.msra.mxu0 %v102
  %184 = vmatpush.msra.mxu0 %v99
  %185 = vmatpush.msra.mxu0 %v96
  %186 = vmatpush.msra.mxu0 %v93
  %187 = vmatmul.f32.gmra.mxu0 %v90
  %v188 = vpop.f32.mrf.mxu0
  %v189 = vadd.f32 %v143, %v188
  %190 = vmatmul.f32.gmra.mxu0 %v91
  %v191 = vpop.f32.mrf.mxu0
  %v192 = vadd.f32 %v143, %v191
  %193 = vdwg.mxu0
  %194 = vmatpush.msra.mxu0 %v139
  %195 = vmatpush.msra.mxu0 %v136
  %196 = vmatpush.msra.mxu0 %v133
  %197 = vmatpush.msra.mxu0 %v130
  %198 = vmatpush.msra.mxu0 %v127
  %199 = vmatpush.msra.mxu0 %v124
  %200 = vmatpush.msra.mxu0 %v121
  %201 = vmatpush.msra.mxu0 %v118
  %202 = vmatpush.msra.mxu0 %v115
  %203 = vmatpush.msra.mxu0 %v112
  %204 = vmatpush.msra.mxu0 %v109
  %205 = vmatpush.msra.mxu0 %v106
  %206 = vmatpush.msra.mxu0 %v103
  %207 = vmatpush.msra.mxu0 %v100
  %208 = vmatpush.msra.mxu0 %v97
  %209 = vmatpush.msra.mxu0 %v94
  %210 = vmatmul.f32.gmra.mxu0 %v90
  %v211 = vpop.f32.mrf.mxu0
  %v212 = vadd.f32 %v144, %v211
  %213 = vmatmul.f32.gmra.mxu0 %v91
  %v214 = vpop.f32.mrf.mxu0
  %v215 = vadd.f32 %v144, %v214
  %216 = vdwg.mxu0
  %217 = vst [vmem:[%s5] sm:$0xff] %v166
  %218 = vst [vmem:[%s5 + $0x8] sm:$0xff] %v189
  %219 = vst [vmem:[%s5 + $0x10] sm:$0xff] %v212
  %220 = vst [vmem:[%s5 + $0x18] sm:$0x3f] %v169
  %221 = vst [vmem:[%s5 + $0x20] sm:$0x3f] %v192
  %222 = vst [vmem:[%s5 + $0x28] sm:$0x3f] %v215
  // Predicated region
  $region26: #{audio_transformer_fwd.22} parent=0 // pred_check
    _
  $region27: #{audio_transformer_fwd.22} parent=0 // pred_check_branch
    %224 = sbr.rel (0) target = $region29
  $region28: #{audio_transformer_fwd.22} parent=0 // pred_region
    _
  $region29: #{audio_transformer_fwd.22} parent=0 // pred_fallthru
    _
  // Predicated region
  $region30: #{audio_transformer_fwd.22} parent=0 // pred_check
    _
  $region31: #{audio_transformer_fwd.22} parent=0 // pred_check_branch
    %226 = sbr.rel (0) target = $region33
  $region32: #{audio_transformer_fwd.22} parent=0 // pred_region
    _
  $region33: #{audio_transformer_fwd.22} parent=0 // pred_fallthru
    _

// kernel: audio_transformer_fwd.21
$region0: #{audio_transformer_fwd.21}
  #allocation0 [shape = 'u32[]', space=smem, size = 0x4, offset = 0x4, fixed_abs, tag = 'smem constant byte address 0x4 - core index']
  #allocation1 [shape = 'u32[72,128]{1,0:T(1,128)}', space=vmem, size = 0x9000, scoped, tag = 'internal scratch']
  #allocation2 [shape = 'f32[14,128]{1,0:T(8,128)}', space=vmem, size = 0x2000, scoped, tag = 'scratch operand']
  #allocation3 [shape = 'f32[14,128]{1,0:T(8,128)}', space=vmem, size = 0x2000, scoped, tag = 'scratch operand']
  %s0 = inlined_call_operand.vmem [shape: f32[14,128], index: 0, kind: input, shape index: {}]
  %s1 = inlined_call_operand.vmem [shape: f32[1,128], index: 1, kind: input, shape index: {}]
  %s2 = inlined_call_operand.vmem [shape: f32[1,128], index: 2, kind: input, shape index: {}]
  %s3 = inlined_call_operand.vmem [shape: f32[128,512], index: 3, kind: input, shape index: {}]
  %s4 = inlined_call_operand.vmem [shape: f32[1,512], index: 4, kind: input, shape index: {}]
  %s5 = inlined_call_operand.vmem [shape: f32[512,128], index: 5, kind: input, shape index: {}]
  %s6 = inlined_call_operand.vmem [shape: f32[14,128], index: 6, kind: output, shape index: {}]
  %s7 = sld [smem:[#allocation0]]
  $region42: #{audio_transformer_fwd.21} parent=0
    _
  %s9 = ssub.s32 1, %s7
  %s10 = scalar_select 0, %s9, %s7
  // Predicated region
  $region2: #{audio_transformer_fwd.21} parent=0 // pred_check
    _
  $region3: #{audio_transformer_fwd.21} parent=0 // pred_check_branch
    %12 = sbr.rel (0) target = $region5
  $region4: #{audio_transformer_fwd.21} parent=0 // pred_region
    _
  $region5: #{audio_transformer_fwd.21} parent=0 // pred_fallthru
    _
  // Predicated region
  $region6: #{audio_transformer_fwd.21} parent=0 // pred_check
    _
  $region7: #{audio_transformer_fwd.21} parent=0 // pred_check_branch
    %14 = sbr.rel (0) target = $region9
  $region8: #{audio_transformer_fwd.21} parent=0 // pred_region
    _
  $region9: #{audio_transformer_fwd.21} parent=0 // pred_fallthru
    _
  // Predicated region
  $region10: #{audio_transformer_fwd.21} parent=0 // pred_check
    _
  $region11: #{audio_transformer_fwd.21} parent=0 // pred_check_branch
    %16 = sbr.rel (0) target = $region13
  $region12: #{audio_transformer_fwd.21} parent=0 // pred_region
    _
  $region13: #{audio_transformer_fwd.21} parent=0 // pred_fallthru
    _
  // Predicated region
  $region14: #{audio_transformer_fwd.21} parent=0 // pred_check
    _
  $region15: #{audio_transformer_fwd.21} parent=0 // pred_check_branch
    %18 = sbr.rel (0) target = $region17
  $region16: #{audio_transformer_fwd.21} parent=0 // pred_region
    _
  $region17: #{audio_transformer_fwd.21} parent=0 // pred_fallthru
    _
  // Predicated region
  $region18: #{audio_transformer_fwd.21} parent=0 // pred_check
    _
  $region19: #{audio_transformer_fwd.21} parent=0 // pred_check_branch
    %20 = sbr.rel (0) target = $region21
  $region20: #{audio_transformer_fwd.21} parent=0 // pred_region
    _
  $region21: #{audio_transformer_fwd.21} parent=0 // pred_fallthru
    _
  // Predicated region
  $region22: #{audio_transformer_fwd.21} parent=0 // pred_check
    _
  $region23: #{audio_transformer_fwd.21} parent=0 // pred_check_branch
    %22 = sbr.rel (0) target = $region25
  $region24: #{audio_transformer_fwd.21} parent=0 // pred_region
    _
  $region25: #{audio_transformer_fwd.21} parent=0 // pred_fallthru
    _
  %p23 = scmp.eq.s32.totalorder 0, 0
  // Predicated region
  $region26: #{audio_transformer_fwd.21} parent=0 // pred_check
    %p24 = pneg %p23
  $region27: #{audio_transformer_fwd.21} parent=0 // pred_check_branch
    %26 = sbr.rel (%p24) target = $region29
  $region28: #{audio_transformer_fwd.21} parent=0 // pred_region
    %v27 = vld [vmem:[%s0] sm:$0xff]
    %v28 = vld [vmem:[%s0 + $0x8] sm:$0x3f]
    %29 = vadd.xlane.f32.xlu0 %v27
    %v30 = vpop.xlane.xlu0 %29
    %vm31 = vcmask 1045504
    %v32 = vsel %vm31, %v28, 0.0
    %33 = vadd.xlane.f32.xlu0 %v32
    %v34 = vpop.xlane.xlu0 %33
    %v35 = vrcp.pop 128.0
    %v36 = vmul.f32 128.0, %v35
    %v37 = vsub.f32 1.0, %v36
    %v38 = vmul.f32 %v35, %v37
    %v39 = vadd.f32 %v35, %v38
    %vm40 = vweird.f32 %v35
    %v41 = vsel %vm40, %v35, %v39
    %v42 = vmul.f32 %v30, %v41
    %v43 = vmul.f32 %v34, %v41
    %v44 = vsub.f32 %v27, %v42
    %v45 = vsub.f32 %v28, %v43
    %v46 = vmul.f32 %v44, %v44
    %v47 = vmul.f32 %v45, %v45
    %48 = vadd.xlane.f32.xlu0 %v46
    %v49 = vpop.xlane.xlu0 %48
    %v50 = vsel %vm31, %v47, 0.0
    %51 = vadd.xlane.f32.xlu0 %v50
    %v52 = vpop.xlane.xlu0 %51
    %v53 = vmul.f32 %v49, %v41
    %v54 = vmul.f32 %v52, %v41
    %v55 = vadd.f32 %v53, 1e-05
    %v56 = vadd.f32 %v54, 1e-05
    %v57 = vrsqrt.pop %v55
    %v58 = vmul.f32 %v57, %v55
    %v59 = vmul.f32 %v58, %v57
    %v60 = vmul.f32 0.5, %v59
    %v61 = vsub.f32 1.5, %v60
    %v62 = vmul.f32 %v57, %v61
    %vm63 = vweird.f32 %v55
    %vm64 = vweird.f32 %v57
    %vm65 = vmor %vm63, %vm64
    %v66 = vsel %vm65, %v57, %v62
    %v67 = vrsqrt.pop %v56
    %v68 = vmul.f32 %v67, %v56
    %v69 = vmul.f32 %v68, %v67
    %v70 = vmul.f32 0.5, %v69
    %v71 = vsub.f32 1.5, %v70
    %v72 = vmul.f32 %v67, %v71
    %vm73 = vweird.f32 %v56
    %vm74 = vweird.f32 %v67
    %vm75 = vmor %vm73, %vm74
    %v76 = vsel %vm75, %v67, %v72
    %v77 = vmul.f32 %v44, %v66
    %v78 = vmul.f32 %v45, %v76
    %v79 = vld [vmem:[%s1] sm:$0x1]
    %v81 = vperm.slane %v79, 0
    %v83 = vmul.f32 %v77, %v81
    %v84 = vmul.f32 %v78, %v81
    %v85 = vld [vmem:[%s2] sm:$0x1]
    %v87 = vperm.slane %v85, 0
    %v89 = vadd.f32 %v83, %v87
    %v90 = vadd.f32 %v84, %v87
    %91 = vst [vmem:[#allocation2] sm:$0xff] %v89
    %92 = vst [vmem:[#allocation2 + $0x8] sm:$0x3f] %v90
    %93 = vst [vmem:[#allocation3] sm:$0xff] %v27
    %94 = vst [vmem:[#allocation3 + $0x8] sm:$0x3f] %v28
  $region29: #{audio_transformer_fwd.21} parent=0 // pred_fallthru
    _
  %v95 = vld [vmem:[#allocation2] sm:$0xff]
  %v96 = vld [vmem:[#allocation2 + $0x8] sm:$0x3f]
  %v97 = vld [vmem:[%s3] sm:$0xff]
  %v98 = vld [vmem:[%s3 + $0x8] sm:$0xff]
  %v99 = vld [vmem:[%s3 + $0x10] sm:$0xff]
  %v100 = vld [vmem:[%s3 + $0x18] sm:$0xff]
  %v101 = vld [vmem:[%s3 + $0x20] sm:$0xff]
  %v102 = vld [vmem:[%s3 + $0x28] sm:$0xff]
  %v103 = vld [vmem:[%s3 + $0x30] sm:$0xff]
  %v104 = vld [vmem:[%s3 + $0x38] sm:$0xff]
  %v105 = vld [vmem:[%s3 + $0x40] sm:$0xff]
  %v106 = vld [vmem:[%s3 + $0x48] sm:$0xff]
  %v107 = vld [vmem:[%s3 + $0x50] sm:$0xff]
  %v108 = vld [vmem:[%s3 + $0x58] sm:$0xff]
  %v109 = vld [vmem:[%s3 + $0x60] sm:$0xff]
  %v110 = vld [vmem:[%s3 + $0x68] sm:$0xff]
  %v111 = vld [vmem:[%s3 + $0x70] sm:$0xff]
  %v112 = vld [vmem:[%s3 + $0x78] sm:$0xff]
  %v113 = vld [vmem:[%s3 + $0x80] sm:$0xff]
  %v114 = vld [vmem:[%s3 + $0x88] sm:$0xff]
  %v115 = vld [vmem:[%s3 + $0x90] sm:$0xff]
  %v116 = vld [vmem:[%s3 + $0x98] sm:$0xff]
  %v117 = vld [vmem:[%s3 + $0xa0] sm:$0xff]
  %v118 = vld [vmem:[%s3 + $0xa8] sm:$0xff]
  %v119 = vld [vmem:[%s3 + $0xb0] sm:$0xff]
  %v120 = vld [vmem:[%s3 + $0xb8] sm:$0xff]
  %v121 = vld [vmem:[%s3 + $0xc0] sm:$0xff]
  %v122 = vld [vmem:[%s3 + $0xc8] sm:$0xff]
  %v123 = vld [vmem:[%s3 + $0xd0] sm:$0xff]
  %v124 = vld [vmem:[%s3 + $0xd8] sm:$0xff]
  %v125 = vld [vmem:[%s3 + $0xe0] sm:$0xff]
  %v126 = vld [vmem:[%s3 + $0xe8] sm:$0xff]
  %v127 = vld [vmem:[%s3 + $0xf0] sm:$0xff]
  %v128 = vld [vmem:[%s3 + $0xf8] sm:$0xff]
  %v129 = vld [vmem:[%s3 + $0x100] sm:$0xff]
  %v130 = vld [vmem:[%s3 + $0x108] sm:$0xff]
  %v131 = vld [vmem:[%s3 + $0x110] sm:$0xff]
  %v132 = vld [vmem:[%s3 + $0x118] sm:$0xff]
  %v133 = vld [vmem:[%s3 + $0x120] sm:$0xff]
  %v134 = vld [vmem:[%s3 + $0x128] sm:$0xff]
  %v135 = vld [vmem:[%s3 + $0x130] sm:$0xff]
  %v136 = vld [vmem:[%s3 + $0x138] sm:$0xff]
  %v137 = vld [vmem:[%s3 + $0x140] sm:$0xff]
  %v138 = vld [vmem:[%s3 + $0x148] sm:$0xff]
  %v139 = vld [vmem:[%s3 + $0x150] sm:$0xff]
  %v140 = vld [vmem:[%s3 + $0x158] sm:$0xff]
  %v141 = vld [vmem:[%s3 + $0x160] sm:$0xff]
  %v142 = vld [vmem:[%s3 + $0x168] sm:$0xff]
  %v143 = vld [vmem:[%s3 + $0x170] sm:$0xff]
  %v144 = vld [vmem:[%s3 + $0x178] sm:$0xff]
  %v145 = vld [vmem:[%s3 + $0x180] sm:$0xff]
  %v146 = vld [vmem:[%s3 + $0x188] sm:$0xff]
  %v147 = vld [vmem:[%s3 + $0x190] sm:$0xff]
  %v148 = vld [vmem:[%s3 + $0x198] sm:$0xff]
  %v149 = vld [vmem:[%s3 + $0x1a0] sm:$0xff]
  %v150 = vld [vmem:[%s3 + $0x1a8] sm:$0xff]
  %v151 = vld [vmem:[%s3 + $0x1b0] sm:$0xff]
  %v152 = vld [vmem:[%s3 + $0x1b8] sm:$0xff]
  %v153 = vld [vmem:[%s3 + $0x1c0] sm:$0xff]
  %v154 = vld [vmem:[%s3 + $0x1c8] sm:$0xff]
  %v155 = vld [vmem:[%s3 + $0x1d0] sm:$0xff]
  %v156 = vld [vmem:[%s3 + $0x1d8] sm:$0xff]
  %v157 = vld [vmem:[%s3 + $0x1e0] sm:$0xff]
  %v158 = vld [vmem:[%s3 + $0x1e8] sm:$0xff]
  %v159 = vld [vmem:[%s3 + $0x1f0] sm:$0xff]
  %v160 = vld [vmem:[%s3 + $0x1f8] sm:$0xff]
  %v161 = vld [vmem:[%s4] sm:$0xf]
  %v163 = vperm.slane %v161, 0
  %v164 = vperm.slane %v161, 1
  %v165 = vperm.slane %v161, 2
  %v166 = vperm.slane %v161, 3
  %171 = vmatpush.msra.mxu0 %v157
  %172 = vmatpush.msra.mxu0 %v153
  %173 = vmatpush.msra.mxu0 %v149
  %174 = vmatpush.msra.mxu0 %v145
  %175 = vmatpush.msra.mxu0 %v141
  %176 = vmatpush.msra.mxu0 %v137
  %177 = vmatpush.msra.mxu0 %v133
  %178 = vmatpush.msra.mxu0 %v129
  %179 = vmatpush.msra.mxu0 %v125
  %180 = vmatpush.msra.mxu0 %v121
  %181 = vmatpush.msra.mxu0 %v117
  %182 = vmatpush.msra.mxu0 %v113
  %183 = vmatpush.msra.mxu0 %v109
  %184 = vmatpush.msra.mxu0 %v105
  %185 = vmatpush.msra.mxu0 %v101
  %186 = vmatpush.msra.mxu0 %v97
  %187 = vmatmul.f32.gmra.mxu0 %v95
  %v188 = vpop.f32.mrf.mxu0
  %v189 = vadd.f32 %v163, %v188
  %190 = vmatmul.f32.gmra.mxu0 %v96
  %v191 = vpop.f32.mrf.mxu0
  %v192 = vadd.f32 %v163, %v191
  %193 = vdwg.mxu0
  %194 = vmatpush.msra.mxu0 %v158
  %195 = vmatpush.msra.mxu0 %v154
  %196 = vmatpush.msra.mxu0 %v150
  %197 = vmatpush.msra.mxu0 %v146
  %198 = vmatpush.msra.mxu0 %v142
  %199 = vmatpush.msra.mxu0 %v138
  %200 = vmatpush.msra.mxu0 %v134
  %201 = vmatpush.msra.mxu0 %v130
  %202 = vmatpush.msra.mxu0 %v126
  %203 = vmatpush.msra.mxu0 %v122
  %204 = vmatpush.msra.mxu0 %v118
  %205 = vmatpush.msra.mxu0 %v114
  %206 = vmatpush.msra.mxu0 %v110
  %207 = vmatpush.msra.mxu0 %v106
  %208 = vmatpush.msra.mxu0 %v102
  %209 = vmatpush.msra.mxu0 %v98
  %210 = vmatmul.f32.gmra.mxu0 %v95
  %v211 = vpop.f32.mrf.mxu0
  %v212 = vadd.f32 %v164, %v211
  %213 = vmatmul.f32.gmra.mxu0 %v96
  %v214 = vpop.f32.mrf.mxu0
  %v215 = vadd.f32 %v164, %v214
  %216 = vdwg.mxu0
  %217 = vmatpush.msra.mxu0 %v159
  %218 = vmatpush.msra.mxu0 %v155
  %219 = vmatpush.msra.mxu0 %v151
  %220 = vmatpush.msra.mxu0 %v147
  %221 = vmatpush.msra.mxu0 %v143
  %222 = vmatpush.msra.mxu0 %v139
  %223 = vmatpush.msra.mxu0 %v135
  %224 = vmatpush.msra.mxu0 %v131
  %225 = vmatpush.msra.mxu0 %v127
  %226 = vmatpush.msra.mxu0 %v123
  %227 = vmatpush.msra.mxu0 %v119
  %228 = vmatpush.msra.mxu0 %v115
  %229 = vmatpush.msra.mxu0 %v111
  %230 = vmatpush.msra.mxu0 %v107
  %231 = vmatpush.msra.mxu0 %v103
  %232 = vmatpush.msra.mxu0 %v99
  %233 = vmatmul.f32.gmra.mxu0 %v95
  %v234 = vpop.f32.mrf.mxu0
  %v235 = vadd.f32 %v165, %v234
  %236 = vmatmul.f32.gmra.mxu0 %v96
  %v237 = vpop.f32.mrf.mxu0
  %v238 = vadd.f32 %v165, %v237
  %239 = vdwg.mxu0
  %240 = vmatpush.msra.mxu0 %v160
  %241 = vmatpush.msra.mxu0 %v156
  %242 = vmatpush.msra.mxu0 %v152
  %243 = vmatpush.msra.mxu0 %v148
  %244 = vmatpush.msra.mxu0 %v144
  %245 = vmatpush.msra.mxu0 %v140
  %246 = vmatpush.msra.mxu0 %v136
  %247 = vmatpush.msra.mxu0 %v132
  %248 = vmatpush.msra.mxu0 %v128
  %249 = vmatpush.msra.mxu0 %v124
  %250 = vmatpush.msra.mxu0 %v120
  %251 = vmatpush.msra.mxu0 %v116
  %252 = vmatpush.msra.mxu0 %v112
  %253 = vmatpush.msra.mxu0 %v108
  %254 = vmatpush.msra.mxu0 %v104
  %255 = vmatpush.msra.mxu0 %v100
  %256 = vmatmul.f32.gmra.mxu0 %v95
  %v257 = vpop.f32.mrf.mxu0
  %v258 = vadd.f32 %v166, %v257
  %259 = vmatmul.f32.gmra.mxu0 %v96
  %v260 = vpop.f32.mrf.mxu0
  %v261 = vadd.f32 %v166, %v260
  %262 = vdwg.mxu0
  %v263 = vmul.f32 %v189, 1.702
  %v264 = vmul.f32 %v212, 1.702
  %v265 = vmul.f32 %v235, 1.702
  %v266 = vmul.f32 %v258, 1.702
  %v267 = vmul.f32 %v192, 1.702
  %v268 = vmul.f32 %v215, 1.702
  %v269 = vmul.f32 %v238, 1.702
  %v270 = vmul.f32 %v261, 1.702
  %v271 = vxor.u32 %v263, 2147483648
  %v272 = vxor.u32 %v264, 2147483648
  %v273 = vxor.u32 %v265, 2147483648
  %v274 = vxor.u32 %v266, 2147483648
  %v275 = vxor.u32 %v267, 2147483648
  %v276 = vxor.u32 %v268, 2147483648
  %v277 = vxor.u32 %v269, 2147483648
  %v278 = vxor.u32 %v270, 2147483648
  %v279 = vmul.f32 %v271, 1.442695
  %v280 = vpow.pop %v279
  %v281 = vmul.f32 %v272, 1.442695
  %v282 = vpow.pop %v281
  %v283 = vmul.f32 %v273, 1.442695
  %v284 = vpow.pop %v283
  %v285 = vmul.f32 %v274, 1.442695
  %v286 = vpow.pop %v285
  %v287 = vmul.f32 %v275, 1.442695
  %v288 = vpow.pop %v287
  %v289 = vmul.f32 %v276, 1.442695
  %v290 = vpow.pop %v289
  %v291 = vmul.f32 %v277, 1.442695
  %v292 = vpow.pop %v291
  %v293 = vmul.f32 %v278, 1.442695
  %v294 = vpow.pop %v293
  %v295 = vadd.f32 %v280, 1.0
  %v296 = vadd.f32 %v282, 1.0
  %v297 = vadd.f32 %v284, 1.0
  %v298 = vadd.f32 %v286, 1.0
  %v299 = vadd.f32 %v288, 1.0
  %v300 = vadd.f32 %v290, 1.0
  %v301 = vadd.f32 %v292, 1.0
  %v302 = vadd.f32 %v294, 1.0
  %v303 = vrcp.pop %v295
  %v304 = vmul.f32 %v295, %v303
  %v305 = vsub.f32 1.0, %v304
  %v306 = vmul.f32 %v303, %v305
  %v307 = vadd.f32 %v303, %v306
  %vm308 = vweird.f32 %v295
  %vm309 = vweird.f32 %v303
  %vm310 = vmor %vm308, %vm309
  %v311 = vsel %vm310, %v303, %v307
  %v312 = vand.u32 2147483647, %v295
  %vm313 = vcmp.eq.f32.partialorder %v312, 8.507059e+37
  %v314 = vand.u32 %v295, 2147483648
  %v315 = vor.u32 1.1754944e-38, %v314
  %v316 = vsel %vm313, %v315, %v311
  %v317 = vmul.f32 1.0, %v316
  %v318 = vrcp.pop %v296
  %v319 = vmul.f32 %v296, %v318
  %v320 = vsub.f32 1.0, %v319
  %v321 = vmul.f32 %v318, %v320
  %v322 = vadd.f32 %v318, %v321
  %vm323 = vweird.f32 %v296
  %vm324 = vweird.f32 %v318
  %vm325 = vmor %vm323, %vm324
  %v326 = vsel %vm325, %v318, %v322
  %v327 = vand.u32 2147483647, %v296
  %vm328 = vcmp.eq.f32.partialorder %v327, 8.507059e+37
  %v329 = vand.u32 %v296, 2147483648
  %v330 = vor.u32 1.1754944e-38, %v329
  %v331 = vsel %vm328, %v330, %v326
  %v332 = vmul.f32 1.0, %v331
  %v333 = vrcp.pop %v297
  %v334 = vmul.f32 %v297, %v333
  %v335 = vsub.f32 1.0, %v334
  %v336 = vmul.f32 %v333, %v335
  %v337 = vadd.f32 %v333, %v336
  %vm338 = vweird.f32 %v297
  %vm339 = vweird.f32 %v333
  %vm340 = vmor %vm338, %vm339
  %v341 = vsel %vm340, %v333, %v337
  %v342 = vand.u32 2147483647, %v297
  %vm343 = vcmp.eq.f32.partialorder %v342, 8.507059e+37
  %v344 = vand.u32 %v297, 2147483648
  %v345 = vor.u32 1.1754944e-38, %v344
  %v346 = vsel %vm343, %v345, %v341
  %v347 = vmul.f32 1.0, %v346
  %v348 = vrcp.pop %v298
  %v349 = vmul.f32 %v298, %v348
  %v350 = vsub.f32 1.0, %v349
  %v351 = vmul.f32 %v348, %v350
  %v352 = vadd.f32 %v348, %v351
  %vm353 = vweird.f32 %v298
  %vm354 = vweird.f32 %v348
  %vm355 = vmor %vm353, %vm354
  %v356 = vsel %vm355, %v348, %v352
  %v357 = vand.u32 2147483647, %v298
  %vm358 = vcmp.eq.f32.partialorder %v357, 8.507059e+37
  %v359 = vand.u32 %v298, 2147483648
  %v360 = vor.u32 1.1754944e-38, %v359
  %v361 = vsel %vm358, %v360, %v356
  %v362 = vmul.f32 1.0, %v361
  %v363 = vrcp.pop %v299
  %v364 = vmul.f32 %v299, %v363
  %v365 = vsub.f32 1.0, %v364
  %v366 = vmul.f32 %v363, %v365
  %v367 = vadd.f32 %v363, %v366
  %vm368 = vweird.f32 %v299
  %vm369 = vweird.f32 %v363
  %vm370 = vmor %vm368, %vm369
  %v371 = vsel %vm370, %v363, %v367
  %v372 = vand.u32 2147483647, %v299
  %vm373 = vcmp.eq.f32.partialorder %v372, 8.507059e+37
  %v374 = vand.u32 %v299, 2147483648
  %v375 = vor.u32 1.1754944e-38, %v374
  %v376 = vsel %vm373, %v375, %v371
  %v377 = vmul.f32 1.0, %v376
  %v378 = vrcp.pop %v300
  %v379 = vmul.f32 %v300, %v378
  %v380 = vsub.f32 1.0, %v379
  %v381 = vmul.f32 %v378, %v380
  %v382 = vadd.f32 %v378, %v381
  %vm383 = vweird.f32 %v300
  %vm384 = vweird.f32 %v378
  %vm385 = vmor %vm383, %vm384
  %v386 = vsel %vm385, %v378, %v382
  %v387 = vand.u32 2147483647, %v300
  %vm388 = vcmp.eq.f32.partialorder %v387, 8.507059e+37
  %v389 = vand.u32 %v300, 2147483648
  %v390 = vor.u32 1.1754944e-38, %v389
  %v391 = vsel %vm388, %v390, %v386
  %v392 = vmul.f32 1.0, %v391
  %v393 = vrcp.pop %v301
  %v394 = vmul.f32 %v301, %v393
  %v395 = vsub.f32 1.0, %v394
  %v396 = vmul.f32 %v393, %v395
  %v397 = vadd.f32 %v393, %v396
  %vm398 = vweird.f32 %v301
  %vm399 = vweird.f32 %v393
  %vm400 = vmor %vm398, %vm399
  %v401 = vsel %vm400, %v393, %v397
  %v402 = vand.u32 2147483647, %v301
  %vm403 = vcmp.eq.f32.partialorder %v402, 8.507059e+37
  %v404 = vand.u32 %v301, 2147483648
  %v405 = vor.u32 1.1754944e-38, %v404
  %v406 = vsel %vm403, %v405, %v401
  %v407 = vmul.f32 1.0, %v406
  %v408 = vrcp.pop %v302
  %v409 = vmul.f32 %v302, %v408
  %v410 = vsub.f32 1.0, %v409
  %v411 = vmul.f32 %v408, %v410
  %v412 = vadd.f32 %v408, %v411
  %vm413 = vweird.f32 %v302
  %vm414 = vweird.f32 %v408
  %vm415 = vmor %vm413, %vm414
  %v416 = vsel %vm415, %v408, %v412
  %v417 = vand.u32 2147483647, %v302
  %vm418 = vcmp.eq.f32.partialorder %v417, 8.507059e+37
  %v419 = vand.u32 %v302, 2147483648
  %v420 = vor.u32 1.1754944e-38, %v419
  %v421 = vsel %vm418, %v420, %v416
  %v422 = vmul.f32 1.0, %v421
  %v423 = vmul.f32 %v189, %v317
  %v424 = vmul.f32 %v212, %v332
  %v425 = vmul.f32 %v235, %v347
  %v426 = vmul.f32 %v258, %v362
  %v427 = vmul.f32 %v192, %v377
  %v428 = vmul.f32 %v215, %v392
  %v429 = vmul.f32 %v238, %v407
  %v430 = vmul.f32 %v261, %v422
  %v431 = vld [vmem:[#allocation3] sm:$0xff]
  %v432 = vld [vmem:[#allocation3 + $0x8] sm:$0x3f]
  %v433 = vld [vmem:[%s5] sm:$0xff]
  %v434 = vld [vmem:[%s5 + $0x8] sm:$0xff]
  %v435 = vld [vmem:[%s5 + $0x10] sm:$0xff]
  %v436 = vld [vmem:[%s5 + $0x18] sm:$0xff]
  %v437 = vld [vmem:[%s5 + $0x20] sm:$0xff]
  %v438 = vld [vmem:[%s5 + $0x28] sm:$0xff]
  %v439 = vld [vmem:[%s5 + $0x30] sm:$0xff]
  %v440 = vld [vmem:[%s5 + $0x38] sm:$0xff]
  %v441 = vld [vmem:[%s5 + $0x40] sm:$0xff]
  %v442 = vld [vmem:[%s5 + $0x48] sm:$0xff]
  %v443 = vld [vmem:[%s5 + $0x50] sm:$0xff]
  %v444 = vld [vmem:[%s5 + $0x58] sm:$0xff]
  %v445 = vld [vmem:[%s5 + $0x60] sm:$0xff]
  %v446 = vld [vmem:[%s5 + $0x68] sm:$0xff]
  %v447 = vld [vmem:[%s5 + $0x70] sm:$0xff]
  %v448 = vld [vmem:[%s5 + $0x78] sm:$0xff]
  %v449 = vld [vmem:[%s5 + $0x80] sm:$0xff]
  %v450 = vld [vmem:[%s5 + $0x88] sm:$0xff]
  %v451 = vld [vmem:[%s5 + $0x90] sm:$0xff]
  %v452 = vld [vmem:[%s5 + $0x98] sm:$0xff]
  %v453 = vld [vmem:[%s5 + $0xa0] sm:$0xff]
  %v454 = vld [vmem:[%s5 + $0xa8] sm:$0xff]
  %v455 = vld [vmem:[%s5 + $0xb0] sm:$0xff]
  %v456 = vld [vmem:[%s5 + $0xb8] sm:$0xff]
  %v457 = vld [vmem:[%s5 + $0xc0] sm:$0xff]
  %v458 = vld [vmem:[%s5 + $0xc8] sm:$0xff]
  %v459 = vld [vmem:[%s5 + $0xd0] sm:$0xff]
  %v460 = vld [vmem:[%s5 + $0xd8] sm:$0xff]
  %v461 = vld [vmem:[%s5 + $0xe0] sm:$0xff]
  %v462 = vld [vmem:[%s5 + $0xe8] sm:$0xff]
  %v463 = vld [vmem:[%s5 + $0xf0] sm:$0xff]
  %v464 = vld [vmem:[%s5 + $0xf8] sm:$0xff]
  %v465 = vld [vmem:[%s5 + $0x100] sm:$0xff]
  %v466 = vld [vmem:[%s5 + $0x108] sm:$0xff]
  %v467 = vld [vmem:[%s5 + $0x110] sm:$0xff]
  %v468 = vld [vmem:[%s5 + $0x118] sm:$0xff]
  %v469 = vld [vmem:[%s5 + $0x120] sm:$0xff]
  %v470 = vld [vmem:[%s5 + $0x128] sm:$0xff]
  %v471 = vld [vmem:[%s5 + $0x130] sm:$0xff]
  %v472 = vld [vmem:[%s5 + $0x138] sm:$0xff]
  %v473 = vld [vmem:[%s5 + $0x140] sm:$0xff]
  %v474 = vld [vmem:[%s5 + $0x148] sm:$0xff]
  %v475 = vld [vmem:[%s5 + $0x150] sm:$0xff]
  %v476 = vld [vmem:[%s5 + $0x158] sm:$0xff]
  %v477 = vld [vmem:[%s5 + $0x160] sm:$0xff]
  %v478 = vld [vmem:[%s5 + $0x168] sm:$0xff]
  %v479 = vld [vmem:[%s5 + $0x170] sm:$0xff]
  %v480 = vld [vmem:[%s5 + $0x178] sm:$0xff]
  %v481 = vld [vmem:[%s5 + $0x180] sm:$0xff]
  %v482 = vld [vmem:[%s5 + $0x188] sm:$0xff]
  %v483 = vld [vmem:[%s5 + $0x190] sm:$0xff]
  %v484 = vld [vmem:[%s5 + $0x198] sm:$0xff]
  %v485 = vld [vmem:[%s5 + $0x1a0] sm:$0xff]
  %v486 = vld [vmem:[%s5 + $0x1a8] sm:$0xff]
  %v487 = vld [vmem:[%s5 + $0x1b0] sm:$0xff]
  %v488 = vld [vmem:[%s5 + $0x1b8] sm:$0xff]
  %v489 = vld [vmem:[%s5 + $0x1c0] sm:$0xff]
  %v490 = vld [vmem:[%s5 + $0x1c8] sm:$0xff]
  %v491 = vld [vmem:[%s5 + $0x1d0] sm:$0xff]
  %v492 = vld [vmem:[%s5 + $0x1d8] sm:$0xff]
  %v493 = vld [vmem:[%s5 + $0x1e0] sm:$0xff]
  %v494 = vld [vmem:[%s5 + $0x1e8] sm:$0xff]
  %v495 = vld [vmem:[%s5 + $0x1f0] sm:$0xff]
  %v496 = vld [vmem:[%s5 + $0x1f8] sm:$0xff]
  %497 = vmatpush.msra.mxu0 %v448
  %498 = vmatpush.msra.mxu0 %v447
  %499 = vmatpush.msra.mxu0 %v446
  %500 = vmatpush.msra.mxu0 %v445
  %501 = vmatpush.msra.mxu0 %v444
  %502 = vmatpush.msra.mxu0 %v443
  %503 = vmatpush.msra.mxu0 %v442
  %504 = vmatpush.msra.mxu0 %v441
  %505 = vmatpush.msra.mxu0 %v440
  %506 = vmatpush.msra.mxu0 %v439
  %507 = vmatpush.msra.mxu0 %v438
  %508 = vmatpush.msra.mxu0 %v437
  %509 = vmatpush.msra.mxu0 %v436
  %510 = vmatpush.msra.mxu0 %v435
  %511 = vmatpush.msra.mxu0 %v434
  %512 = vmatpush.msra.mxu0 %v433
  %513 = vmatmul.f32.gmra.mxu0 %v423
  %v514 = vpop.f32.mrf.mxu0
  %v515 = vadd.f32 0.0, %v514
  %516 = vmatmul.f32.gmra.mxu0 %v427
  %v517 = vpop.f32.mrf.mxu0
  %v518 = vadd.f32 0.0, %v517
  %519 = vdwg.mxu0
  %520 = vmatpush.msra.mxu0 %v464
  %521 = vmatpush.msra.mxu0 %v463
  %522 = vmatpush.msra.mxu0 %v462
  %523 = vmatpush.msra.mxu0 %v461
  %524 = vmatpush.msra.mxu0 %v460
  %525 = vmatpush.msra.mxu0 %v459
  %526 = vmatpush.msra.mxu0 %v458
  %527 = vmatpush.msra.mxu0 %v457
  %528 = vmatpush.msra.mxu0 %v456
  %529 = vmatpush.msra.mxu0 %v455
  %530 = vmatpush.msra.mxu0 %v454
  %531 = vmatpush.msra.mxu0 %v453
  %532 = vmatpush.msra.mxu0 %v452
  %533 = vmatpush.msra.mxu0 %v451
  %534 = vmatpush.msra.mxu0 %v450
  %535 = vmatpush.msra.mxu0 %v449
  %536 = vmatmul.f32.gmra.mxu0 %v424
  %v537 = vpop.f32.mrf.mxu0
  %v538 = vadd.f32 %v515, %v537
  %539 = vmatmul.f32.gmra.mxu0 %v428
  %v540 = vpop.f32.mrf.mxu0
  %v541 = vadd.f32 %v518, %v540
  %542 = vdwg.mxu0
  %543 = vmatpush.msra.mxu0 %v480
  %544 = vmatpush.msra.mxu0 %v479
  %545 = vmatpush.msra.mxu0 %v478
  %546 = vmatpush.msra.mxu0 %v477
  %547 = vmatpush.msra.mxu0 %v476
  %548 = vmatpush.msra.mxu0 %v475
  %549 = vmatpush.msra.mxu0 %v474
  %550 = vmatpush.msra.mxu0 %v473
  %551 = vmatpush.msra.mxu0 %v472
  %552 = vmatpush.msra.mxu0 %v471
  %553 = vmatpush.msra.mxu0 %v470
  %554 = vmatpush.msra.mxu0 %v469
  %555 = vmatpush.msra.mxu0 %v468
  %556 = vmatpush.msra.mxu0 %v467
  %557 = vmatpush.msra.mxu0 %v466
  %558 = vmatpush.msra.mxu0 %v465
  %559 = vmatmul.f32.gmra.mxu0 %v425
  %v560 = vpop.f32.mrf.mxu0
  %v561 = vadd.f32 %v538, %v560
  %562 = vmatmul.f32.gmra.mxu0 %v429
  %v563 = vpop.f32.mrf.mxu0
  %v564 = vadd.f32 %v541, %v563
  %565 = vdwg.mxu0
  %566 = vmatpush.msra.mxu0 %v496
  %567 = vmatpush.msra.mxu0 %v495
  %568 = vmatpush.msra.mxu0 %v494
  %569 = vmatpush.msra.mxu0 %v493
  %570 = vmatpush.msra.mxu0 %v492
  %571 = vmatpush.msra.mxu0 %v491
  %572 = vmatpush.msra.mxu0 %v490
  %573 = vmatpush.msra.mxu0 %v489
  %574 = vmatpush.msra.mxu0 %v488
  %575 = vmatpush.msra.mxu0 %v487
  %576 = vmatpush.msra.mxu0 %v486
  %577 = vmatpush.msra.mxu0 %v485
  %578 = vmatpush.msra.mxu0 %v484
  %579 = vmatpush.msra.mxu0 %v483
  %580 = vmatpush.msra.mxu0 %v482
  %581 = vmatpush.msra.mxu0 %v481
  %582 = vmatmul.f32.gmra.mxu0 %v426
  %v583 = vpop.f32.mrf.mxu0
  %v584 = vadd.f32 %v561, %v583
  %585 = vmatmul.f32.gmra.mxu0 %v430
  %v586 = vpop.f32.mrf.mxu0
  %v587 = vadd.f32 %v564, %v586
  %588 = vdwg.mxu0
  %v589 = vadd.f32 %v431, %v584
  %v590 = vadd.f32 %v432, %v587
  %591 = vst [vmem:[#allocation3] sm:$0xff] %v589
  %592 = vst [vmem:[#allocation3 + $0x8] sm:$0x3f] %v590
  // Predicated region
  $region30: #{audio_transformer_fwd.21} parent=0 // pred_check
    %p593 = pneg %p23
  $region31: #{audio_transformer_fwd.21} parent=0 // pred_check_branch
    %595 = sbr.rel (%p593) target = $region33
  $region32: #{audio_transformer_fwd.21} parent=0 // pred_region
    %v596 = vld [vmem:[#allocation3] sm:$0xff]
    %v597 = vld [vmem:[#allocation3 + $0x8] sm:$0x3f]
    %598 = vst [vmem:[%s6] sm:$0xff] %v596
    %599 = vst [vmem:[%s6 + $0x8] sm:$0x3f] %v597
  $region33: #{audio_transformer_fwd.21} parent=0 // pred_fallthru
    _
  // Predicated region
  $region34: #{audio_transformer_fwd.21} parent=0 // pred_check
    _
  $region35: #{audio_transformer_fwd.21} parent=0 // pred_check_branch
    %601 = sbr.rel (0) target = $region37
  $region36: #{audio_transformer_fwd.21} parent=0 // pred_region
    _
  $region37: #{audio_transformer_fwd.21} parent=0 // pred_fallthru
    _
  // Predicated region
  $region38: #{audio_transformer_fwd.21} parent=0 // pred_check
    _
  $region39: #{audio_transformer_fwd.21} parent=0 // pred_check_branch
    %603 = sbr.rel (0) target = $region41
  $region40: #{audio_transformer_fwd.21} parent=0 // pred_region
    _
  $region41: #{audio_transformer_fwd.21} parent=0 // pred_fallthru
    _

// kernel: audio_transformer_fwd.29
$region0: #{audio_transformer_fwd.29}
  #allocation0 [shape = 'u32[]', space=smem, size = 0x4, offset = 0x4, fixed_abs, tag = 'smem constant byte address 0x4 - core index']
  #allocation1 [shape = 'u32[72,128]{1,0:T(1,128)}', space=vmem, size = 0x9000, scoped, tag = 'internal scratch']
  #allocation2 [shape = 'f32[12,256]{1,0:T(8,128)}', space=vmem, size = 0x4000, scoped, tag = 'scratch operand']
  %s0 = inlined_call_operand.vmem [shape: f32[12,128], index: 0, kind: input, shape index: {}]
  %s1 = inlined_call_operand.vmem [shape: f32[128,256], index: 1, kind: input, shape index: {}]
  %s2 = inlined_call_operand.vmem [shape: f32[1,256], index: 2, kind: input, shape index: {}]
  %s3 = inlined_call_operand.vmem [shape: f32[12,256], index: 3, kind: output, shape index: {}]
  %s4 = sld [smem:[#allocation0]]
  $region30: #{audio_transformer_fwd.29} parent=0
    _
  %s6 = ssub.s32 1, %s4
  %s7 = scalar_select 0, %s6, %s4
  // Predicated region
  $region2: #{audio_transformer_fwd.29} parent=0 // pred_check
    _
  $region3: #{audio_transformer_fwd.29} parent=0 // pred_check_branch
    %9 = sbr.rel (0) target = $region5
  $region4: #{audio_transformer_fwd.29} parent=0 // pred_region
    _
  $region5: #{audio_transformer_fwd.29} parent=0 // pred_fallthru
    _
  // Predicated region
  $region6: #{audio_transformer_fwd.29} parent=0 // pred_check
    _
  $region7: #{audio_transformer_fwd.29} parent=0 // pred_check_branch
    %11 = sbr.rel (0) target = $region9
  $region8: #{audio_transformer_fwd.29} parent=0 // pred_region
    _
  $region9: #{audio_transformer_fwd.29} parent=0 // pred_fallthru
    _
  // Predicated region
  $region10: #{audio_transformer_fwd.29} parent=0 // pred_check
    _
  $region11: #{audio_transformer_fwd.29} parent=0 // pred_check_branch
    %13 = sbr.rel (0) target = $region13
  $region12: #{audio_transformer_fwd.29} parent=0 // pred_region
    _
  $region13: #{audio_transformer_fwd.29} parent=0 // pred_fallthru
    _
  %p14 = scmp.eq.s32.totalorder 0, 0
  // Predicated region
  $region14: #{audio_transformer_fwd.29} parent=0 // pred_check
    %p15 = pneg %p14
  $region15: #{audio_transformer_fwd.29} parent=0 // pred_check_branch
    %17 = sbr.rel (%p15) target = $region17
  $region16: #{audio_transformer_fwd.29} parent=0 // pred_region
    %18 = vst [vmem:[#allocation2] sm:$0xff] 0.0
    %19 = vst [vmem:[#allocation2 + $0x8] sm:$0xff] 0.0
    %20 = vst [vmem:[#allocation2 + $0x10] sm:$0xf] 0.0
    %21 = vst [vmem:[#allocation2 + $0x18] sm:$0xf] 0.0
  $region17: #{audio_transformer_fwd.29} parent=0 // pred_fallthru
    _
  %v22 = vld [vmem:[#allocation2] sm:$0xff]
  %v23 = vld [vmem:[#allocation2 + $0x8] sm:$0xff]
  %v24 = vld [vmem:[#allocation2 + $0x10] sm:$0xf]
  %v25 = vld [vmem:[#allocation2 + $0x18] sm:$0xf]
  %v26 = vld [vmem:[%s0] sm:$0xff]
  %v27 = vld [vmem:[%s0 + $0x8] sm:$0xf]
  %v28 = vld [vmem:[%s1] sm:$0xff]
  %v29 = vld [vmem:[%s1 + $0x8] sm:$0xff]
  %v30 = vld [vmem:[%s1 + $0x10] sm:$0xff]
  %v31 = vld [vmem:[%s1 + $0x18] sm:$0xff]
  %v32 = vld [vmem:[%s1 + $0x20] sm:$0xff]
  %v33 = vld [vmem:[%s1 + $0x28] sm:$0xff]
  %v34 = vld [vmem:[%s1 + $0x30] sm:$0xff]
  %v35 = vld [vmem:[%s1 + $0x38] sm:$0xff]
  %v36 = vld [vmem:[%s1 + $0x40] sm:$0xff]
  %v37 = vld [vmem:[%s1 + $0x48] sm:$0xff]
  %v38 = vld [vmem:[%s1 + $0x50] sm:$0xff]
  %v39 = vld [vmem:[%s1 + $0x58] sm:$0xff]
  %v40 = vld [vmem:[%s1 + $0x60] sm:$0xff]
  %v41 = vld [vmem:[%s1 + $0x68] sm:$0xff]
  %v42 = vld [vmem:[%s1 + $0x70] sm:$0xff]
  %v43 = vld [vmem:[%s1 + $0x78] sm:$0xff]
  %v44 = vld [vmem:[%s1 + $0x80] sm:$0xff]
  %v45 = vld [vmem:[%s1 + $0x88] sm:$0xff]
  %v46 = vld [vmem:[%s1 + $0x90] sm:$0xff]
  %v47 = vld [vmem:[%s1 + $0x98] sm:$0xff]
  %v48 = vld [vmem:[%s1 + $0xa0] sm:$0xff]
  %v49 = vld [vmem:[%s1 + $0xa8] sm:$0xff]
  %v50 = vld [vmem:[%s1 + $0xb0] sm:$0xff]
  %v51 = vld [vmem:[%s1 + $0xb8] sm:$0xff]
  %v52 = vld [vmem:[%s1 + $0xc0] sm:$0xff]
  %v53 = vld [vmem:[%s1 + $0xc8] sm:$0xff]
  %v54 = vld [vmem:[%s1 + $0xd0] sm:$0xff]
  %v55 = vld [vmem:[%s1 + $0xd8] sm:$0xff]
  %v56 = vld [vmem:[%s1 + $0xe0] sm:$0xff]
  %v57 = vld [vmem:[%s1 + $0xe8] sm:$0xff]
  %v58 = vld [vmem:[%s1 + $0xf0] sm:$0xff]
  %v59 = vld [vmem:[%s1 + $0xf8] sm:$0xff]
  %60 = vmatpush.msra.mxu0 %v58
  %61 = vmatpush.msra.mxu0 %v56
  %62 = vmatpush.msra.mxu0 %v54
  %63 = vmatpush.msra.mxu0 %v52
  %64 = vmatpush.msra.mxu0 %v50
  %65 = vmatpush.msra.mxu0 %v48
  %66 = vmatpush.msra.mxu0 %v46
  %67 = vmatpush.msra.mxu0 %v44
  %68 = vmatpush.msra.mxu0 %v42
  %69 = vmatpush.msra.mxu0 %v40
  %70 = vmatpush.msra.mxu0 %v38
  %71 = vmatpush.msra.mxu0 %v36
  %72 = vmatpush.msra.mxu0 %v34
  %73 = vmatpush.msra.mxu0 %v32
  %74 = vmatpush.msra.mxu0 %v30
  %75 = vmatpush.msra.mxu0 %v28
  %76 = vmatmul.f32.gmra.mxu0 %v26
  %v77 = vpop.f32.mrf.mxu0
  %v78 = vadd.f32 0.0, %v77
  %79 = vmatmul.f32.gmra.mxu0 %v27
  %v80 = vpop.f32.mrf.mxu0
  %v81 = vadd.f32 0.0, %v80
  %82 = vdwg.mxu0
  %83 = vmatpush.msra.mxu0 %v59
  %84 = vmatpush.msra.mxu0 %v57
  %85 = vmatpush.msra.mxu0 %v55
  %86 = vmatpush.msra.mxu0 %v53
  %87 = vmatpush.msra.mxu0 %v51
  %88 = vmatpush.msra.mxu0 %v49
  %89 = vmatpush.msra.mxu0 %v47
  %90 = vmatpush.msra.mxu0 %v45
  %91 = vmatpush.msra.mxu0 %v43
  %92 = vmatpush.msra.mxu0 %v41
  %93 = vmatpush.msra.mxu0 %v39
  %94 = vmatpush.msra.mxu0 %v37
  %95 = vmatpush.msra.mxu0 %v35
  %96 = vmatpush.msra.mxu0 %v33
  %97 = vmatpush.msra.mxu0 %v31
  %98 = vmatpush.msra.mxu0 %v29
  %99 = vmatmul.f32.gmra.mxu0 %v26
  %v100 = vpop.f32.mrf.mxu0
  %v101 = vadd.f32 0.0, %v100
  %102 = vmatmul.f32.gmra.mxu0 %v27
  %v103 = vpop.f32.mrf.mxu0
  %v104 = vadd.f32 0.0, %v103
  %105 = vdwg.mxu0
  %v106 = vadd.f32 %v22, %v78
  %v107 = vadd.f32 %v23, %v101
  %v108 = vadd.f32 %v24, %v81
  %v109 = vadd.f32 %v25, %v104
  %110 = vst [vmem:[#allocation2] sm:$0xff] %v106
  %111 = vst [vmem:[#allocation2 + $0x8] sm:$0xff] %v107
  %112 = vst [vmem:[#allocation2 + $0x10] sm:$0xf] %v108
  %113 = vst [vmem:[#allocation2 + $0x18] sm:$0xf] %v109
  // Predicated region
  $region18: #{audio_transformer_fwd.29} parent=0 // pred_check
    %p114 = pneg %p14
  $region19: #{audio_transformer_fwd.29} parent=0 // pred_check_branch
    %116 = sbr.rel (%p114) target = $region21
  $region20: #{audio_transformer_fwd.29} parent=0 // pred_region
    %v117 = vld [vmem:[#allocation2] sm:$0xff]
    %v118 = vld [vmem:[#allocation2 + $0x8] sm:$0xff]
    %v119 = vld [vmem:[#allocation2 + $0x10] sm:$0xf]
    %v120 = vld [vmem:[#allocation2 + $0x18] sm:$0xf]
    %v121 = vld [vmem:[%s2] sm:$0x3]
    %v123 = vperm.slane %v121, 0
    %v124 = vperm.slane %v121, 1
    %v127 = vadd.f32 %v117, %v123
    %v128 = vadd.f32 %v118, %v124
    %v129 = vadd.f32 %v119, %v123
    %v130 = vadd.f32 %v120, %v124
    %131 = vst [vmem:[%s3] sm:$0xff] %v127
    %132 = vst [vmem:[%s3 + $0x8] sm:$0xff] %v128
    %133 = vst [vmem:[%s3 + $0x10] sm:$0xf] %v129
    %134 = vst [vmem:[%s3 + $0x18] sm:$0xf] %v130
  $region21: #{audio_transformer_fwd.29} parent=0 // pred_fallthru
    _
  // Predicated region
  $region22: #{audio_transformer_fwd.29} parent=0 // pred_check
    _
  $region23: #{audio_transformer_fwd.29} parent=0 // pred_check_branch
    %136 = sbr.rel (0) target = $region25
  $region24: #{audio_transformer_fwd.29} parent=0 // pred_region
    _
  $region25: #{audio_transformer_fwd.29} parent=0 // pred_fallthru
    _
  // Predicated region
  $region26: #{audio_transformer_fwd.29} parent=0 // pred_check
    _
  $region27: #{audio_transformer_fwd.29} parent=0 // pred_check_branch
    %138 = sbr.rel (0) target = $region29
  $region28: #{audio_transformer_fwd.29} parent=0 // pred_region
    _
  $region29: #{audio_transformer_fwd.29} parent=0 // pred_fallthru
    _

// kernel: audio_transformer_fwd.30
$region0: #{audio_transformer_fwd.30}
  #allocation0 [shape = 'u32[]', space=smem, size = 0x4, offset = 0x4, fixed_abs, tag = 'smem constant byte address 0x4 - core index']
  #allocation1 [shape = 'u32[72,128]{1,0:T(1,128)}', space=vmem, size = 0x9000, scoped, tag = 'internal scratch']
  %s0 = inlined_call_operand.vmem [shape: f32[4,1,128], index: 0, kind: input, shape index: {}]
  %s1 = inlined_call_operand.vmem [shape: f32[4,3,128], index: 1, kind: input, shape index: {}]
  %s2 = inlined_call_operand.vmem [shape: f32[4,3,128], index: 2, kind: input, shape index: {}]
  %s3 = inlined_call_operand.vmem [shape: f32[4,1,128], index: 3, kind: output, shape index: {}]
  %s4 = sld [smem:[#allocation0]]
  $region45: #{audio_transformer_fwd.30} parent=0
    _
  %s6 = ssub.s32 1, %s4
  %s7 = scalar_select 0, %s6, %s4
  loop: start=0, step=1, limit=6
  $region2: #{audio_transformer_fwd.30} parent=0 // loop_pre_header
    _
  $region3: #{audio_transformer_fwd.30} parent=0 // loop_header
    %s9 = sphi 0, %s13
    %p10 = scmp.ge.s32.totalorder %s9, 6
    %s19 = sphi 0, %s21
    %s22 = sphi 0, %s19
    %s23 = sphi 0, %s22
    %s39 = sphi 0, %s23
    %s45 = sphi 0, %s47
    %s48 = sphi 0, %s45
    %s49 = sphi 0, %s48
    %s65 = sphi 0, %s49
    %s71 = sphi 0, %s73
    %s74 = sphi 0, %s71
    %s75 = sphi 0, %s74
    %s91 = sphi 0, %s75
    %s97 = sphi 0, %s99
    %s100 = sphi 0, %s97
    %s101 = sphi 0, %s100
    %s117 = sphi 0, %s101
  $region4: #{audio_transformer_fwd.30} parent=0 // loop_header_branch
    %12 = sbr.rel (%p10) target = $region8
  $region5: #{audio_transformer_fwd.30} parent=0 // loop_body
    %s14 = ssub.s32 %s9, 1
    %s15 = ssub.s32 %s9, 2
    %s16 = sadd.s32 %s9, 1
    %s17 = ssub.s32 %s9, %s16
    %p18 = scmp.eq.s32.totalorder %s17, 0
    %s20 = sadd.s32 %s19, 1
    %s21 = scalar_select %p18, %s19, %s20
    %p24 = pneg %p18
    %p25 = scmp.eq.s32.totalorder %s9, 3
    %p26 = por %p24, %p25
    %p27 = scmp.ne.s32.totalorder %s19, %s22
    %p28 = scmp.eq.s32.totalorder %s9, 0
    %p29 = por %p27, %p28
    %p30 = scmp.ne.s32.totalorder %s19, %s22
    %p31 = scmp.eq.s32.totalorder %s14, 3
    %p32 = por %p30, %p31
    %p33 = scmp.ne.s32.totalorder %s22, %s23
    %p34 = scmp.eq.s32.totalorder %s14, 0
    %p35 = por %p33, %p34
    %p36 = scmp.ne.s32.totalorder %s22, %s23
    %p37 = scmp.eq.s32.totalorder %s15, 3
    %p38 = por %p36, %p37
    %p40 = scmp.ne.s32.totalorder %s23, %s39
    %p41 = scmp.eq.s32.totalorder %s15, 0
    %p42 = por %p40, %p41
    %s43 = ssub.s32 %s9, %s16
    %p44 = scmp.eq.s32.totalorder %s43, 0
    %s46 = sadd.s32 %s45, 1
    %s47 = scalar_select %p44, %s45, %s46
    %p50 = pneg %p44
    %p51 = scmp.eq.s32.totalorder %s9, 3
    %p52 = por %p50, %p51
    %p53 = scmp.ne.s32.totalorder %s45, %s48
    %p54 = scmp.eq.s32.totalorder %s9, 0
    %p55 = por %p53, %p54
    %p56 = scmp.ne.s32.totalorder %s45, %s48
    %p57 = scmp.eq.s32.totalorder %s14, 3
    %p58 = por %p56, %p57
    %p59 = scmp.ne.s32.totalorder %s48, %s49
    %p60 = scmp.eq.s32.totalorder %s14, 0
    %p61 = por %p59, %p60
    %p62 = scmp.ne.s32.totalorder %s48, %s49
    %p63 = scmp.eq.s32.totalorder %s15, 3
    %p64 = por %p62, %p63
    %p66 = scmp.ne.s32.totalorder %s49, %s65
    %p67 = scmp.eq.s32.totalorder %s15, 0
    %p68 = por %p66, %p67
    %s69 = ssub.s32 %s9, %s16
    %p70 = scmp.eq.s32.totalorder %s69, 0
    %s72 = sadd.s32 %s71, 1
    %s73 = scalar_select %p70, %s71, %s72
    %p76 = pneg %p70
    %p77 = scmp.eq.s32.totalorder %s9, 3
    %p78 = por %p76, %p77
    %p79 = scmp.ne.s32.totalorder %s71, %s74
    %p80 = scmp.eq.s32.totalorder %s9, 0
    %p81 = por %p79, %p80
    %p82 = scmp.ne.s32.totalorder %s71, %s74
    %p83 = scmp.eq.s32.totalorder %s14, 3
    %p84 = por %p82, %p83
    %p85 = scmp.ne.s32.totalorder %s74, %s75
    %p86 = scmp.eq.s32.totalorder %s14, 0
    %p87 = por %p85, %p86
    %p88 = scmp.ne.s32.totalorder %s74, %s75
    %p89 = scmp.eq.s32.totalorder %s15, 3
    %p90 = por %p88, %p89
    %p92 = scmp.ne.s32.totalorder %s75, %s91
    %p93 = scmp.eq.s32.totalorder %s15, 0
    %p94 = por %p92, %p93
    %s95 = ssub.s32 %s9, %s16
    %p96 = scmp.eq.s32.totalorder %s95, 0
    %s98 = sadd.s32 %s97, 1
    %s99 = scalar_select %p96, %s97, %s98
    %p102 = pneg %p96
    %p103 = scmp.eq.s32.totalorder %s9, 3
    %p104 = por %p102, %p103
    %p105 = scmp.ne.s32.totalorder %s97, %s100
    %p106 = scmp.eq.s32.totalorder %s9, 0
    %p107 = por %p105, %p106
    %p108 = scmp.ne.s32.totalorder %s97, %s100
    %p109 = scmp.eq.s32.totalorder %s14, 3
    %p110 = por %p108, %p109
    %p111 = scmp.ne.s32.totalorder %s100, %s101
    %p112 = scmp.eq.s32.totalorder %s14, 0
    %p113 = por %p111, %p112
    %p114 = scmp.ne.s32.totalorder %s100, %s101
    %p115 = scmp.eq.s32.totalorder %s15, 3
    %p116 = por %p114, %p115
    %p118 = scmp.ne.s32.totalorder %s101, %s117
    %p119 = scmp.eq.s32.totalorder %s15, 0
    %p120 = por %p118, %p119
    %p121 = scmp.le.s32.totalorder 1, %s9
    %p122 = scmp.lt.s32.totalorder %s9, 5
    %p123 = pnand %p121, %p122
    %p124 = pneg %p123
    // Predicated region
    $region9: #{audio_transformer_fwd.30} parent=5 // pred_check
      _
    $region10: #{audio_transformer_fwd.30} parent=5 // pred_check_branch
      %126 = sbr.rel (%p123) target = $region12
    $region11: #{audio_transformer_fwd.30} parent=5 // pred_region
      %s127 = ssub.s32 %s9, 1
    $region12: #{audio_transformer_fwd.30} parent=5 // pred_fallthru
      _
    %p128 = scmp.lt.s32.totalorder %s9, 4
    // Predicated region
    $region13: #{audio_transformer_fwd.30} parent=5 // pred_check
      %p129 = pneg %p128
    $region14: #{audio_transformer_fwd.30} parent=5 // pred_check_branch
      %131 = sbr.rel (%p129) target = $region16
    $region15: #{audio_transformer_fwd.30} parent=5 // pred_region
      // Predicated region
      $region17: #{audio_transformer_fwd.30} parent=15 // pred_check
        %p132 = pneg %p29
      $region18: #{audio_transformer_fwd.30} parent=15 // pred_check_branch
        %134 = sbr.rel (%p132) target = $region20
      $region19: #{audio_transformer_fwd.30} parent=15 // pred_region
        %p135 = scmp.lt.s32.totalorder %s9, 3
        %s136 = scalar_select %p135, %s9, 3
        %s137 = scalar_lea.vmem %s0, %s136
      $region20: #{audio_transformer_fwd.30} parent=15 // pred_fallthru
        _
      // Predicated region
      $region21: #{audio_transformer_fwd.30} parent=15 // pred_check
        %p138 = pneg %p55
      $region22: #{audio_transformer_fwd.30} parent=15 // pred_check_branch
        %140 = sbr.rel (%p138) target = $region24
      $region23: #{audio_transformer_fwd.30} parent=15 // pred_region
        %p141 = scmp.lt.s32.totalorder %s9, 3
        %s142 = scalar_select %p141, %s9, 3
        %s143 = smul.addr %s142, 4
        %s144 = scalar_lea.vmem %s1, %s143
      $region24: #{audio_transformer_fwd.30} parent=15 // pred_fallthru
        _
      // Predicated region
      $region25: #{audio_transformer_fwd.30} parent=15 // pred_check
        %p145 = pneg %p81
      $region26: #{audio_transformer_fwd.30} parent=15 // pred_check_branch
        %147 = sbr.rel (%p145) target = $region28
      $region27: #{audio_transformer_fwd.30} parent=15 // pred_region
        %p148 = scmp.lt.s32.totalorder %s9, 3
        %s149 = scalar_select %p148, %s9, 3
        %s150 = smul.addr %s149, 4
        %s151 = scalar_lea.vmem %s2, %s150
      $region28: #{audio_transformer_fwd.30} parent=15 // pred_fallthru
        _
    $region16: #{audio_transformer_fwd.30} parent=5 // pred_fallthru
      _
    %p152 = scmp.le.s32.totalorder 1, %s9
    %p153 = scmp.lt.s32.totalorder %s9, 5
    %p154 = pnand %p152, %p153
    %p155 = pneg %p154
    // Predicated region
    $region29: #{audio_transformer_fwd.30} parent=5 // pred_check
      _
    $region30: #{audio_transformer_fwd.30} parent=5 // pred_check_branch
      %157 = sbr.rel (%p154) target = $region32
    $region31: #{audio_transformer_fwd.30} parent=5 // pred_region
      %s158 = ssub.s32 %s9, 1
      %p159 = scmp.lt.s32.totalorder %s14, 3
      %s160 = scalar_select %p159, %s14, 3
      %s161 = scalar_lea.vmem %s0, %s160
      %p162 = pneg %p35
      %p163 = pneg %p32
      %p164 = scmp.lt.s32.totalorder %s14, 3
      %s165 = scalar_select %p164, %s14, 3
      %s166 = smul.addr %s165, 4
      %s167 = scalar_lea.vmem %s1, %s166
      %p168 = pneg %p61
      %p169 = pneg %p58
      %p170 = scmp.lt.s32.totalorder %s14, 3
      %s171 = scalar_select %p170, %s14, 3
      %s172 = smul.addr %s171, 4
      %s173 = scalar_lea.vmem %s2, %s172
      %p174 = pneg %p87
      %p175 = pneg %p84
      %p176 = pneg %p113
      %p177 = pneg %p110
      %p178 = scmp.lt.s32.totalorder %s14, 3
      %s179 = scalar_select %p178, %s14, 3
      %s180 = scalar_lea.vmem %s3, %s179
      %p181 = scmp.lt.s32.totalorder %s14, 3
      %s182 = scalar_select %p181, %s14, 3
      %s183 = scalar_lea.vmem %s0, %s182
      %p184 = scmp.lt.s32.totalorder %s14, 3
      %s185 = scalar_select %p184, %s14, 3
      %s186 = smul.addr %s185, 4
      %s187 = scalar_lea.vmem %s1, %s186
      %p188 = scmp.lt.s32.totalorder %s14, 3
      %s189 = scalar_select %p188, %s14, 3
      %s190 = smul.addr %s189, 4
      %s191 = scalar_lea.vmem %s2, %s190
      %p192 = scmp.lt.s32.totalorder %s14, 3
      %s193 = scalar_select %p192, %s14, 3
      %s194 = scalar_lea.vmem %s3, %s193
      %v195 = vld [vmem:[%s183] sm:$0x1]
      %v196 = vmul.f32 %v195, 0.125
      %v197 = vld [vmem:[%s187] sm:$0x7]
      %v198 = vld [vmem:[%s191] sm:$0x7]
      %vm199 = vcmask 523264
      %v201 = vsel %vm199, %v196, 0
      %v204 = vsel %vm199, %v197, 0
      %206 = vmatpush.xpose.msra.mxu0 0.0
      %207 = vmatpush.xpose.msra.mxu0 0.0
      %208 = vmatpush.xpose.msra.mxu0 0.0
      %209 = vmatpush.xpose.msra.mxu0 0.0
      %210 = vmatpush.xpose.msra.mxu0 0.0
      %211 = vmatpush.xpose.msra.mxu0 0.0
      %212 = vmatpush.xpose.msra.mxu0 0.0
      %213 = vmatpush.xpose.msra.mxu0 0.0
      %214 = vmatpush.xpose.msra.mxu0 0.0
      %215 = vmatpush.xpose.msra.mxu0 0.0
      %216 = vmatpush.xpose.msra.mxu0 0.0
      %217 = vmatpush.xpose.msra.mxu0 0.0
      %218 = vmatpush.xpose.msra.mxu0 0.0
      %219 = vmatpush.xpose.msra.mxu0 0.0
      %220 = vmatpush.xpose.msra.mxu0 0.0
      %221 = vmatpush.xpose.msra.mxu0 %v204
      %222 = vmatmul.f32.gmra.mxu0 %v201
      %v223 = vpop.f32.mrf.mxu0
      %v224 = vadd.f32 0.0, %v223
      %225 = vdwg.mxu0
      %vm226 = vcmask 16384
      %v227 = vsel %vm226, %v224, -inf
      %228 = vmax.xlane.f32.xlu0 %v227
      %v229 = vpop.xlane.xlu0 %228
      %v230 = vsub.f32 %v224, %v229
      %v231 = vmul.f32 %v230, 1.442695
      %v232 = vpow.pop %v231
      %v233 = vsel %vm226, %v232, 0.0
      %234 = vadd.xlane.f32.xlu0 %v233
      %v235 = vpop.xlane.xlu0 %234
      %v236 = vrcp.pop %v235
      %v237 = vmul.f32 %v232, %v236
      %vm238 = vcmask 23552
      %v240 = vsel %vm238, %v237, 0
      %vm242 = vcmask 1042432
      %v244 = vsel %vm242, %v198, 0
      %246 = vmatpush.msra.mxu0 0.0
      %247 = vmatpush.msra.mxu0 0.0
      %248 = vmatpush.msra.mxu0 0.0
      %249 = vmatpush.msra.mxu0 0.0
      %250 = vmatpush.msra.mxu0 0.0
      %251 = vmatpush.msra.mxu0 0.0
      %252 = vmatpush.msra.mxu0 0.0
      %253 = vmatpush.msra.mxu0 0.0
      %254 = vmatpush.msra.mxu0 0.0
      %255 = vmatpush.msra.mxu0 0.0
      %256 = vmatpush.msra.mxu0 0.0
      %257 = vmatpush.msra.mxu0 0.0
      %258 = vmatpush.msra.mxu0 0.0
      %259 = vmatpush.msra.mxu0 0.0
      %260 = vmatpush.msra.mxu0 0.0
      %261 = vmatpush.msra.mxu0 %v244
      %262 = vmatmul.f32.gmra.mxu0 %v240
      %v263 = vpop.f32.mrf.mxu0
      %v264 = vadd.f32 0.0, %v263
      %265 = vdwg.mxu0
      %v266 = vperm.slane %v196, 0
      %267 = vrot.lane.b32.xlu0 %v266, 64
      %v268 = vpop.permute.xlu0 %267
      %269 = vrot.lane.b32.xlu0 %v197, 64
      %v270 = vpop.permute.xlu0 %269
      %v271 = vsel %vm199, %v268, 0
      %v273 = vsel %vm199, %v270, 0
      %275 = vmatpush.xpose.msra.mxu0 0.0
      %276 = vmatpush.xpose.msra.mxu0 0.0
      %277 = vmatpush.xpose.msra.mxu0 0.0
      %278 = vmatpush.xpose.msra.mxu0 0.0
      %279 = vmatpush.xpose.msra.mxu0 0.0
      %280 = vmatpush.xpose.msra.mxu0 0.0
      %281 = vmatpush.xpose.msra.mxu0 0.0
      %282 = vmatpush.xpose.msra.mxu0 0.0
      %283 = vmatpush.xpose.msra.mxu0 0.0
      %284 = vmatpush.xpose.msra.mxu0 0.0
      %285 = vmatpush.xpose.msra.mxu0 0.0
      %286 = vmatpush.xpose.msra.mxu0 0.0
      %287 = vmatpush.xpose.msra.mxu0 0.0
      %288 = vmatpush.xpose.msra.mxu0 0.0
      %289 = vmatpush.xpose.msra.mxu0 0.0
      %290 = vmatpush.xpose.msra.mxu0 %v273
      %291 = vmatmul.f32.gmra.mxu0 %v271
      %v292 = vpop.f32.mrf.mxu0
      %v293 = vadd.f32 0.0, %v292
      %294 = vdwg.mxu0
      %v295 = vsel %vm226, %v293, -inf
      %296 = vmax.xlane.f32.xlu0 %v295
      %v297 = vpop.xlane.xlu0 %296
      %v298 = vsub.f32 %v293, %v297
      %v299 = vmul.f32 %v298, 1.442695
      %v300 = vpow.pop %v299
      %v301 = vsel %vm226, %v300, 0.0
      %302 = vadd.xlane.f32.xlu0 %v301
      %v303 = vpop.xlane.xlu0 %302
      %v304 = vrcp.pop %v303
      %v305 = vmul.f32 %v300, %v304
      %306 = vrot.lane.b32.xlu0 %v198, 64
      %v307 = vpop.permute.xlu0 %306
      %v309 = vsel %vm238, %v305, 0
      %v311 = vsel %vm242, %v307, 0
      %313 = vmatpush.msra.mxu0 0.0
      %314 = vmatpush.msra.mxu0 0.0
      %315 = vmatpush.msra.mxu0 0.0
      %316 = vmatpush.msra.mxu0 0.0
      %317 = vmatpush.msra.mxu0 0.0
      %318 = vmatpush.msra.mxu0 0.0
      %319 = vmatpush.msra.mxu0 0.0
      %320 = vmatpush.msra.mxu0 0.0
      %321 = vmatpush.msra.mxu0 0.0
      %322 = vmatpush.msra.mxu0 0.0
      %323 = vmatpush.msra.mxu0 0.0
      %324 = vmatpush.msra.mxu0 0.0
      %325 = vmatpush.msra.mxu0 0.0
      %326 = vmatpush.msra.mxu0 0.0
      %327 = vmatpush.msra.mxu0 0.0
      %328 = vmatpush.msra.mxu0 %v311
      %329 = vmatmul.f32.gmra.mxu0 %v309
      %v330 = vpop.f32.mrf.mxu0
      %v331 = vadd.f32 0.0, %v330
      %332 = vdwg.mxu0
      %334 = vrot.lane.b32.xlu0 %v331, 64
      %v335 = vpop.permute.xlu0 %334
      %v337 = vsel %vm199, %v264, %v335
      %338 = vst [vmem:[%s194] sm:$0x1] %v337
      %p339 = scmp.lt.s32.totalorder %s14, 3
      %s340 = scalar_select %p339, %s14, 3
      %s341 = scalar_lea.vmem %s3, %s340
      // Predicated region
      $region33: #{audio_transformer_fwd.30} parent=31 // pred_check
        %p342 = pneg %p110
      $region34: #{audio_transformer_fwd.30} parent=31 // pred_check_branch
        %344 = sbr.rel (%p342) target = $region36
      $region35: #{audio_transformer_fwd.30} parent=31 // pred_region
        _
      $region36: #{audio_transformer_fwd.30} parent=31 // pred_fallthru
        _
    $region32: #{audio_transformer_fwd.30} parent=5 // pred_fallthru
      _
    %p345 = scmp.le.s32.totalorder 2, %s9
    // Predicated region
    $region37: #{audio_transformer_fwd.30} parent=5 // pred_check
      %p346 = pneg %p345
    $region38: #{audio_transformer_fwd.30} parent=5 // pred_check_branch
      %348 = sbr.rel (%p346) target = $region40
    $region39: #{audio_transformer_fwd.30} parent=5 // pred_region
      %s349 = ssub.s32 %s9, 2
      // Predicated region
      $region41: #{audio_transformer_fwd.30} parent=39 // pred_check
        %p350 = pneg %p116
      $region42: #{audio_transformer_fwd.30} parent=39 // pred_check_branch
        %352 = sbr.rel (%p350) target = $region44
      $region43: #{audio_transformer_fwd.30} parent=39 // pred_region
        %p353 = scmp.lt.s32.totalorder %s15, 3
        %s354 = scalar_select %p353, %s15, 3
        %s355 = scalar_lea.vmem %s3, %s354
      $region44: #{audio_transformer_fwd.30} parent=39 // pred_fallthru
        _
    $region40: #{audio_transformer_fwd.30} parent=5 // pred_fallthru
      _
  $region6: #{audio_transformer_fwd.30} parent=0 // loop_footer
    %s13 = sadd.s32 1, %s9
  $region7: #{audio_transformer_fwd.30} parent=0 // loop_footer_branch
    %8 = sbr.rel target = $region3
  $region8: #{audio_transformer_fwd.30} parent=0 // loop_exit
    _

// kernel: audio_transformer_fwd.28
$region0: #{audio_transformer_fwd.28}
  #allocation0 [shape = 'u32[]', space=smem, size = 0x4, offset = 0x4, fixed_abs, tag = 'smem constant byte address 0x4 - core index']
  #allocation1 [shape = 'u32[72,128]{1,0:T(1,128)}', space=vmem, size = 0x9000, scoped, tag = 'internal scratch']
  #allocation2 [shape = 'f32[4,128]{1,0:T(4,128)}', space=vmem, size = 0x800, scoped, tag = 'scratch operand']
  %s0 = inlined_call_operand.vmem [shape: f32[4,128], index: 0, kind: input, shape index: {}]
  %s1 = inlined_call_operand.vmem [shape: f32[128,128], index: 1, kind: input, shape index: {}]
  %s2 = inlined_call_operand.vmem [shape: f32[1,128], index: 2, kind: input, shape index: {}]
  %s3 = inlined_call_operand.vmem [shape: f32[4,128], index: 3, kind: output, shape index: {}]
  %s4 = sld [smem:[#allocation0]]
  $region30: #{audio_transformer_fwd.28} parent=0
    _
  %s6 = ssub.s32 1, %s4
  %s7 = scalar_select 0, %s6, %s4
  // Predicated region
  $region2: #{audio_transformer_fwd.28} parent=0 // pred_check
    _
  $region3: #{audio_transformer_fwd.28} parent=0 // pred_check_branch
    %9 = sbr.rel (0) target = $region5
  $region4: #{audio_transformer_fwd.28} parent=0 // pred_region
    _
  $region5: #{audio_transformer_fwd.28} parent=0 // pred_fallthru
    _
  // Predicated region
  $region6: #{audio_transformer_fwd.28} parent=0 // pred_check
    _
  $region7: #{audio_transformer_fwd.28} parent=0 // pred_check_branch
    %11 = sbr.rel (0) target = $region9
  $region8: #{audio_transformer_fwd.28} parent=0 // pred_region
    _
  $region9: #{audio_transformer_fwd.28} parent=0 // pred_fallthru
    _
  // Predicated region
  $region10: #{audio_transformer_fwd.28} parent=0 // pred_check
    _
  $region11: #{audio_transformer_fwd.28} parent=0 // pred_check_branch
    %13 = sbr.rel (0) target = $region13
  $region12: #{audio_transformer_fwd.28} parent=0 // pred_region
    _
  $region13: #{audio_transformer_fwd.28} parent=0 // pred_fallthru
    _
  %p14 = scmp.eq.s32.totalorder 0, 0
  // Predicated region
  $region14: #{audio_transformer_fwd.28} parent=0 // pred_check
    %p15 = pneg %p14
  $region15: #{audio_transformer_fwd.28} parent=0 // pred_check_branch
    %17 = sbr.rel (%p15) target = $region17
  $region16: #{audio_transformer_fwd.28} parent=0 // pred_region
    %18 = vst [vmem:[#allocation2] sm:$0xf] 0.0
  $region17: #{audio_transformer_fwd.28} parent=0 // pred_fallthru
    _
  %v19 = vld [vmem:[#allocation2] sm:$0xf]
  %v20 = vld [vmem:[%s0] sm:$0xf]
  %v21 = vld [vmem:[%s1] sm:$0xff]
  %v22 = vld [vmem:[%s1 + $0x8] sm:$0xff]
  %v23 = vld [vmem:[%s1 + $0x10] sm:$0xff]
  %v24 = vld [vmem:[%s1 + $0x18] sm:$0xff]
  %v25 = vld [vmem:[%s1 + $0x20] sm:$0xff]
  %v26 = vld [vmem:[%s1 + $0x28] sm:$0xff]
  %v27 = vld [vmem:[%s1 + $0x30] sm:$0xff]
  %v28 = vld [vmem:[%s1 + $0x38] sm:$0xff]
  %v29 = vld [vmem:[%s1 + $0x40] sm:$0xff]
  %v30 = vld [vmem:[%s1 + $0x48] sm:$0xff]
  %v31 = vld [vmem:[%s1 + $0x50] sm:$0xff]
  %v32 = vld [vmem:[%s1 + $0x58] sm:$0xff]
  %v33 = vld [vmem:[%s1 + $0x60] sm:$0xff]
  %v34 = vld [vmem:[%s1 + $0x68] sm:$0xff]
  %v35 = vld [vmem:[%s1 + $0x70] sm:$0xff]
  %v36 = vld [vmem:[%s1 + $0x78] sm:$0xff]
  %37 = vmatpush.msra.mxu0 %v36
  %38 = vmatpush.msra.mxu0 %v35
  %39 = vmatpush.msra.mxu0 %v34
  %40 = vmatpush.msra.mxu0 %v33
  %41 = vmatpush.msra.mxu0 %v32
  %42 = vmatpush.msra.mxu0 %v31
  %43 = vmatpush.msra.mxu0 %v30
  %44 = vmatpush.msra.mxu0 %v29
  %45 = vmatpush.msra.mxu0 %v28
  %46 = vmatpush.msra.mxu0 %v27
  %47 = vmatpush.msra.mxu0 %v26
  %48 = vmatpush.msra.mxu0 %v25
  %49 = vmatpush.msra.mxu0 %v24
  %50 = vmatpush.msra.mxu0 %v23
  %51 = vmatpush.msra.mxu0 %v22
  %52 = vmatpush.msra.mxu0 %v21
  %53 = vmatmul.f32.gmra.mxu0 %v20
  %v54 = vpop.f32.mrf.mxu0
  %v55 = vadd.f32 0.0, %v54
  %56 = vdwg.mxu0
  %v57 = vadd.f32 %v19, %v55
  %58 = vst [vmem:[#allocation2] sm:$0xf] %v57
  // Predicated region
  $region18: #{audio_transformer_fwd.28} parent=0 // pred_check
    %p59 = pneg %p14
  $region19: #{audio_transformer_fwd.28} parent=0 // pred_check_branch
    %61 = sbr.rel (%p59) target = $region21
  $region20: #{audio_transformer_fwd.28} parent=0 // pred_region
    %v62 = vld [vmem:[#allocation2] sm:$0xf]
    %v63 = vld [vmem:[%s2] sm:$0x1]
    %v65 = vperm.slane %v63, 0
    %v67 = vadd.f32 %v62, %v65
    %68 = vst [vmem:[%s3] sm:$0xf] %v67
  $region21: #{audio_transformer_fwd.28} parent=0 // pred_fallthru
    _
  // Predicated region
  $region22: #{audio_transformer_fwd.28} parent=0 // pred_check
    _
  $region23: #{audio_transformer_fwd.28} parent=0 // pred_check_branch
    %70 = sbr.rel (0) target = $region25
  $region24: #{audio_transformer_fwd.28} parent=0 // pred_region
    _
  $region25: #{audio_transformer_fwd.28} parent=0 // pred_fallthru
    _
  // Predicated region
  $region26: #{audio_transformer_fwd.28} parent=0 // pred_check
    _
  $region27: #{audio_transformer_fwd.28} parent=0 // pred_check_branch
    %72 = sbr.rel (0) target = $region29
  $region28: #{audio_transformer_fwd.28} parent=0 // pred_region
    _
  $region29: #{audio_transformer_fwd.28} parent=0 // pred_fallthru
    _

// kernel: audio_transformer_fwd.31
$region0: #{audio_transformer_fwd.31}
  #allocation0 [shape = 'u32[]', space=smem, size = 0x4, offset = 0x4, fixed_abs, tag = 'smem constant byte address 0x4 - core index']
  #allocation1 [shape = 'u32[72,128]{1,0:T(1,128)}', space=vmem, size = 0x9000, scoped, tag = 'internal scratch']
  #allocation2 [shape = 'f32[4,128]{1,0:T(4,128)}', space=vmem, size = 0x800, scoped, tag = 'scratch operand']
  %s0 = inlined_call_operand.vmem [shape: f32[4,128], index: 0, kind: input, shape index: {}]
  %s1 = inlined_call_operand.vmem [shape: f32[128,128], index: 1, kind: input, shape index: {}]
  %s2 = inlined_call_operand.vmem [shape: f32[1,128], index: 2, kind: input, shape index: {}]
  %s3 = inlined_call_operand.hbm [shape: f32[4,128], index: 3, kind: output, shape index: {}]
  %s4 = sld [smem:[#allocation0]]
  $region30: #{audio_transformer_fwd.31} parent=0
    _
  %s6 = ssub.s32 1, %s4
  %s7 = scalar_select 0, %s6, %s4
  $region1: #{audio_transformer_fwd.31} parent=0
    #allocation3 [shape = 'u8[2048]{0}', space=vmem, size = 0x800, scoped, tag = 'output window, operand 0, single buffered']
    #allocation4 [shape = 's32[1]{0}', space=sflag, size = 0x4, scoped, tag = 'scoped memory for audio_transformer_fwd.31']
    %8 = vsyncpa [#allocation4], 0
    // Predicated region
    $region2: #{audio_transformer_fwd.31} parent=1 // pred_check
      _
    $region3: #{audio_transformer_fwd.31} parent=1 // pred_check_branch
      %10 = sbr.rel (0) target = $region5
    $region4: #{audio_transformer_fwd.31} parent=1 // pred_region
      _
    $region5: #{audio_transformer_fwd.31} parent=1 // pred_fallthru
      _
    // Predicated region
    $region6: #{audio_transformer_fwd.31} parent=1 // pred_check
      _
    $region7: #{audio_transformer_fwd.31} parent=1 // pred_check_branch
      %12 = sbr.rel (0) target = $region9
    $region8: #{audio_transformer_fwd.31} parent=1 // pred_region
      _
    $region9: #{audio_transformer_fwd.31} parent=1 // pred_fallthru
      _
    // Predicated region
    $region10: #{audio_transformer_fwd.31} parent=1 // pred_check
      _
    $region11: #{audio_transformer_fwd.31} parent=1 // pred_check_branch
      %14 = sbr.rel (0) target = $region13
    $region12: #{audio_transformer_fwd.31} parent=1 // pred_region
      _
    $region13: #{audio_transformer_fwd.31} parent=1 // pred_fallthru
      _
    %p15 = scmp.eq.s32.totalorder 0, 0
    // Predicated region
    $region14: #{audio_transformer_fwd.31} parent=1 // pred_check
      %p16 = pneg %p15
    $region15: #{audio_transformer_fwd.31} parent=1 // pred_check_branch
      %18 = sbr.rel (%p16) target = $region17
    $region16: #{audio_transformer_fwd.31} parent=1 // pred_region
      %19 = vst [vmem:[#allocation2] sm:$0xf] 0.0
    $region17: #{audio_transformer_fwd.31} parent=1 // pred_fallthru
      _
    %v20 = vld [vmem:[#allocation2] sm:$0xf]
    %v21 = vld [vmem:[%s0] sm:$0xf]
    %v22 = vld [vmem:[%s1] sm:$0xff]
    %v23 = vld [vmem:[%s1 + $0x8] sm:$0xff]
    %v24 = vld [vmem:[%s1 + $0x10] sm:$0xff]
    %v25 = vld [vmem:[%s1 + $0x18] sm:$0xff]
    %v26 = vld [vmem:[%s1 + $0x20] sm:$0xff]
    %v27 = vld [vmem:[%s1 + $0x28] sm:$0xff]
    %v28 = vld [vmem:[%s1 + $0x30] sm:$0xff]
    %v29 = vld [vmem:[%s1 + $0x38] sm:$0xff]
    %v30 = vld [vmem:[%s1 + $0x40] sm:$0xff]
    %v31 = vld [vmem:[%s1 + $0x48] sm:$0xff]
    %v32 = vld [vmem:[%s1 + $0x50] sm:$0xff]
    %v33 = vld [vmem:[%s1 + $0x58] sm:$0xff]
    %v34 = vld [vmem:[%s1 + $0x60] sm:$0xff]
    %v35 = vld [vmem:[%s1 + $0x68] sm:$0xff]
    %v36 = vld [vmem:[%s1 + $0x70] sm:$0xff]
    %v37 = vld [vmem:[%s1 + $0x78] sm:$0xff]
    %38 = vmatpush.msra.mxu0 %v37
    %39 = vmatpush.msra.mxu0 %v36
    %40 = vmatpush.msra.mxu0 %v35
    %41 = vmatpush.msra.mxu0 %v34
    %42 = vmatpush.msra.mxu0 %v33
    %43 = vmatpush.msra.mxu0 %v32
    %44 = vmatpush.msra.mxu0 %v31
    %45 = vmatpush.msra.mxu0 %v30
    %46 = vmatpush.msra.mxu0 %v29
    %47 = vmatpush.msra.mxu0 %v28
    %48 = vmatpush.msra.mxu0 %v27
    %49 = vmatpush.msra.mxu0 %v26
    %50 = vmatpush.msra.mxu0 %v25
    %51 = vmatpush.msra.mxu0 %v24
    %52 = vmatpush.msra.mxu0 %v23
    %53 = vmatpush.msra.mxu0 %v22
    %54 = vmatmul.f32.gmra.mxu0 %v21
    %v55 = vpop.f32.mrf.mxu0
    %v56 = vadd.f32 0.0, %v55
    %57 = vdwg.mxu0
    %v58 = vadd.f32 %v20, %v56
    %59 = vst [vmem:[#allocation2] sm:$0xf] %v58
    // Predicated region
    $region18: #{audio_transformer_fwd.31} parent=1 // pred_check
      %p60 = pneg %p15
    $region19: #{audio_transformer_fwd.31} parent=1 // pred_check_branch
      %62 = sbr.rel (%p60) target = $region21
    $region20: #{audio_transformer_fwd.31} parent=1 // pred_region
      %v63 = vld [vmem:[#allocation2] sm:$0xf]
      %v64 = vld [vmem:[%s2] sm:$0x1]
      %v66 = vperm.slane %v64, 0
      %v68 = vadd.f32 %v63, %v66
      %69 = vst [vmem:[#allocation3] sm:$0xf] %v68
    $region21: #{audio_transformer_fwd.31} parent=1 // pred_fallthru
      _
    // Predicated region
    $region22: #{audio_transformer_fwd.31} parent=1 // pred_check
      _
    $region23: #{audio_transformer_fwd.31} parent=1 // pred_check_branch
      %71 = sbr.rel (0) target = $region25
    $region24: #{audio_transformer_fwd.31} parent=1 // pred_region
      %73 = vsyncadd [#allocation4], 0
      %s75 = sshll.u32 [#allocation3], 4
      %s76 = int_to_ptr.vmem [resolvable:$true] %s75
      %s77 = sshll.u32 %s3, 4
      %s78 = int_to_ptr.hbm [resolvable:$true] %s77
      %80 = dma.vmem_to_hbm [thread:$0]  %s76, 64, %s78, [#allocation4]
    $region25: #{audio_transformer_fwd.31} parent=1 // pred_fallthru
      _
    // Predicated region
    $region26: #{audio_transformer_fwd.31} parent=1 // pred_check
      _
    $region27: #{audio_transformer_fwd.31} parent=1 // pred_check_branch
      %82 = sbr.rel (0) target = $region29
    $region28: #{audio_transformer_fwd.31} parent=1 // pred_region
      %84 = dma.done [#allocation4], 64
    $region29: #{audio_transformer_fwd.31} parent=1 // pred_fallthru
      _
    %85 = vsyncpa [#allocation4], 1

// kernel: audio_transformer_fwd.27
$region0: #{audio_transformer_fwd.27}
  #allocation0 [shape = 'u32[]', space=smem, size = 0x4, offset = 0x4, fixed_abs, tag = 'smem constant byte address 0x4 - core index']
  #allocation1 [shape = 'u32[72,128]{1,0:T(1,128)}', space=vmem, size = 0x9000, scoped, tag = 'internal scratch']
  #allocation2 [shape = 'f32[2,128]{1,0:T(2,128)}', space=vmem, size = 0x400, scoped, tag = 'scratch operand']
  %s0 = inlined_call_operand.vmem [shape: f32[2,128], index: 0, kind: input, shape index: {}]
  %s1 = inlined_call_operand.vmem [shape: f32[128,128], index: 1, kind: input, shape index: {}]
  %s2 = inlined_call_operand.vmem [shape: f32[1,128], index: 2, kind: input, shape index: {}]
  %s3 = inlined_call_operand.hbm [shape: f32[2,128], index: 3, kind: output, shape index: {}]
  %s4 = sld [smem:[#allocation0]]
  $region30: #{audio_transformer_fwd.27} parent=0
    _
  %s6 = ssub.s32 1, %s4
  %s7 = scalar_select 0, %s6, %s4
  $region1: #{audio_transformer_fwd.27} parent=0
    #allocation3 [shape = 'u8[1024]{0}', space=vmem, size = 0x400, scoped, tag = 'output window, operand 0, single buffered']
    #allocation4 [shape = 's32[1]{0}', space=sflag, size = 0x4, scoped, tag = 'scoped memory for audio_transformer_fwd.27']
    %8 = vsyncpa [#allocation4], 0
    // Predicated region
    $region2: #{audio_transformer_fwd.27} parent=1 // pred_check
      _
    $region3: #{audio_transformer_fwd.27} parent=1 // pred_check_branch
      %10 = sbr.rel (0) target = $region5
    $region4: #{audio_transformer_fwd.27} parent=1 // pred_region
      _
    $region5: #{audio_transformer_fwd.27} parent=1 // pred_fallthru
      _
    // Predicated region
    $region6: #{audio_transformer_fwd.27} parent=1 // pred_check
      _
    $region7: #{audio_transformer_fwd.27} parent=1 // pred_check_branch
      %12 = sbr.rel (0) target = $region9
    $region8: #{audio_transformer_fwd.27} parent=1 // pred_region
      _
    $region9: #{audio_transformer_fwd.27} parent=1 // pred_fallthru
      _
    // Predicated region
    $region10: #{audio_transformer_fwd.27} parent=1 // pred_check
      _
    $region11: #{audio_transformer_fwd.27} parent=1 // pred_check_branch
      %14 = sbr.rel (0) target = $region13
    $region12: #{audio_transformer_fwd.27} parent=1 // pred_region
      _
    $region13: #{audio_transformer_fwd.27} parent=1 // pred_fallthru
      _
    %p15 = scmp.eq.s32.totalorder 0, 0
    // Predicated region
    $region14: #{audio_transformer_fwd.27} parent=1 // pred_check
      %p16 = pneg %p15
    $region15: #{audio_transformer_fwd.27} parent=1 // pred_check_branch
      %18 = sbr.rel (%p16) target = $region17
    $region16: #{audio_transformer_fwd.27} parent=1 // pred_region
      %19 = vst [vmem:[#allocation2] sm:$0x3] 0.0
    $region17: #{audio_transformer_fwd.27} parent=1 // pred_fallthru
      _
    %v20 = vld [vmem:[#allocation2] sm:$0x3]
    %v21 = vld [vmem:[%s0] sm:$0x3]
    %v22 = vld [vmem:[%s1] sm:$0xff]
    %v23 = vld [vmem:[%s1 + $0x8] sm:$0xff]
    %v24 = vld [vmem:[%s1 + $0x10] sm:$0xff]
    %v25 = vld [vmem:[%s1 + $0x18] sm:$0xff]
    %v26 = vld [vmem:[%s1 + $0x20] sm:$0xff]
    %v27 = vld [vmem:[%s1 + $0x28] sm:$0xff]
    %v28 = vld [vmem:[%s1 + $0x30] sm:$0xff]
    %v29 = vld [vmem:[%s1 + $0x38] sm:$0xff]
    %v30 = vld [vmem:[%s1 + $0x40] sm:$0xff]
    %v31 = vld [vmem:[%s1 + $0x48] sm:$0xff]
    %v32 = vld [vmem:[%s1 + $0x50] sm:$0xff]
    %v33 = vld [vmem:[%s1 + $0x58] sm:$0xff]
    %v34 = vld [vmem:[%s1 + $0x60] sm:$0xff]
    %v35 = vld [vmem:[%s1 + $0x68] sm:$0xff]
    %v36 = vld [vmem:[%s1 + $0x70] sm:$0xff]
    %v37 = vld [vmem:[%s1 + $0x78] sm:$0xff]
    %38 = vmatpush.msra.mxu0 %v37
    %39 = vmatpush.msra.mxu0 %v36
    %40 = vmatpush.msra.mxu0 %v35
    %41 = vmatpush.msra.mxu0 %v34
    %42 = vmatpush.msra.mxu0 %v33
    %43 = vmatpush.msra.mxu0 %v32
    %44 = vmatpush.msra.mxu0 %v31
    %45 = vmatpush.msra.mxu0 %v30
    %46 = vmatpush.msra.mxu0 %v29
    %47 = vmatpush.msra.mxu0 %v28
    %48 = vmatpush.msra.mxu0 %v27
    %49 = vmatpush.msra.mxu0 %v26
    %50 = vmatpush.msra.mxu0 %v25
    %51 = vmatpush.msra.mxu0 %v24
    %52 = vmatpush.msra.mxu0 %v23
    %53 = vmatpush.msra.mxu0 %v22
    %54 = vmatmul.f32.gmra.mxu0 %v21
    %v55 = vpop.f32.mrf.mxu0
    %v56 = vadd.f32 0.0, %v55
    %57 = vdwg.mxu0
    %v58 = vadd.f32 %v20, %v56
    %59 = vst [vmem:[#allocation2] sm:$0x3] %v58
    // Predicated region
    $region18: #{audio_transformer_fwd.27} parent=1 // pred_check
      %p60 = pneg %p15
    $region19: #{audio_transformer_fwd.27} parent=1 // pred_check_branch
      %62 = sbr.rel (%p60) target = $region21
    $region20: #{audio_transformer_fwd.27} parent=1 // pred_region
      %v63 = vld [vmem:[#allocation2] sm:$0x3]
      %v64 = vld [vmem:[%s2] sm:$0x1]
      %v66 = vperm.slane %v64, 0
      %v68 = vadd.f32 %v63, %v66
      %69 = vst [vmem:[#allocation3] sm:$0x3] %v68
    $region21: #{audio_transformer_fwd.27} parent=1 // pred_fallthru
      _
    // Predicated region
    $region22: #{audio_transformer_fwd.27} parent=1 // pred_check
      _
    $region23: #{audio_transformer_fwd.27} parent=1 // pred_check_branch
      %71 = sbr.rel (0) target = $region25
    $region24: #{audio_transformer_fwd.27} parent=1 // pred_region
      %73 = vsyncadd [#allocation4], 0
      %s75 = sshll.u32 [#allocation3], 4
      %s76 = int_to_ptr.vmem [resolvable:$true] %s75
      %s77 = sshll.u32 %s3, 4
      %s78 = int_to_ptr.hbm [resolvable:$true] %s77
      %80 = dma.vmem_to_hbm [thread:$0]  %s76, 32, %s78, [#allocation4]
    $region25: #{audio_transformer_fwd.27} parent=1 // pred_fallthru
      _
    // Predicated region
    $region26: #{audio_transformer_fwd.27} parent=1 // pred_check
      _
    $region27: #{audio_transformer_fwd.27} parent=1 // pred_check_branch
      %82 = sbr.rel (0) target = $region29
    $region28: #{audio_transformer_fwd.27} parent=1 // pred_region
      %84 = dma.done [#allocation4], 32
    $region29: #{audio_transformer_fwd.27} parent=1 // pred_fallthru
      _
    %85 = vsyncpa [#allocation4], 1

</llo_original>
